<compile_context>
chip_gen: v6e
topology: v6e:2x2x1
jax: 0.10.0
libtpu: 0.0.40
codegen_flags: <defaults>
</compile_context>

<pallas_src>
import jax
import jax.numpy as jnp
import numpy as np
from jax.experimental import pallas as pl
from jax.experimental.pallas import tpu as pltpu

_OFF = 8  # sublane-aligned column offset of the data region inside the pooling scratch


# ---------------------------------------------------------------------------
# Fused SPP kernel (one batch element per grid step)
# ---------------------------------------------------------------------------
def _spp_kernel(x_ref, w1_ref, b1_ref, w2_ref, b2_ref, o_ref, ybuf):
    # x_ref : (H*W, c1)              input slab (compute_dtype)
    # w1_ref: (c1, c_)               cv1 weight (BN folded, compute_dtype)
    # b1_ref: (1, c_)                cv1 bias (f32)
    # w2_ref: (4, c_, c2)            cv2 weight split per branch [id, p5, p9, p13]
    # b2_ref: (1, c2)                cv2 bias (f32)
    # o_ref : (H*W, c2)              output slab
    # ybuf  : (H+4, W+16, c_) f32    pooling buffer, data at [2:H+2, 8:8+W, :]
    Hp, Wp, c_ = ybuf.shape
    H, W = Hp - 4, Wp - 16
    cd = w1_ref.dtype                                   # matmul (MXU) dtype

    # --- cv1: 1x1 conv (matmul over channels) + folded-BN bias + SiLU --------
    y = jnp.dot(x_ref[...], w1_ref[...], preferred_element_type=jnp.float32)
    y = y + b1_ref[...]
    y = y * jax.nn.sigmoid(y)                           # SiLU, f32

    # --- cv2 accumulator: branch 0 is the un-pooled cv1 output ---------------
    acc = jnp.dot(y.astype(cd), w2_ref[0], preferred_element_type=jnp.float32)

    # --- seed padded pooling buffer -------------------------------------------
    # PyTorch MaxPool2d padding behaves like -inf, so the halo never wins.
    # Only the halo cells the 5-tap windows actually read are filled; the big
    # centre store is sublane-aligned (column offset 8).
    ninf = float("-inf")
    ybuf[:, _OFF - 2:_OFF, :] = jnp.full((Hp, 2, c_), ninf, jnp.float32)       # left
    ybuf[:, _OFF + W:_OFF + W + 2, :] = jnp.full((Hp, 2, c_), ninf, jnp.float32)  # right
    ybuf[0:2, _OFF:_OFF + W, :] = jnp.full((2, W, c_), ninf, jnp.float32)      # top
    ybuf[H + 2:H + 4, _OFF:_OFF + W, :] = jnp.full((2, W, c_), ninf, jnp.float32)  # bottom
    ybuf[2:H + 2, _OFF:_OFF + W, :] = y.reshape(H, W, c_)                      # centre

    # --- cascaded 5x5 max pools == SPP pools with k = (5, 9, 13) --------------
    for t in range(3):
        xp = ybuf[...]                                  # (H+4, W+16, c_)
        rm = xp[0:H]
        for d in range(1, 5):                           # 5-tap max along H
            rm = jnp.maximum(rm, xp[d:d + H])
        p = rm[:, _OFF - 2:_OFF - 2 + W]
        for d in range(1, 5):                           # 5-tap max along W
            p = jnp.maximum(p, rm[:, _OFF - 2 + d:_OFF - 2 + d + W])
        acc = acc + jnp.dot(p.reshape(H * W, c_).astype(cd), w2_ref[t + 1],
                            preferred_element_type=jnp.float32)
        if t < 2:                                       # feed next cascade stage
            ybuf[2:H + 2, _OFF:_OFF + W, :] = p         # halo stays -inf

    # --- cv2 bias + SiLU -------------------------------------------------------
    out = acc + b2_ref[...]
    out = out * jax.nn.sigmoid(out)
    o_ref[...] = out.astype(o_ref.dtype)


# ---------------------------------------------------------------------------
# Pallas-call wrapper
# ---------------------------------------------------------------------------
def spp_forward(x_nchw, params, *, compute_dtype=jnp.float32):
    """SPP forward. x: (N, c1, H, W) NCHW. Returns (N, c2, H, W) NCHW."""
    x = jnp.transpose(x_nchw, (0, 2, 3, 1))             # NCHW -> NHWC (glue)
    N, H, W, c1 = x.shape
    w1, b1 = params["cv1"]["w"], params["cv1"]["b"]     # (c1, c_), (1, c_)
    w2, b2 = params["cv2"]["w"], params["cv2"]["b"]     # (4*c_, c2), (1, c2)
    c_ = w1.shape[1]
    c2 = w2.shape[1]

    # Lane-dense (H*W, C) slabs for the kernel (free HBM reshape); matmul operands
    # in compute_dtype (bf16 on v6e/v7x), biases + SiLU math stay f32.
    xc = x.reshape(N, H * W, c1).astype(compute_dtype)
    w1c = w1.astype(compute_dtype)
    w2c = w2.reshape(4, c_, c2).astype(compute_dtype)   # split per SPP branch

    out = pl.pallas_call(
        _spp_kernel,
        out_shape=jax.ShapeDtypeStruct((N, H * W, c2), x.dtype),
        grid=(N,),                                      # parallel over batch
        in_specs=[
            pl.BlockSpec((None, H * W, c1), lambda n: (n, 0, 0)),
            # Constant block index -> weights/biases stay VMEM-resident.
            pl.BlockSpec((c1, c_), lambda n: (0, 0)),
            pl.BlockSpec((1, c_), lambda n: (0, 0)),
            pl.BlockSpec((4, c_, c2), lambda n: (0, 0, 0)),
            pl.BlockSpec((1, c2), lambda n: (0, 0)),
        ],
        out_specs=pl.BlockSpec((None, H * W, c2), lambda n: (n, 0, 0)),
        scratch_shapes=[pltpu.VMEM((H + 4, W + 16, c_), jnp.float32)],
        compiler_params=pltpu.CompilerParams(
            dimension_semantics=("parallel",),          # megacore / v7x 2-TC
            vmem_limit_bytes=48 * 1024 * 1024,          # fits v7x's 64 MiB VMEM
        ),
    )(xc, w1c, b1, w2c, b2)
    # TODO(synk): for very large H*W, additionally tile H with a 6-pixel halo
    # (13x13 receptive field) instead of one spatial slab per batch element.
    out = out.reshape(N, H, W, c2)
    return jnp.transpose(out, (0, 3, 1, 2))             # NHWC -> NCHW


# ---------------------------------------------------------------------------
# Parameter construction (deterministic, BN folded into the 1x1 conv weight/bias)
# ---------------------------------------------------------------------------
def _fold_bn_1x1(key, cin, cout):
    kw, kg, kb, km, kv = jax.random.split(key, 5)
    w = 0.1 * jax.random.normal(kw, (cin, cout), jnp.float32)
    gamma = 1.0 + 0.1 * jax.random.normal(kg, (cout,), jnp.float32)
    beta = 0.1 * jax.random.normal(kb, (cout,), jnp.float32)
    mean = 0.1 * jax.random.normal(km, (cout,), jnp.float32)
    var = 1.0 + 0.1 * jax.random.uniform(kv, (cout,), jnp.float32)
    scale = gamma / jnp.sqrt(var + 1e-5)
    return {"w": w * scale, "b": (beta - mean * scale).reshape(1, cout)}


def init_spp_params(key, c1, c2, k=(5, 9, 13)):
    c_ = c1 // 2
    k1, k2 = jax.random.split(key)
    return {
        "cv1": _fold_bn_1x1(k1, c1, c_),
        "cv2": _fold_bn_1x1(k2, c_ * (len(k) + 1), c2),
    }, c_


# ---------------------------------------------------------------------------
# Pure-JAX reference (XLA) for correctness checking
# ---------------------------------------------------------------------------
def spp_ref(x_nchw, params, k=(5, 9, 13)):
    x = jnp.transpose(x_nchw, (0, 2, 3, 1))
    y = jnp.einsum("nhwc,cd->nhwd", x, params["cv1"]["w"])
    y = y + params["cv1"]["b"].reshape(1, 1, 1, -1)
    y = y * jax.nn.sigmoid(y)
    pools = [y]
    for ks in k:
        pad = ks // 2
        p = jax.lax.reduce_window(
            y, -jnp.inf, jax.lax.max,
            window_dimensions=(1, ks, ks, 1),
            window_strides=(1, 1, 1, 1),
            padding=((0, 0), (pad, pad), (pad, pad), (0, 0)))
        pools.append(p)
    cat = jnp.concatenate(pools, axis=-1)
    out = jnp.einsum("nhwc,cd->nhwd", cat, params["cv2"]["w"])
    out = out + params["cv2"]["b"].reshape(1, 1, 1, -1)
    out = out * jax.nn.sigmoid(out)
    return jnp.transpose(out, (0, 3, 1, 2))


# ---------------------------------------------------------------------------
if __name__ == "__main__":
    key = jax.random.PRNGKey(0)
    kx, kp = jax.random.split(key)

    N, C1, H, W = 2, 8, 16, 16          # input x: (N, C1, H, W), NCHW
    C2 = 8                              # SPP(c1=8, c2=8, k=(5, 9, 13))

    x = jax.random.normal(kx, (N, C1, H, W), jnp.float32)
    params, _ = init_spp_params(kp, C1, C2)

    ref = jax.block_until_ready(spp_ref(x, params))

    # f32 MXU path: exact (tight tolerance).
    out = jax.block_until_ready(spp_forward(x, params))
    assert out.shape == (N, C2, H, W), out.shape
    np.testing.assert_allclose(np.asarray(out), np.asarray(ref),
                               atol=2e-4, rtol=2e-4)

    # bf16 MXU path (v6e/v7x): f32 accumulation + f32 SiLU, loose tolerance.
    out_bf16 = jax.block_until_ready(
        spp_forward(x, params, compute_dtype=jnp.bfloat16))
    np.testing.assert_allclose(np.asarray(out_bf16), np.asarray(ref),
                               atol=5e-2, rtol=5e-2)

    print("KERNEL_OK")
</pallas_src>

<mosaic_0001>
module attributes {stable_mosaic.version = 11 : i64} {
  func.func @_spp_kernel(%arg0: i32, %arg1: memref<1x256x8xf32, #tpu.memory_space<vmem>>, %arg2: memref<8x4xf32, #tpu.memory_space<vmem>>, %arg3: memref<1x4xf32, #tpu.memory_space<vmem>>, %arg4: memref<4x4x8xf32, #tpu.memory_space<vmem>>, %arg5: memref<1x8xf32, #tpu.memory_space<vmem>>, %arg6: memref<1x256x8xf32, #tpu.memory_space<vmem>>, %arg7: memref<20x32x4xf32, #tpu.memory_space<vmem>>) attributes {dimension_semantics = [#tpu.dimension_semantics<parallel>], iteration_bounds = array<i64: 2>, scalar_prefetch = 0 : i64, scratch_operands = 1 : i64, tpu.core_type = #tpu.core_type<tc>, window_params = [{transform_indices = @transform_0, window_bounds = array<i64: 1, 256, 8>}, {pipeline_mode = #tpu.pipeline_mode<synchronous>, transform_indices = @transform_1, window_bounds = array<i64: 8, 4>}, {pipeline_mode = #tpu.pipeline_mode<synchronous>, transform_indices = @transform_2, window_bounds = array<i64: 1, 4>}, {pipeline_mode = #tpu.pipeline_mode<synchronous>, transform_indices = @transform_3, window_bounds = array<i64: 4, 4, 8>}, {pipeline_mode = #tpu.pipeline_mode<synchronous>, transform_indices = @transform_4, window_bounds = array<i64: 1, 8>}, {transform_indices = @transform_5, window_bounds = array<i64: 1, 256, 8>}]} {
    %c0 = arith.constant 0 : index
    %c0_0 = arith.constant 0 : index
    %c0_1 = arith.constant 0 : index
    %0 = vector.load %arg1[%c0, %c0_0, %c0_1] : memref<1x256x8xf32, #tpu.memory_space<vmem>>, vector<1x256x8xf32>
    %1 = vector.shape_cast %0 : vector<1x256x8xf32> to vector<256x8xf32>
    %c0_2 = arith.constant 0 : index
    %c0_3 = arith.constant 0 : index
    %2 = vector.load %arg2[%c0_2, %c0_3] : memref<8x4xf32, #tpu.memory_space<vmem>>, vector<8x4xf32>
    %cst = arith.constant dense<0.000000e+00> : vector<256x4xf32>
    %3 = tpu.matmul %1, %2, %cst {dimension_numbers = #tpu.dot_dimension_numbers<[1], [0], [0], [1], [0, 0, 1, 1], [], []>} : vector<256x8xf32>, vector<8x4xf32>, vector<256x4xf32> -> vector<256x4xf32>
    %c0_4 = arith.constant 0 : index
    %c0_5 = arith.constant 0 : index
    %4 = vector.load %arg3[%c0_4, %c0_5] : memref<1x4xf32, #tpu.memory_space<vmem>>, vector<1x4xf32>
    %5 = vector.broadcast %4 : vector<1x4xf32> to vector<256x4xf32>
    %6 = arith.addf %3, %5 : vector<256x4xf32>
    %7 = arith.negf %6 : vector<256x4xf32>
    %8 = math.exp %7 : vector<256x4xf32>
    %cst_6 = arith.constant 1.000000e+00 : f32
    %9 = vector.broadcast %cst_6 : f32 to vector<256x4xf32>
    %10 = arith.addf %9, %8 : vector<256x4xf32>
    %11 = arith.divf %9, %10 : vector<256x4xf32>
    %12 = arith.mulf %6, %11 : vector<256x4xf32>
    %c0_7 = arith.constant 0 : index
    %c0_8 = arith.constant 0 : index
    %c0_9 = arith.constant 0 : index
    %13 = vector.load %arg4[%c0_7, %c0_8, %c0_9] : memref<4x4x8xf32, #tpu.memory_space<vmem>>, vector<1x4x8xf32>
    %14 = vector.shape_cast %13 : vector<1x4x8xf32> to vector<4x8xf32>
    %cst_10 = arith.constant dense<0.000000e+00> : vector<256x8xf32>
    %15 = tpu.matmul %12, %14, %cst_10 {dimension_numbers = #tpu.dot_dimension_numbers<[1], [0], [0], [1], [0, 0, 1, 1], [], []>} : vector<256x4xf32>, vector<4x8xf32>, vector<256x8xf32> -> vector<256x8xf32>
    %cst_11 = arith.constant 0xFF800000 : f32
    %16 = vector.broadcast %cst_11 : f32 to vector<20x2x4xf32>
    %c0_12 = arith.constant 0 : index
    %c6 = arith.constant 6 : index
    %c0_13 = arith.constant 0 : index
    %17 = vector.load %arg7[%c0_12, %c6, %c0_13] : memref<20x32x4xf32, #tpu.memory_space<vmem>>, vector<20x2x4xf32>
    tpu.vector_store %arg7[%c0_12, %c6, %c0_13], %16 {strides = array<i32>} : memref<20x32x4xf32, #tpu.memory_space<vmem>>, vector<20x2x4xf32>,
    %cst_14 = arith.constant 0xFF800000 : f32
    %18 = vector.broadcast %cst_14 : f32 to vector<20x2x4xf32>
    %c0_15 = arith.constant 0 : index
    %c24 = arith.constant 24 : index
    %c0_16 = arith.constant 0 : index
    %19 = vector.load %arg7[%c0_15, %c24, %c0_16] : memref<20x32x4xf32, #tpu.memory_space<vmem>>, vector<20x2x4xf32>
    tpu.vector_store %arg7[%c0_15, %c24, %c0_16], %18 {strides = array<i32>} : memref<20x32x4xf32, #tpu.memory_space<vmem>>, vector<20x2x4xf32>,
    %cst_17 = arith.constant 0xFF800000 : f32
    %20 = vector.broadcast %cst_17 : f32 to vector<2x16x4xf32>
    %c0_18 = arith.constant 0 : index
    %c8 = arith.constant 8 : index
    %c0_19 = arith.constant 0 : index
    %21 = vector.load %arg7[%c0_18, %c8, %c0_19] : memref<20x32x4xf32, #tpu.memory_space<vmem>>, vector<2x16x4xf32>
    tpu.vector_store %arg7[%c0_18, %c8, %c0_19], %20 {strides = array<i32>} : memref<20x32x4xf32, #tpu.memory_space<vmem>>, vector<2x16x4xf32>,
    %cst_20 = arith.constant 0xFF800000 : f32
    %22 = vector.broadcast %cst_20 : f32 to vector<2x16x4xf32>
    %c18 = arith.constant 18 : index
    %c8_21 = arith.constant 8 : index
    %c0_22 = arith.constant 0 : index
    %23 = vector.load %arg7[%c18, %c8_21, %c0_22] : memref<20x32x4xf32, #tpu.memory_space<vmem>>, vector<2x16x4xf32>
    tpu.vector_store %arg7[%c18, %c8_21, %c0_22], %22 {strides = array<i32>} : memref<20x32x4xf32, #tpu.memory_space<vmem>>, vector<2x16x4xf32>,
    %24 = vector.shape_cast %12 : vector<256x4xf32> to vector<16x16x4xf32>
    %c2 = arith.constant 2 : index
    %c8_23 = arith.constant 8 : index
    %c0_24 = arith.constant 0 : index
    %25 = vector.load %arg7[%c2, %c8_23, %c0_24] : memref<20x32x4xf32, #tpu.memory_space<vmem>>, vector<16x16x4xf32>
    tpu.vector_store %arg7[%c2, %c8_23, %c0_24], %24 {strides = array<i32>} : memref<20x32x4xf32, #tpu.memory_space<vmem>>, vector<16x16x4xf32>,
    %c0_25 = arith.constant 0 : index
    %c0_26 = arith.constant 0 : index
    %c0_27 = arith.constant 0 : index
    %26 = vector.load %arg7[%c0_25, %c0_26, %c0_27] : memref<20x32x4xf32, #tpu.memory_space<vmem>>, vector<20x32x4xf32>
    %27 = vector.extract_strided_slice %26 {offsets = [0, 0, 0], sizes = [16, 32, 4], strides = [1, 1, 1]} : vector<20x32x4xf32> to vector<16x32x4xf32>
    %28 = vector.extract_strided_slice %26 {offsets = [1, 0, 0], sizes = [16, 32, 4], strides = [1, 1, 1]} : vector<20x32x4xf32> to vector<16x32x4xf32>
    %29 = arith.maximumf %27, %28 : vector<16x32x4xf32>
    %30 = vector.extract_strided_slice %26 {offsets = [2, 0, 0], sizes = [16, 32, 4], strides = [1, 1, 1]} : vector<20x32x4xf32> to vector<16x32x4xf32>
    %31 = arith.maximumf %29, %30 : vector<16x32x4xf32>
    %32 = vector.extract_strided_slice %26 {offsets = [3, 0, 0], sizes = [16, 32, 4], strides = [1, 1, 1]} : vector<20x32x4xf32> to vector<16x32x4xf32>
    %33 = arith.maximumf %31, %32 : vector<16x32x4xf32>
    %34 = vector.extract_strided_slice %26 {offsets = [4, 0, 0], sizes = [16, 32, 4], strides = [1, 1, 1]} : vector<20x32x4xf32> to vector<16x32x4xf32>
    %35 = arith.maximumf %33, %34 : vector<16x32x4xf32>
    %36 = vector.extract_strided_slice %35 {offsets = [0, 6, 0], sizes = [16, 16, 4], strides = [1, 1, 1]} : vector<16x32x4xf32> to vector<16x16x4xf32>
    %37 = vector.extract_strided_slice %35 {offsets = [0, 7, 0], sizes = [16, 16, 4], strides = [1, 1, 1]} : vector<16x32x4xf32> to vector<16x16x4xf32>
    %38 = arith.maximumf %36, %37 : vector<16x16x4xf32>
    %39 = vector.extract_strided_slice %35 {offsets = [0, 8, 0], sizes = [16, 16, 4], strides = [1, 1, 1]} : vector<16x32x4xf32> to vector<16x16x4xf32>
    %40 = arith.maximumf %38, %39 : vector<16x16x4xf32>
    %41 = vector.extract_strided_slice %35 {offsets = [0, 9, 0], sizes = [16, 16, 4], strides = [1, 1, 1]} : vector<16x32x4xf32> to vector<16x16x4xf32>
    %42 = arith.maximumf %40, %41 : vector<16x16x4xf32>
    %43 = vector.extract_strided_slice %35 {offsets = [0, 10, 0], sizes = [16, 16, 4], strides = [1, 1, 1]} : vector<16x32x4xf32> to vector<16x16x4xf32>
    %44 = arith.maximumf %42, %43 : vector<16x16x4xf32>
    %45 = vector.shape_cast %44 : vector<16x16x4xf32> to vector<256x4xf32>
    %c1 = arith.constant 1 : index
    %c0_28 = arith.constant 0 : index
    %c0_29 = arith.constant 0 : index
    %46 = vector.load %arg4[%c1, %c0_28, %c0_29] : memref<4x4x8xf32, #tpu.memory_space<vmem>>, vector<1x4x8xf32>
    %47 = vector.shape_cast %46 : vector<1x4x8xf32> to vector<4x8xf32>
    %cst_30 = arith.constant dense<0.000000e+00> : vector<256x8xf32>
    %48 = tpu.matmul %45, %47, %cst_30 {dimension_numbers = #tpu.dot_dimension_numbers<[1], [0], [0], [1], [0, 0, 1, 1], [], []>} : vector<256x4xf32>, vector<4x8xf32>, vector<256x8xf32> -> vector<256x8xf32>
    %49 = arith.addf %15, %48 : vector<256x8xf32>
    %c2_31 = arith.constant 2 : index
    %c8_32 = arith.constant 8 : index
    %c0_33 = arith.constant 0 : index
    %50 = vector.load %arg7[%c2_31, %c8_32, %c0_33] : memref<20x32x4xf32, #tpu.memory_space<vmem>>, vector<16x16x4xf32>
    tpu.vector_store %arg7[%c2_31, %c8_32, %c0_33], %44 {strides = array<i32>} : memref<20x32x4xf32, #tpu.memory_space<vmem>>, vector<16x16x4xf32>,
    %c0_34 = arith.constant 0 : index
    %c0_35 = arith.constant 0 : index
    %c0_36 = arith.constant 0 : index
    %51 = vector.load %arg7[%c0_34, %c0_35, %c0_36] : memref<20x32x4xf32, #tpu.memory_space<vmem>>, vector<20x32x4xf32>
    %52 = vector.extract_strided_slice %51 {offsets = [0, 0, 0], sizes = [16, 32, 4], strides = [1, 1, 1]} : vector<20x32x4xf32> to vector<16x32x4xf32>
    %53 = vector.extract_strided_slice %51 {offsets = [1, 0, 0], sizes = [16, 32, 4], strides = [1, 1, 1]} : vector<20x32x4xf32> to vector<16x32x4xf32>
    %54 = arith.maximumf %52, %53 : vector<16x32x4xf32>
    %55 = vector.extract_strided_slice %51 {offsets = [2, 0, 0], sizes = [16, 32, 4], strides = [1, 1, 1]} : vector<20x32x4xf32> to vector<16x32x4xf32>
    %56 = arith.maximumf %54, %55 : vector<16x32x4xf32>
    %57 = vector.extract_strided_slice %51 {offsets = [3, 0, 0], sizes = [16, 32, 4], strides = [1, 1, 1]} : vector<20x32x4xf32> to vector<16x32x4xf32>
    %58 = arith.maximumf %56, %57 : vector<16x32x4xf32>
    %59 = vector.extract_strided_slice %51 {offsets = [4, 0, 0], sizes = [16, 32, 4], strides = [1, 1, 1]} : vector<20x32x4xf32> to vector<16x32x4xf32>
    %60 = arith.maximumf %58, %59 : vector<16x32x4xf32>
    %61 = vector.extract_strided_slice %60 {offsets = [0, 6, 0], sizes = [16, 16, 4], strides = [1, 1, 1]} : vector<16x32x4xf32> to vector<16x16x4xf32>
    %62 = vector.extract_strided_slice %60 {offsets = [0, 7, 0], sizes = [16, 16, 4], strides = [1, 1, 1]} : vector<16x32x4xf32> to vector<16x16x4xf32>
    %63 = arith.maximumf %61, %62 : vector<16x16x4xf32>
    %64 = vector.extract_strided_slice %60 {offsets = [0, 8, 0], sizes = [16, 16, 4], strides = [1, 1, 1]} : vector<16x32x4xf32> to vector<16x16x4xf32>
    %65 = arith.maximumf %63, %64 : vector<16x16x4xf32>
    %66 = vector.extract_strided_slice %60 {offsets = [0, 9, 0], sizes = [16, 16, 4], strides = [1, 1, 1]} : vector<16x32x4xf32> to vector<16x16x4xf32>
    %67 = arith.maximumf %65, %66 : vector<16x16x4xf32>
    %68 = vector.extract_strided_slice %60 {offsets = [0, 10, 0], sizes = [16, 16, 4], strides = [1, 1, 1]} : vector<16x32x4xf32> to vector<16x16x4xf32>
    %69 = arith.maximumf %67, %68 : vector<16x16x4xf32>
    %70 = vector.shape_cast %69 : vector<16x16x4xf32> to vector<256x4xf32>
    %c2_37 = arith.constant 2 : index
    %c0_38 = arith.constant 0 : index
    %c0_39 = arith.constant 0 : index
    %71 = vector.load %arg4[%c2_37, %c0_38, %c0_39] : memref<4x4x8xf32, #tpu.memory_space<vmem>>, vector<1x4x8xf32>
    %72 = vector.shape_cast %71 : vector<1x4x8xf32> to vector<4x8xf32>
    %cst_40 = arith.constant dense<0.000000e+00> : vector<256x8xf32>
    %73 = tpu.matmul %70, %72, %cst_40 {dimension_numbers = #tpu.dot_dimension_numbers<[1], [0], [0], [1], [0, 0, 1, 1], [], []>} : vector<256x4xf32>, vector<4x8xf32>, vector<256x8xf32> -> vector<256x8xf32>
    %74 = arith.addf %49, %73 : vector<256x8xf32>
    %c2_41 = arith.constant 2 : index
    %c8_42 = arith.constant 8 : index
    %c0_43 = arith.constant 0 : index
    %75 = vector.load %arg7[%c2_41, %c8_42, %c0_43] : memref<20x32x4xf32, #tpu.memory_space<vmem>>, vector<16x16x4xf32>
    tpu.vector_store %arg7[%c2_41, %c8_42, %c0_43], %69 {strides = array<i32>} : memref<20x32x4xf32, #tpu.memory_space<vmem>>, vector<16x16x4xf32>,
    %c0_44 = arith.constant 0 : index
    %c0_45 = arith.constant 0 : index
    %c0_46 = arith.constant 0 : index
    %76 = vector.load %arg7[%c0_44, %c0_45, %c0_46] : memref<20x32x4xf32, #tpu.memory_space<vmem>>, vector<20x32x4xf32>
    %77 = vector.extract_strided_slice %76 {offsets = [0, 0, 0], sizes = [16, 32, 4], strides = [1, 1, 1]} : vector<20x32x4xf32> to vector<16x32x4xf32>
    %78 = vector.extract_strided_slice %76 {offsets = [1, 0, 0], sizes = [16, 32, 4], strides = [1, 1, 1]} : vector<20x32x4xf32> to vector<16x32x4xf32>
    %79 = arith.maximumf %77, %78 : vector<16x32x4xf32>
    %80 = vector.extract_strided_slice %76 {offsets = [2, 0, 0], sizes = [16, 32, 4], strides = [1, 1, 1]} : vector<20x32x4xf32> to vector<16x32x4xf32>
    %81 = arith.maximumf %79, %80 : vector<16x32x4xf32>
    %82 = vector.extract_strided_slice %76 {offsets = [3, 0, 0], sizes = [16, 32, 4], strides = [1, 1, 1]} : vector<20x32x4xf32> to vector<16x32x4xf32>
    %83 = arith.maximumf %81, %82 : vector<16x32x4xf32>
    %84 = vector.extract_strided_slice %76 {offsets = [4, 0, 0], sizes = [16, 32, 4], strides = [1, 1, 1]} : vector<20x32x4xf32> to vector<16x32x4xf32>
    %85 = arith.maximumf %83, %84 : vector<16x32x4xf32>
    %86 = vector.extract_strided_slice %85 {offsets = [0, 6, 0], sizes = [16, 16, 4], strides = [1, 1, 1]} : vector<16x32x4xf32> to vector<16x16x4xf32>
    %87 = vector.extract_strided_slice %85 {offsets = [0, 7, 0], sizes = [16, 16, 4], strides = [1, 1, 1]} : vector<16x32x4xf32> to vector<16x16x4xf32>
    %88 = arith.maximumf %86, %87 : vector<16x16x4xf32>
    %89 = vector.extract_strided_slice %85 {offsets = [0, 8, 0], sizes = [16, 16, 4], strides = [1, 1, 1]} : vector<16x32x4xf32> to vector<16x16x4xf32>
    %90 = arith.maximumf %88, %89 : vector<16x16x4xf32>
    %91 = vector.extract_strided_slice %85 {offsets = [0, 9, 0], sizes = [16, 16, 4], strides = [1, 1, 1]} : vector<16x32x4xf32> to vector<16x16x4xf32>
    %92 = arith.maximumf %90, %91 : vector<16x16x4xf32>
    %93 = vector.extract_strided_slice %85 {offsets = [0, 10, 0], sizes = [16, 16, 4], strides = [1, 1, 1]} : vector<16x32x4xf32> to vector<16x16x4xf32>
    %94 = arith.maximumf %92, %93 : vector<16x16x4xf32>
    %95 = vector.shape_cast %94 : vector<16x16x4xf32> to vector<256x4xf32>
    %c3 = arith.constant 3 : index
    %c0_47 = arith.constant 0 : index
    %c0_48 = arith.constant 0 : index
    %96 = vector.load %arg4[%c3, %c0_47, %c0_48] : memref<4x4x8xf32, #tpu.memory_space<vmem>>, vector<1x4x8xf32>
    %97 = vector.shape_cast %96 : vector<1x4x8xf32> to vector<4x8xf32>
    %cst_49 = arith.constant dense<0.000000e+00> : vector<256x8xf32>
    %98 = tpu.matmul %95, %97, %cst_49 {dimension_numbers = #tpu.dot_dimension_numbers<[1], [0], [0], [1], [0, 0, 1, 1], [], []>} : vector<256x4xf32>, vector<4x8xf32>, vector<256x8xf32> -> vector<256x8xf32>
    %99 = arith.addf %74, %98 : vector<256x8xf32>
    %c0_50 = arith.constant 0 : index
    %c0_51 = arith.constant 0 : index
    %100 = vector.load %arg5[%c0_50, %c0_51] : memref<1x8xf32, #tpu.memory_space<vmem>>, vector<1x8xf32>
    %101 = vector.broadcast %100 : vector<1x8xf32> to vector<256x8xf32>
    %102 = arith.addf %99, %101 : vector<256x8xf32>
    %103 = arith.negf %102 : vector<256x8xf32>
    %104 = math.exp %103 : vector<256x8xf32>
    %cst_52 = arith.constant 1.000000e+00 : f32
    %105 = vector.broadcast %cst_52 : f32 to vector<256x8xf32>
    %106 = arith.addf %105, %104 : vector<256x8xf32>
    %107 = arith.divf %105, %106 : vector<256x8xf32>
    %108 = arith.mulf %102, %107 : vector<256x8xf32>
    %c0_53 = arith.constant 0 : index
    %c0_54 = arith.constant 0 : index
    %c0_55 = arith.constant 0 : index
    %109 = vector.load %arg6[%c0_53, %c0_54, %c0_55] : memref<1x256x8xf32, #tpu.memory_space<vmem>>, vector<1x256x8xf32>
    %110 = vector.shape_cast %109 : vector<1x256x8xf32> to vector<256x8xf32>
    %111 = vector.shape_cast %108 : vector<256x8xf32> to vector<1x256x8xf32>
    tpu.vector_store %arg6[%c0_53, %c0_54, %c0_55], %111 {strides = array<i32>} : memref<1x256x8xf32, #tpu.memory_space<vmem>>, vector<1x256x8xf32>,
    return
  }
  func.func @transform_0(%arg0: i32) -> (i32, i32, i32) {
    %c0_i32 = arith.constant 0 : i32
    %c0_i32_0 = arith.constant 0 : i32
    %c0_i32_1 = arith.constant 0 : i32
    return %arg0, %c0_i32, %c0_i32_0 : i32, i32, i32
  }
  func.func @transform_1(%arg0: i32) -> (i32, i32) {
    %c0_i32 = arith.constant 0 : i32
    %c0_i32_0 = arith.constant 0 : i32
    %c0_i32_1 = arith.constant 0 : i32
    return %c0_i32, %c0_i32_0 : i32, i32
  }
  func.func @transform_2(%arg0: i32) -> (i32, i32) {
    %c0_i32 = arith.constant 0 : i32
    %c0_i32_0 = arith.constant 0 : i32
    %c0_i32_1 = arith.constant 0 : i32
    return %c0_i32, %c0_i32_0 : i32, i32
  }
  func.func @transform_3(%arg0: i32) -> (i32, i32, i32) {
    %c0_i32 = arith.constant 0 : i32
    %c0_i32_0 = arith.constant 0 : i32
    %c0_i32_1 = arith.constant 0 : i32
    %c0_i32_2 = arith.constant 0 : i32
    return %c0_i32, %c0_i32_0, %c0_i32_1 : i32, i32, i32
  }
  func.func @transform_4(%arg0: i32) -> (i32, i32) {
    %c0_i32 = arith.constant 0 : i32
    %c0_i32_0 = arith.constant 0 : i32
    %c0_i32_1 = arith.constant 0 : i32
    return %c0_i32, %c0_i32_0 : i32, i32
  }
  func.func @transform_5(%arg0: i32) -> (i32, i32, i32) {
    %c0_i32 = arith.constant 0 : i32
    %c0_i32_0 = arith.constant 0 : i32
    %c0_i32_1 = arith.constant 0 : i32
    return %arg0, %c0_i32, %c0_i32_0 : i32, i32, i32
  }
}

</mosaic_0001>

<llo_original>
// kernel: tpu_custom_call.1
$region0: #{tpu_custom_call.1}
  #allocation0 [shape = 'u32[]', space=smem, size = 0x4, offset = 0x4, fixed_abs, tag = 'smem constant byte address 0x4 - core index']
  #allocation1 [shape = 'u32[144,128]{1,0:T(1,128)}', space=vmem, size = 0x12000, scoped, tag = 'internal scratch']
  #allocation2 [shape = 'f32[20,32,4]{2,1,0:T(8,128)}', space=vmem, size = 0x50000, scoped, tag = 'scratch operand']
  %s0 = inlined_call_operand.vmem [shape: f32[2,256,8], index: 0, kind: input, shape index: {}]
  %s1 = inlined_call_operand.vmem [shape: f32[8,4], index: 1, kind: input, shape index: {}]
  %s2 = inlined_call_operand.vmem [shape: f32[1,4], index: 2, kind: input, shape index: {}]
  %s3 = inlined_call_operand.vmem [shape: f32[4,4,8], index: 3, kind: input, shape index: {}]
  %s4 = inlined_call_operand.vmem [shape: f32[1,8], index: 4, kind: input, shape index: {}]
  %s5 = inlined_call_operand.vmem [shape: f32[2,256,8], index: 5, kind: output, shape index: {}]
  %s6 = sld [smem:[#allocation0]]
  $region53: #{tpu_custom_call.1} parent=0
    _
  %s8 = ssub.s32 1, %s6
  %s9 = scalar_select 0, %s8, %s6
  loop: start=0, step=1, limit=4
  $region2: #{tpu_custom_call.1} parent=0 // loop_pre_header
    _
  $region3: #{tpu_custom_call.1} parent=0 // loop_header
    %s11 = sphi 0, %s15
    %p12 = scmp.ge.s32.totalorder %s11, 4
    %s21 = sphi 0, %s23
    %s24 = sphi 0, %s21
    %s25 = sphi 0, %s24
    %s41 = sphi 0, %s25
    %s45 = sphi 0, %s45
    %s47 = sphi 0, %s45
    %s48 = sphi 0, %s47
    %s62 = sphi 0, %s48
    %s66 = sphi 0, %s66
    %s68 = sphi 0, %s66
    %s69 = sphi 0, %s68
    %s83 = sphi 0, %s69
    %s87 = sphi 0, %s87
    %s89 = sphi 0, %s87
    %s90 = sphi 0, %s89
    %s104 = sphi 0, %s90
    %s108 = sphi 0, %s108
    %s110 = sphi 0, %s108
    %s111 = sphi 0, %s110
    %s125 = sphi 0, %s111
    %s131 = sphi 0, %s133
    %s134 = sphi 0, %s131
    %s135 = sphi 0, %s134
    %s151 = sphi 0, %s135
  $region4: #{tpu_custom_call.1} parent=0 // loop_header_branch
    %14 = sbr.rel (%p12) target = $region8
  $region5: #{tpu_custom_call.1} parent=0 // loop_body
    %s16 = ssub.s32 %s11, 1
    %s17 = ssub.s32 %s11, 2
    %s18 = sadd.s32 %s11, 1
    %s19 = ssub.s32 %s11, %s18
    %p20 = scmp.eq.s32.totalorder %s19, 0
    %s22 = sadd.s32 %s21, 1
    %s23 = scalar_select %p20, %s21, %s22
    %p26 = pneg %p20
    %p27 = scmp.eq.s32.totalorder %s11, 1
    %p28 = por %p26, %p27
    %p29 = scmp.ne.s32.totalorder %s21, %s24
    %p30 = scmp.eq.s32.totalorder %s11, 0
    %p31 = por %p29, %p30
    %p32 = scmp.ne.s32.totalorder %s21, %s24
    %p33 = scmp.eq.s32.totalorder %s16, 1
    %p34 = por %p32, %p33
    %p35 = scmp.ne.s32.totalorder %s24, %s25
    %p36 = scmp.eq.s32.totalorder %s16, 0
    %p37 = por %p35, %p36
    %p38 = scmp.ne.s32.totalorder %s24, %s25
    %p39 = scmp.eq.s32.totalorder %s17, 1
    %p40 = por %p38, %p39
    %p42 = scmp.ne.s32.totalorder %s25, %s41
    %p43 = scmp.eq.s32.totalorder %s17, 0
    %p44 = por %p42, %p43
    %s46 = sadd.s32 %s45, 1
    %p49 = scmp.eq.s32.totalorder %s11, 1
    %p50 = scmp.ne.s32.totalorder %s45, %s47
    %p51 = scmp.eq.s32.totalorder %s11, 0
    %p52 = por %p50, %p51
    %p53 = scmp.ne.s32.totalorder %s45, %s47
    %p54 = scmp.eq.s32.totalorder %s16, 1
    %p55 = por %p53, %p54
    %p56 = scmp.ne.s32.totalorder %s47, %s48
    %p57 = scmp.eq.s32.totalorder %s16, 0
    %p58 = por %p56, %p57
    %p59 = scmp.ne.s32.totalorder %s47, %s48
    %p60 = scmp.eq.s32.totalorder %s17, 1
    %p61 = por %p59, %p60
    %p63 = scmp.ne.s32.totalorder %s48, %s62
    %p64 = scmp.eq.s32.totalorder %s17, 0
    %p65 = por %p63, %p64
    %s67 = sadd.s32 %s66, 1
    %p70 = scmp.eq.s32.totalorder %s11, 1
    %p71 = scmp.ne.s32.totalorder %s66, %s68
    %p72 = scmp.eq.s32.totalorder %s11, 0
    %p73 = por %p71, %p72
    %p74 = scmp.ne.s32.totalorder %s66, %s68
    %p75 = scmp.eq.s32.totalorder %s16, 1
    %p76 = por %p74, %p75
    %p77 = scmp.ne.s32.totalorder %s68, %s69
    %p78 = scmp.eq.s32.totalorder %s16, 0
    %p79 = por %p77, %p78
    %p80 = scmp.ne.s32.totalorder %s68, %s69
    %p81 = scmp.eq.s32.totalorder %s17, 1
    %p82 = por %p80, %p81
    %p84 = scmp.ne.s32.totalorder %s69, %s83
    %p85 = scmp.eq.s32.totalorder %s17, 0
    %p86 = por %p84, %p85
    %s88 = sadd.s32 %s87, 1
    %p91 = scmp.eq.s32.totalorder %s11, 1
    %p92 = scmp.ne.s32.totalorder %s87, %s89
    %p93 = scmp.eq.s32.totalorder %s11, 0
    %p94 = por %p92, %p93
    %p95 = scmp.ne.s32.totalorder %s87, %s89
    %p96 = scmp.eq.s32.totalorder %s16, 1
    %p97 = por %p95, %p96
    %p98 = scmp.ne.s32.totalorder %s89, %s90
    %p99 = scmp.eq.s32.totalorder %s16, 0
    %p100 = por %p98, %p99
    %p101 = scmp.ne.s32.totalorder %s89, %s90
    %p102 = scmp.eq.s32.totalorder %s17, 1
    %p103 = por %p101, %p102
    %p105 = scmp.ne.s32.totalorder %s90, %s104
    %p106 = scmp.eq.s32.totalorder %s17, 0
    %p107 = por %p105, %p106
    %s109 = sadd.s32 %s108, 1
    %p112 = scmp.eq.s32.totalorder %s11, 1
    %p113 = scmp.ne.s32.totalorder %s108, %s110
    %p114 = scmp.eq.s32.totalorder %s11, 0
    %p115 = por %p113, %p114
    %p116 = scmp.ne.s32.totalorder %s108, %s110
    %p117 = scmp.eq.s32.totalorder %s16, 1
    %p118 = por %p116, %p117
    %p119 = scmp.ne.s32.totalorder %s110, %s111
    %p120 = scmp.eq.s32.totalorder %s16, 0
    %p121 = por %p119, %p120
    %p122 = scmp.ne.s32.totalorder %s110, %s111
    %p123 = scmp.eq.s32.totalorder %s17, 1
    %p124 = por %p122, %p123
    %p126 = scmp.ne.s32.totalorder %s111, %s125
    %p127 = scmp.eq.s32.totalorder %s17, 0
    %p128 = por %p126, %p127
    %s129 = ssub.s32 %s11, %s18
    %p130 = scmp.eq.s32.totalorder %s129, 0
    %s132 = sadd.s32 %s131, 1
    %s133 = scalar_select %p130, %s131, %s132
    %p136 = pneg %p130
    %p137 = scmp.eq.s32.totalorder %s11, 1
    %p138 = por %p136, %p137
    %p139 = scmp.ne.s32.totalorder %s131, %s134
    %p140 = scmp.eq.s32.totalorder %s11, 0
    %p141 = por %p139, %p140
    %p142 = scmp.ne.s32.totalorder %s131, %s134
    %p143 = scmp.eq.s32.totalorder %s16, 1
    %p144 = por %p142, %p143
    %p145 = scmp.ne.s32.totalorder %s134, %s135
    %p146 = scmp.eq.s32.totalorder %s16, 0
    %p147 = por %p145, %p146
    %p148 = scmp.ne.s32.totalorder %s134, %s135
    %p149 = scmp.eq.s32.totalorder %s17, 1
    %p150 = por %p148, %p149
    %p152 = scmp.ne.s32.totalorder %s135, %s151
    %p153 = scmp.eq.s32.totalorder %s17, 0
    %p154 = por %p152, %p153
    %p155 = scmp.le.s32.totalorder 1, %s11
    %p156 = scmp.lt.s32.totalorder %s11, 3
    %p157 = pnand %p155, %p156
    %p158 = pneg %p157
    // Predicated region
    $region9: #{tpu_custom_call.1} parent=5 // pred_check
      _
    $region10: #{tpu_custom_call.1} parent=5 // pred_check_branch
      %160 = sbr.rel (%p157) target = $region12
    $region11: #{tpu_custom_call.1} parent=5 // pred_region
      %s161 = ssub.s32 %s11, 1
      // Predicated region
      $region13: #{tpu_custom_call.1} parent=11 // pred_check
        %p162 = pneg %p58
      $region14: #{tpu_custom_call.1} parent=11 // pred_check_branch
        %164 = sbr.rel (%p162) target = $region16
      $region15: #{tpu_custom_call.1} parent=11 // pred_region
        _
      $region16: #{tpu_custom_call.1} parent=11 // pred_fallthru
        _
      // Predicated region
      $region17: #{tpu_custom_call.1} parent=11 // pred_check
        %p165 = pneg %p79
      $region18: #{tpu_custom_call.1} parent=11 // pred_check_branch
        %167 = sbr.rel (%p165) target = $region20
      $region19: #{tpu_custom_call.1} parent=11 // pred_region
        _
      $region20: #{tpu_custom_call.1} parent=11 // pred_fallthru
        _
      // Predicated region
      $region21: #{tpu_custom_call.1} parent=11 // pred_check
        %p168 = pneg %p100
      $region22: #{tpu_custom_call.1} parent=11 // pred_check_branch
        %170 = sbr.rel (%p168) target = $region24
      $region23: #{tpu_custom_call.1} parent=11 // pred_region
        _
      $region24: #{tpu_custom_call.1} parent=11 // pred_fallthru
        _
      // Predicated region
      $region25: #{tpu_custom_call.1} parent=11 // pred_check
        %p171 = pneg %p121
      $region26: #{tpu_custom_call.1} parent=11 // pred_check_branch
        %173 = sbr.rel (%p171) target = $region28
      $region27: #{tpu_custom_call.1} parent=11 // pred_region
        _
      $region28: #{tpu_custom_call.1} parent=11 // pred_fallthru
        _
    $region12: #{tpu_custom_call.1} parent=5 // pred_fallthru
      _
    %p174 = scmp.lt.s32.totalorder %s11, 2
    // Predicated region
    $region29: #{tpu_custom_call.1} parent=5 // pred_check
      %p175 = pneg %p174
    $region30: #{tpu_custom_call.1} parent=5 // pred_check_branch
      %177 = sbr.rel (%p175) target = $region32
    $region31: #{tpu_custom_call.1} parent=5 // pred_region
      // Predicated region
      $region33: #{tpu_custom_call.1} parent=31 // pred_check
        %p178 = pneg %p31
      $region34: #{tpu_custom_call.1} parent=31 // pred_check_branch
        %180 = sbr.rel (%p178) target = $region36
      $region35: #{tpu_custom_call.1} parent=31 // pred_region
        %p181 = scmp.lt.s32.totalorder %s11, 1
        %s182 = scalar_select %p181, %s11, 1
        %s183 = smul.addr %s182, 32
        %s184 = smul.addr %s183, 8
        %s185 = scalar_lea.vmem %s0, %s184
      $region36: #{tpu_custom_call.1} parent=31 // pred_fallthru
        _
    $region32: #{tpu_custom_call.1} parent=5 // pred_fallthru
      _
    %p186 = scmp.le.s32.totalorder 1, %s11
    %p187 = scmp.lt.s32.totalorder %s11, 3
    %p188 = pnand %p186, %p187
    %p189 = pneg %p188
    // Predicated region
    $region37: #{tpu_custom_call.1} parent=5 // pred_check
      _
    $region38: #{tpu_custom_call.1} parent=5 // pred_check_branch
      %191 = sbr.rel (%p188) target = $region40
    $region39: #{tpu_custom_call.1} parent=5 // pred_region
      %s192 = ssub.s32 %s11, 1
      %p193 = scmp.lt.s32.totalorder %s16, 1
      %s194 = scalar_select %p193, %s16, 1
      %s195 = smul.addr %s194, 32
      %s196 = smul.addr %s195, 8
      %s197 = scalar_lea.vmem %s0, %s196
      %p198 = pneg %p37
      %p199 = pneg %p34
      %p200 = pneg %p58
      %p201 = pneg %p55
      %p202 = pneg %p79
      %p203 = pneg %p76
      %p204 = pneg %p100
      %p205 = pneg %p97
      %p206 = pneg %p121
      %p207 = pneg %p118
      %p208 = pneg %p147
      %p209 = pneg %p144
      %p210 = scmp.lt.s32.totalorder %s16, 1
      %s211 = scalar_select %p210, %s16, 1
      %s212 = smul.addr %s211, 32
      %s213 = smul.addr %s212, 8
      %s214 = scalar_lea.vmem %s5, %s213
      %p215 = scmp.lt.s32.totalorder %s16, 1
      %s216 = scalar_select %p215, %s16, 1
      %s217 = smul.addr %s216, 32
      %s218 = smul.addr %s217, 8
      %s219 = scalar_lea.vmem %s0, %s218
      %p220 = scmp.lt.s32.totalorder %s16, 1
      %s221 = scalar_select %p220, %s16, 1
      %s222 = smul.addr %s221, 32
      %s223 = smul.addr %s222, 8
      %s224 = scalar_lea.vmem %s5, %s223
      %v225 = vld [vmem:[%s219] sm:$0xff]
      %v226 = vld [vmem:[%s219 + $0x8] sm:$0xff]
      %v227 = vld [vmem:[%s219 + $0x10] sm:$0xff]
      %v228 = vld [vmem:[%s219 + $0x18] sm:$0xff]
      %v229 = vld [vmem:[%s219 + $0x20] sm:$0xff]
      %v230 = vld [vmem:[%s219 + $0x28] sm:$0xff]
      %v231 = vld [vmem:[%s219 + $0x30] sm:$0xff]
      %v232 = vld [vmem:[%s219 + $0x38] sm:$0xff]
      %v233 = vld [vmem:[%s219 + $0x40] sm:$0xff]
      %v234 = vld [vmem:[%s219 + $0x48] sm:$0xff]
      %v235 = vld [vmem:[%s219 + $0x50] sm:$0xff]
      %v236 = vld [vmem:[%s219 + $0x58] sm:$0xff]
      %v237 = vld [vmem:[%s219 + $0x60] sm:$0xff]
      %v238 = vld [vmem:[%s219 + $0x68] sm:$0xff]
      %v239 = vld [vmem:[%s219 + $0x70] sm:$0xff]
      %v240 = vld [vmem:[%s219 + $0x78] sm:$0xff]
      %v241 = vld [vmem:[%s219 + $0x80] sm:$0xff]
      %v242 = vld [vmem:[%s219 + $0x88] sm:$0xff]
      %v243 = vld [vmem:[%s219 + $0x90] sm:$0xff]
      %v244 = vld [vmem:[%s219 + $0x98] sm:$0xff]
      %v245 = vld [vmem:[%s219 + $0xa0] sm:$0xff]
      %v246 = vld [vmem:[%s219 + $0xa8] sm:$0xff]
      %v247 = vld [vmem:[%s219 + $0xb0] sm:$0xff]
      %v248 = vld [vmem:[%s219 + $0xb8] sm:$0xff]
      %v249 = vld [vmem:[%s219 + $0xc0] sm:$0xff]
      %v250 = vld [vmem:[%s219 + $0xc8] sm:$0xff]
      %v251 = vld [vmem:[%s219 + $0xd0] sm:$0xff]
      %v252 = vld [vmem:[%s219 + $0xd8] sm:$0xff]
      %v253 = vld [vmem:[%s219 + $0xe0] sm:$0xff]
      %v254 = vld [vmem:[%s219 + $0xe8] sm:$0xff]
      %v255 = vld [vmem:[%s219 + $0xf0] sm:$0xff]
      %v256 = vld [vmem:[%s219 + $0xf8] sm:$0xff]
      %v257 = vld [vmem:[%s1] sm:$0xff]
      %v258 = vld [vmem:[%s2] sm:$0x1]
      %v260 = vlaneseq
      %v261 = vshrl.u32 %v260, 7
      %v262 = vsub.s32 0, %v261
      %v263 = vrot.slane %v258, %v262
      %vm265 = vcmask 64512
      %v267 = vsel %vm265, %v225, 0
      %v270 = vsel %vm265, %v226, 0
      %v273 = vsel %vm265, %v227, 0
      %v276 = vsel %vm265, %v228, 0
      %v279 = vsel %vm265, %v229, 0
      %v282 = vsel %vm265, %v230, 0
      %v285 = vsel %vm265, %v231, 0
      %v288 = vsel %vm265, %v232, 0
      %v291 = vsel %vm265, %v233, 0
      %v294 = vsel %vm265, %v234, 0
      %v297 = vsel %vm265, %v235, 0
      %v300 = vsel %vm265, %v236, 0
      %v303 = vsel %vm265, %v237, 0
      %v306 = vsel %vm265, %v238, 0
      %v309 = vsel %vm265, %v239, 0
      %v312 = vsel %vm265, %v240, 0
      %v315 = vsel %vm265, %v241, 0
      %v318 = vsel %vm265, %v242, 0
      %v321 = vsel %vm265, %v243, 0
      %v324 = vsel %vm265, %v244, 0
      %v327 = vsel %vm265, %v245, 0
      %v330 = vsel %vm265, %v246, 0
      %v333 = vsel %vm265, %v247, 0
      %v336 = vsel %vm265, %v248, 0
      %v339 = vsel %vm265, %v249, 0
      %v342 = vsel %vm265, %v250, 0
      %v345 = vsel %vm265, %v251, 0
      %v348 = vsel %vm265, %v252, 0
      %v351 = vsel %vm265, %v253, 0
      %v354 = vsel %vm265, %v254, 0
      %v357 = vsel %vm265, %v255, 0
      %v360 = vsel %vm265, %v256, 0
      %362 = vmatprep.subr.mxu0 0.0
      %363 = vmatpush1.msra.mxu0 0.0
      %364 = vmatprep.subr.mxu0 0.0
      %365 = vmatpush1.msra.mxu0 0.0
      %366 = vmatprep.subr.mxu0 0.0
      %367 = vmatpush1.msra.mxu0 0.0
      %368 = vmatprep.subr.mxu0 0.0
      %369 = vmatpush1.msra.mxu0 0.0
      %370 = vmatprep.subr.mxu0 0.0
      %371 = vmatpush1.msra.mxu0 0.0
      %372 = vmatprep.subr.mxu0 0.0
      %373 = vmatpush1.msra.mxu0 0.0
      %374 = vmatprep.subr.mxu0 0.0
      %375 = vmatpush1.msra.mxu0 0.0
      %376 = vmatprep.subr.mxu0 0.0
      %377 = vmatpush1.msra.mxu0 0.0
      %378 = vmatprep.subr.mxu0 0.0
      %379 = vmatpush1.msra.mxu0 0.0
      %380 = vmatprep.subr.mxu0 0.0
      %381 = vmatpush1.msra.mxu0 0.0
      %382 = vmatprep.subr.mxu0 0.0
      %383 = vmatpush1.msra.mxu0 0.0
      %384 = vmatprep.subr.mxu0 0.0
      %385 = vmatpush1.msra.mxu0 0.0
      %386 = vmatprep.subr.mxu0 0.0
      %387 = vmatpush1.msra.mxu0 0.0
      %388 = vmatprep.subr.mxu0 0.0
      %389 = vmatpush1.msra.mxu0 0.0
      %390 = vmatprep.subr.mxu0 0.0
      %391 = vmatpush1.msra.mxu0 0.0
      %392 = vmatprep.subr.mxu0 0.0
      %393 = vmatpush1.msra.mxu0 %v257
      %394 = vmatprep.subr.mxu0 0.0
      %395 = vmatpush2.msra.mxu0 0.0
      %396 = vmatprep.subr.mxu0 0.0
      %397 = vmatpush2.msra.mxu0 0.0
      %398 = vmatprep.subr.mxu0 0.0
      %399 = vmatpush2.msra.mxu0 0.0
      %400 = vmatprep.subr.mxu0 0.0
      %401 = vmatpush2.msra.mxu0 0.0
      %402 = vmatprep.subr.mxu0 0.0
      %403 = vmatpush2.msra.mxu0 0.0
      %404 = vmatprep.subr.mxu0 0.0
      %405 = vmatpush2.msra.mxu0 0.0
      %406 = vmatprep.subr.mxu0 0.0
      %407 = vmatpush2.msra.mxu0 0.0
      %408 = vmatprep.subr.mxu0 0.0
      %409 = vmatpush2.msra.mxu0 0.0
      %410 = vmatprep.subr.mxu0 0.0
      %411 = vmatpush2.msra.mxu0 0.0
      %412 = vmatprep.subr.mxu0 0.0
      %413 = vmatpush2.msra.mxu0 0.0
      %414 = vmatprep.subr.mxu0 0.0
      %415 = vmatpush2.msra.mxu0 0.0
      %416 = vmatprep.subr.mxu0 0.0
      %417 = vmatpush2.msra.mxu0 0.0
      %418 = vmatprep.subr.mxu0 0.0
      %419 = vmatpush2.msra.mxu0 0.0
      %420 = vmatprep.subr.mxu0 0.0
      %421 = vmatpush2.msra.mxu0 0.0
      %422 = vmatprep.subr.mxu0 0.0
      %423 = vmatpush2.msra.mxu0 0.0
      %424 = vmatprep.subr.mxu0 0.0
      %425 = vmatpush2.msra.mxu0 0.0
      %426 = vmatprep.mubr.f32.mxu0 0.0
      %427 = vmatmul.mubr.f32.gmra.mxu0 %v267
      %v428 = vpop.f32.mrf.mxu0
      %v429 = vadd.f32 %v263, %v428
      %v430 = vpop.f32.mrf.mxu0
      %431 = vmatprep.mubr.f32.mxu0 0.0
      %432 = vmatmul.mubr.f32.gmra.mxu0 %v270
      %v433 = vpop.f32.mrf.mxu0
      %v434 = vadd.f32 %v263, %v433
      %v435 = vpop.f32.mrf.mxu0
      %436 = vmatprep.mubr.f32.mxu0 0.0
      %437 = vmatmul.mubr.f32.gmra.mxu0 %v273
      %v438 = vpop.f32.mrf.mxu0
      %v439 = vadd.f32 %v263, %v438
      %v440 = vpop.f32.mrf.mxu0
      %441 = vmatprep.mubr.f32.mxu0 0.0
      %442 = vmatmul.mubr.f32.gmra.mxu0 %v276
      %v443 = vpop.f32.mrf.mxu0
      %v444 = vadd.f32 %v263, %v443
      %v445 = vpop.f32.mrf.mxu0
      %446 = vmatprep.mubr.f32.mxu0 0.0
      %447 = vmatmul.mubr.f32.gmra.mxu0 %v279
      %v448 = vpop.f32.mrf.mxu0
      %v449 = vadd.f32 %v263, %v448
      %v450 = vpop.f32.mrf.mxu0
      %451 = vmatprep.mubr.f32.mxu0 0.0
      %452 = vmatmul.mubr.f32.gmra.mxu0 %v282
      %v453 = vpop.f32.mrf.mxu0
      %v454 = vadd.f32 %v263, %v453
      %v455 = vpop.f32.mrf.mxu0
      %456 = vmatprep.mubr.f32.mxu0 0.0
      %457 = vmatmul.mubr.f32.gmra.mxu0 %v285
      %v458 = vpop.f32.mrf.mxu0
      %v459 = vadd.f32 %v263, %v458
      %v460 = vpop.f32.mrf.mxu0
      %461 = vmatprep.mubr.f32.mxu0 0.0
      %462 = vmatmul.mubr.f32.gmra.mxu0 %v288
      %v463 = vpop.f32.mrf.mxu0
      %v464 = vadd.f32 %v263, %v463
      %v465 = vpop.f32.mrf.mxu0
      %466 = vmatprep.mubr.f32.mxu0 0.0
      %467 = vmatmul.mubr.f32.gmra.mxu0 %v291
      %v468 = vpop.f32.mrf.mxu0
      %v469 = vadd.f32 %v263, %v468
      %v470 = vpop.f32.mrf.mxu0
      %471 = vmatprep.mubr.f32.mxu0 0.0
      %472 = vmatmul.mubr.f32.gmra.mxu0 %v294
      %v473 = vpop.f32.mrf.mxu0
      %v474 = vadd.f32 %v263, %v473
      %v475 = vpop.f32.mrf.mxu0
      %476 = vmatprep.mubr.f32.mxu0 0.0
      %477 = vmatmul.mubr.f32.gmra.mxu0 %v297
      %v478 = vpop.f32.mrf.mxu0
      %v479 = vadd.f32 %v263, %v478
      %v480 = vpop.f32.mrf.mxu0
      %481 = vmatprep.mubr.f32.mxu0 0.0
      %482 = vmatmul.mubr.f32.gmra.mxu0 %v300
      %v483 = vpop.f32.mrf.mxu0
      %v484 = vadd.f32 %v263, %v483
      %v485 = vpop.f32.mrf.mxu0
      %486 = vmatprep.mubr.f32.mxu0 0.0
      %487 = vmatmul.mubr.f32.gmra.mxu0 %v303
      %v488 = vpop.f32.mrf.mxu0
      %v489 = vadd.f32 %v263, %v488
      %v490 = vpop.f32.mrf.mxu0
      %491 = vmatprep.mubr.f32.mxu0 0.0
      %492 = vmatmul.mubr.f32.gmra.mxu0 %v306
      %v493 = vpop.f32.mrf.mxu0
      %v494 = vadd.f32 %v263, %v493
      %v495 = vpop.f32.mrf.mxu0
      %496 = vmatprep.mubr.f32.mxu0 0.0
      %497 = vmatmul.mubr.f32.gmra.mxu0 %v309
      %v498 = vpop.f32.mrf.mxu0
      %v499 = vadd.f32 %v263, %v498
      %v500 = vpop.f32.mrf.mxu0
      %501 = vmatprep.mubr.f32.mxu0 0.0
      %502 = vmatmul.mubr.f32.gmra.mxu0 %v312
      %v503 = vpop.f32.mrf.mxu0
      %v504 = vadd.f32 %v263, %v503
      %v505 = vpop.f32.mrf.mxu0
      %506 = vmatprep.mubr.f32.mxu0 0.0
      %507 = vmatmul.mubr.f32.gmra.mxu0 %v315
      %v508 = vpop.f32.mrf.mxu0
      %v509 = vadd.f32 %v263, %v508
      %v510 = vpop.f32.mrf.mxu0
      %511 = vmatprep.mubr.f32.mxu0 0.0
      %512 = vmatmul.mubr.f32.gmra.mxu0 %v318
      %v513 = vpop.f32.mrf.mxu0
      %v514 = vadd.f32 %v263, %v513
      %v515 = vpop.f32.mrf.mxu0
      %516 = vmatprep.mubr.f32.mxu0 0.0
      %517 = vmatmul.mubr.f32.gmra.mxu0 %v321
      %v518 = vpop.f32.mrf.mxu0
      %v519 = vadd.f32 %v263, %v518
      %v520 = vpop.f32.mrf.mxu0
      %521 = vmatprep.mubr.f32.mxu0 0.0
      %522 = vmatmul.mubr.f32.gmra.mxu0 %v324
      %v523 = vpop.f32.mrf.mxu0
      %v524 = vadd.f32 %v263, %v523
      %v525 = vpop.f32.mrf.mxu0
      %526 = vmatprep.mubr.f32.mxu0 0.0
      %527 = vmatmul.mubr.f32.gmra.mxu0 %v327
      %v528 = vpop.f32.mrf.mxu0
      %v529 = vadd.f32 %v263, %v528
      %v530 = vpop.f32.mrf.mxu0
      %531 = vmatprep.mubr.f32.mxu0 0.0
      %532 = vmatmul.mubr.f32.gmra.mxu0 %v330
      %v533 = vpop.f32.mrf.mxu0
      %v534 = vadd.f32 %v263, %v533
      %v535 = vpop.f32.mrf.mxu0
      %536 = vmatprep.mubr.f32.mxu0 0.0
      %537 = vmatmul.mubr.f32.gmra.mxu0 %v333
      %v538 = vpop.f32.mrf.mxu0
      %v539 = vadd.f32 %v263, %v538
      %v540 = vpop.f32.mrf.mxu0
      %541 = vmatprep.mubr.f32.mxu0 0.0
      %542 = vmatmul.mubr.f32.gmra.mxu0 %v336
      %v543 = vpop.f32.mrf.mxu0
      %v544 = vadd.f32 %v263, %v543
      %v545 = vpop.f32.mrf.mxu0
      %546 = vmatprep.mubr.f32.mxu0 0.0
      %547 = vmatmul.mubr.f32.gmra.mxu0 %v339
      %v548 = vpop.f32.mrf.mxu0
      %v549 = vadd.f32 %v263, %v548
      %v550 = vpop.f32.mrf.mxu0
      %551 = vmatprep.mubr.f32.mxu0 0.0
      %552 = vmatmul.mubr.f32.gmra.mxu0 %v342
      %v553 = vpop.f32.mrf.mxu0
      %v554 = vadd.f32 %v263, %v553
      %v555 = vpop.f32.mrf.mxu0
      %556 = vmatprep.mubr.f32.mxu0 0.0
      %557 = vmatmul.mubr.f32.gmra.mxu0 %v345
      %v558 = vpop.f32.mrf.mxu0
      %v559 = vadd.f32 %v263, %v558
      %v560 = vpop.f32.mrf.mxu0
      %561 = vmatprep.mubr.f32.mxu0 0.0
      %562 = vmatmul.mubr.f32.gmra.mxu0 %v348
      %v563 = vpop.f32.mrf.mxu0
      %v564 = vadd.f32 %v263, %v563
      %v565 = vpop.f32.mrf.mxu0
      %566 = vmatprep.mubr.f32.mxu0 0.0
      %567 = vmatmul.mubr.f32.gmra.mxu0 %v351
      %v568 = vpop.f32.mrf.mxu0
      %v569 = vadd.f32 %v263, %v568
      %v570 = vpop.f32.mrf.mxu0
      %571 = vmatprep.mubr.f32.mxu0 0.0
      %572 = vmatmul.mubr.f32.gmra.mxu0 %v354
      %v573 = vpop.f32.mrf.mxu0
      %v574 = vadd.f32 %v263, %v573
      %v575 = vpop.f32.mrf.mxu0
      %576 = vmatprep.mubr.f32.mxu0 0.0
      %577 = vmatmul.mubr.f32.gmra.mxu0 %v357
      %v578 = vpop.f32.mrf.mxu0
      %v579 = vadd.f32 %v263, %v578
      %v580 = vpop.f32.mrf.mxu0
      %581 = vmatprep.mubr.f32.mxu0 0.0
      %582 = vmatmul.mubr.f32.gmra.mxu0 %v360
      %v583 = vpop.f32.mrf.mxu0
      %v584 = vadd.f32 %v263, %v583
      %v585 = vpop.f32.mrf.mxu0
      %586 = vdwg.mxu0
      %v587 = vxor.u32 %v429, 2147483648
      %v588 = vxor.u32 %v434, 2147483648
      %v589 = vxor.u32 %v439, 2147483648
      %v590 = vxor.u32 %v444, 2147483648
      %v591 = vxor.u32 %v449, 2147483648
      %v592 = vxor.u32 %v454, 2147483648
      %v593 = vxor.u32 %v459, 2147483648
      %v594 = vxor.u32 %v464, 2147483648
      %v595 = vxor.u32 %v469, 2147483648
      %v596 = vxor.u32 %v474, 2147483648
      %v597 = vxor.u32 %v479, 2147483648
      %v598 = vxor.u32 %v484, 2147483648
      %v599 = vxor.u32 %v489, 2147483648
      %v600 = vxor.u32 %v494, 2147483648
      %v601 = vxor.u32 %v499, 2147483648
      %v602 = vxor.u32 %v504, 2147483648
      %v603 = vxor.u32 %v509, 2147483648
      %v604 = vxor.u32 %v514, 2147483648
      %v605 = vxor.u32 %v519, 2147483648
      %v606 = vxor.u32 %v524, 2147483648
      %v607 = vxor.u32 %v529, 2147483648
      %v608 = vxor.u32 %v534, 2147483648
      %v609 = vxor.u32 %v539, 2147483648
      %v610 = vxor.u32 %v544, 2147483648
      %v611 = vxor.u32 %v549, 2147483648
      %v612 = vxor.u32 %v554, 2147483648
      %v613 = vxor.u32 %v559, 2147483648
      %v614 = vxor.u32 %v564, 2147483648
      %v615 = vxor.u32 %v569, 2147483648
      %v616 = vxor.u32 %v574, 2147483648
      %v617 = vxor.u32 %v579, 2147483648
      %v618 = vxor.u32 %v584, 2147483648
      %v619 = vmul.f32 %v587, 1.442695
      %v620 = vpow.pop %v619
      %v621 = vmul.f32 %v588, 1.442695
      %v622 = vpow.pop %v621
      %v623 = vmul.f32 %v589, 1.442695
      %v624 = vpow.pop %v623
      %v625 = vmul.f32 %v590, 1.442695
      %v626 = vpow.pop %v625
      %v627 = vmul.f32 %v591, 1.442695
      %v628 = vpow.pop %v627
      %v629 = vmul.f32 %v592, 1.442695
      %v630 = vpow.pop %v629
      %v631 = vmul.f32 %v593, 1.442695
      %v632 = vpow.pop %v631
      %v633 = vmul.f32 %v594, 1.442695
      %v634 = vpow.pop %v633
      %v635 = vmul.f32 %v595, 1.442695
      %v636 = vpow.pop %v635
      %v637 = vmul.f32 %v596, 1.442695
      %v638 = vpow.pop %v637
      %v639 = vmul.f32 %v597, 1.442695
      %v640 = vpow.pop %v639
      %v641 = vmul.f32 %v598, 1.442695
      %v642 = vpow.pop %v641
      %v643 = vmul.f32 %v599, 1.442695
      %v644 = vpow.pop %v643
      %v645 = vmul.f32 %v600, 1.442695
      %v646 = vpow.pop %v645
      %v647 = vmul.f32 %v601, 1.442695
      %v648 = vpow.pop %v647
      %v649 = vmul.f32 %v602, 1.442695
      %v650 = vpow.pop %v649
      %v651 = vmul.f32 %v603, 1.442695
      %v652 = vpow.pop %v651
      %v653 = vmul.f32 %v604, 1.442695
      %v654 = vpow.pop %v653
      %v655 = vmul.f32 %v605, 1.442695
      %v656 = vpow.pop %v655
      %v657 = vmul.f32 %v606, 1.442695
      %v658 = vpow.pop %v657
      %v659 = vmul.f32 %v607, 1.442695
      %v660 = vpow.pop %v659
      %v661 = vmul.f32 %v608, 1.442695
      %v662 = vpow.pop %v661
      %v663 = vmul.f32 %v609, 1.442695
      %v664 = vpow.pop %v663
      %v665 = vmul.f32 %v610, 1.442695
      %v666 = vpow.pop %v665
      %v667 = vmul.f32 %v611, 1.442695
      %v668 = vpow.pop %v667
      %v669 = vmul.f32 %v612, 1.442695
      %v670 = vpow.pop %v669
      %v671 = vmul.f32 %v613, 1.442695
      %v672 = vpow.pop %v671
      %v673 = vmul.f32 %v614, 1.442695
      %v674 = vpow.pop %v673
      %v675 = vmul.f32 %v615, 1.442695
      %v676 = vpow.pop %v675
      %v677 = vmul.f32 %v616, 1.442695
      %v678 = vpow.pop %v677
      %v679 = vmul.f32 %v617, 1.442695
      %v680 = vpow.pop %v679
      %v681 = vmul.f32 %v618, 1.442695
      %v682 = vpow.pop %v681
      %v683 = vadd.f32 %v620, 1.0
      %v684 = vadd.f32 %v622, 1.0
      %v685 = vadd.f32 %v624, 1.0
      %v686 = vadd.f32 %v626, 1.0
      %v687 = vadd.f32 %v628, 1.0
      %v688 = vadd.f32 %v630, 1.0
      %v689 = vadd.f32 %v632, 1.0
      %v690 = vadd.f32 %v634, 1.0
      %v691 = vadd.f32 %v636, 1.0
      %v692 = vadd.f32 %v638, 1.0
      %v693 = vadd.f32 %v640, 1.0
      %v694 = vadd.f32 %v642, 1.0
      %v695 = vadd.f32 %v644, 1.0
      %v696 = vadd.f32 %v646, 1.0
      %v697 = vadd.f32 %v648, 1.0
      %v698 = vadd.f32 %v650, 1.0
      %v699 = vadd.f32 %v652, 1.0
      %v700 = vadd.f32 %v654, 1.0
      %v701 = vadd.f32 %v656, 1.0
      %v702 = vadd.f32 %v658, 1.0
      %v703 = vadd.f32 %v660, 1.0
      %v704 = vadd.f32 %v662, 1.0
      %v705 = vadd.f32 %v664, 1.0
      %v706 = vadd.f32 %v666, 1.0
      %v707 = vadd.f32 %v668, 1.0
      %v708 = vadd.f32 %v670, 1.0
      %v709 = vadd.f32 %v672, 1.0
      %v710 = vadd.f32 %v674, 1.0
      %v711 = vadd.f32 %v676, 1.0
      %v712 = vadd.f32 %v678, 1.0
      %v713 = vadd.f32 %v680, 1.0
      %v714 = vadd.f32 %v682, 1.0
      %v715 = vrcp.pop %v683
      %v716 = vmul.f32 1.0, %v715
      %v717 = vrcp.pop %v684
      %v718 = vmul.f32 1.0, %v717
      %v719 = vrcp.pop %v685
      %v720 = vmul.f32 1.0, %v719
      %v721 = vrcp.pop %v686
      %v722 = vmul.f32 1.0, %v721
      %v723 = vrcp.pop %v687
      %v724 = vmul.f32 1.0, %v723
      %v725 = vrcp.pop %v688
      %v726 = vmul.f32 1.0, %v725
      %v727 = vrcp.pop %v689
      %v728 = vmul.f32 1.0, %v727
      %v729 = vrcp.pop %v690
      %v730 = vmul.f32 1.0, %v729
      %v731 = vrcp.pop %v691
      %v732 = vmul.f32 1.0, %v731
      %v733 = vrcp.pop %v692
      %v734 = vmul.f32 1.0, %v733
      %v735 = vrcp.pop %v693
      %v736 = vmul.f32 1.0, %v735
      %v737 = vrcp.pop %v694
      %v738 = vmul.f32 1.0, %v737
      %v739 = vrcp.pop %v695
      %v740 = vmul.f32 1.0, %v739
      %v741 = vrcp.pop %v696
      %v742 = vmul.f32 1.0, %v741
      %v743 = vrcp.pop %v697
      %v744 = vmul.f32 1.0, %v743
      %v745 = vrcp.pop %v698
      %v746 = vmul.f32 1.0, %v745
      %v747 = vrcp.pop %v699
      %v748 = vmul.f32 1.0, %v747
      %v749 = vrcp.pop %v700
      %v750 = vmul.f32 1.0, %v749
      %v751 = vrcp.pop %v701
      %v752 = vmul.f32 1.0, %v751
      %v753 = vrcp.pop %v702
      %v754 = vmul.f32 1.0, %v753
      %v755 = vrcp.pop %v703
      %v756 = vmul.f32 1.0, %v755
      %v757 = vrcp.pop %v704
      %v758 = vmul.f32 1.0, %v757
      %v759 = vrcp.pop %v705
      %v760 = vmul.f32 1.0, %v759
      %v761 = vrcp.pop %v706
      %v762 = vmul.f32 1.0, %v761
      %v763 = vrcp.pop %v707
      %v764 = vmul.f32 1.0, %v763
      %v765 = vrcp.pop %v708
      %v766 = vmul.f32 1.0, %v765
      %v767 = vrcp.pop %v709
      %v768 = vmul.f32 1.0, %v767
      %v769 = vrcp.pop %v710
      %v770 = vmul.f32 1.0, %v769
      %v771 = vrcp.pop %v711
      %v772 = vmul.f32 1.0, %v771
      %v773 = vrcp.pop %v712
      %v774 = vmul.f32 1.0, %v773
      %v775 = vrcp.pop %v713
      %v776 = vmul.f32 1.0, %v775
      %v777 = vrcp.pop %v714
      %v778 = vmul.f32 1.0, %v777
      %v779 = vmul.f32 %v429, %v716
      %v780 = vmul.f32 %v434, %v718
      %v781 = vmul.f32 %v439, %v720
      %v782 = vmul.f32 %v444, %v722
      %v783 = vmul.f32 %v449, %v724
      %v784 = vmul.f32 %v454, %v726
      %v785 = vmul.f32 %v459, %v728
      %v786 = vmul.f32 %v464, %v730
      %v787 = vmul.f32 %v469, %v732
      %v788 = vmul.f32 %v474, %v734
      %v789 = vmul.f32 %v479, %v736
      %v790 = vmul.f32 %v484, %v738
      %v791 = vmul.f32 %v489, %v740
      %v792 = vmul.f32 %v494, %v742
      %v793 = vmul.f32 %v499, %v744
      %v794 = vmul.f32 %v504, %v746
      %v795 = vmul.f32 %v509, %v748
      %v796 = vmul.f32 %v514, %v750
      %v797 = vmul.f32 %v519, %v752
      %v798 = vmul.f32 %v524, %v754
      %v799 = vmul.f32 %v529, %v756
      %v800 = vmul.f32 %v534, %v758
      %v801 = vmul.f32 %v539, %v760
      %v802 = vmul.f32 %v544, %v762
      %v803 = vmul.f32 %v549, %v764
      %v804 = vmul.f32 %v554, %v766
      %v805 = vmul.f32 %v559, %v768
      %v806 = vmul.f32 %v564, %v770
      %v807 = vmul.f32 %v569, %v772
      %v808 = vmul.f32 %v574, %v774
      %v809 = vmul.f32 %v579, %v776
      %v810 = vmul.f32 %v584, %v778
      %v811 = vld [vmem:[%s3] sm:$0xf]
      %vm812 = vcmask 25600
      %813 = vst.msk [vmem:[#allocation2 + $0x6] sm:$0x3] %vm812, -inf
      %814 = vst.msk [vmem:[#allocation2 + $0x26] sm:$0x3] %vm812, -inf
      %815 = vst.msk [vmem:[#allocation2 + $0x46] sm:$0x3] %vm812, -inf
      %816 = vst.msk [vmem:[#allocation2 + $0x66] sm:$0x3] %vm812, -inf
      %817 = vst.msk [vmem:[#allocation2 + $0x86] sm:$0x3] %vm812, -inf
      %818 = vst.msk [vmem:[#allocation2 + $0xa6] sm:$0x3] %vm812, -inf
      %819 = vst.msk [vmem:[#allocation2 + $0xc6] sm:$0x3] %vm812, -inf
      %820 = vst.msk [vmem:[#allocation2 + $0xe6] sm:$0x3] %vm812, -inf
      %821 = vst.msk [vmem:[#allocation2 + $0x106] sm:$0x3] %vm812, -inf
      %822 = vst.msk [vmem:[#allocation2 + $0x126] sm:$0x3] %vm812, -inf
      %823 = vst.msk [vmem:[#allocation2 + $0x146] sm:$0x3] %vm812, -inf
      %824 = vst.msk [vmem:[#allocation2 + $0x166] sm:$0x3] %vm812, -inf
      %825 = vst.msk [vmem:[#allocation2 + $0x186] sm:$0x3] %vm812, -inf
      %826 = vst.msk [vmem:[#allocation2 + $0x1a6] sm:$0x3] %vm812, -inf
      %827 = vst.msk [vmem:[#allocation2 + $0x1c6] sm:$0x3] %vm812, -inf
      %828 = vst.msk [vmem:[#allocation2 + $0x1e6] sm:$0x3] %vm812, -inf
      %829 = vst.msk [vmem:[#allocation2 + $0x206] sm:$0x3] %vm812, -inf
      %830 = vst.msk [vmem:[#allocation2 + $0x226] sm:$0x3] %vm812, -inf
      %831 = vst.msk [vmem:[#allocation2 + $0x246] sm:$0x3] %vm812, -inf
      %832 = vst.msk [vmem:[#allocation2 + $0x266] sm:$0x3] %vm812, -inf
      %833 = vst.msk [vmem:[#allocation2 + $0x18] sm:$0x3] %vm812, -inf
      %834 = vst.msk [vmem:[#allocation2 + $0x38] sm:$0x3] %vm812, -inf
      %835 = vst.msk [vmem:[#allocation2 + $0x58] sm:$0x3] %vm812, -inf
      %836 = vst.msk [vmem:[#allocation2 + $0x78] sm:$0x3] %vm812, -inf
      %837 = vst.msk [vmem:[#allocation2 + $0x98] sm:$0x3] %vm812, -inf
      %838 = vst.msk [vmem:[#allocation2 + $0xb8] sm:$0x3] %vm812, -inf
      %839 = vst.msk [vmem:[#allocation2 + $0xd8] sm:$0x3] %vm812, -inf
      %840 = vst.msk [vmem:[#allocation2 + $0xf8] sm:$0x3] %vm812, -inf
      %841 = vst.msk [vmem:[#allocation2 + $0x118] sm:$0x3] %vm812, -inf
      %842 = vst.msk [vmem:[#allocation2 + $0x138] sm:$0x3] %vm812, -inf
      %843 = vst.msk [vmem:[#allocation2 + $0x158] sm:$0x3] %vm812, -inf
      %844 = vst.msk [vmem:[#allocation2 + $0x178] sm:$0x3] %vm812, -inf
      %845 = vst.msk [vmem:[#allocation2 + $0x198] sm:$0x3] %vm812, -inf
      %846 = vst.msk [vmem:[#allocation2 + $0x1b8] sm:$0x3] %vm812, -inf
      %847 = vst.msk [vmem:[#allocation2 + $0x1d8] sm:$0x3] %vm812, -inf
      %848 = vst.msk [vmem:[#allocation2 + $0x1f8] sm:$0x3] %vm812, -inf
      %849 = vst.msk [vmem:[#allocation2 + $0x218] sm:$0x3] %vm812, -inf
      %850 = vst.msk [vmem:[#allocation2 + $0x238] sm:$0x3] %vm812, -inf
      %851 = vst.msk [vmem:[#allocation2 + $0x258] sm:$0x3] %vm812, -inf
      %852 = vst.msk [vmem:[#allocation2 + $0x278] sm:$0x3] %vm812, -inf
      %vm853 = vcmask 31744
      %854 = vst.msk [vmem:[#allocation2 + $0x8] sm:$0xff] %vm853, -inf
      %855 = vst.msk [vmem:[#allocation2 + $0x10] sm:$0xff] %vm853, -inf
      %856 = vst.msk [vmem:[#allocation2 + $0x28] sm:$0xff] %vm853, -inf
      %857 = vst.msk [vmem:[#allocation2 + $0x30] sm:$0xff] %vm853, -inf
      %s858 = scalar_lea.vmem [#allocation2], 576
      %859 = vst.msk [vmem:[%s858 + $0x8] sm:$0xff] %vm853, -inf
      %860 = vst.msk [vmem:[%s858 + $0x10] sm:$0xff] %vm853, -inf
      %861 = vst.msk [vmem:[%s858 + $0x28] sm:$0xff] %vm853, -inf
      %862 = vst.msk [vmem:[%s858 + $0x30] sm:$0xff] %vm853, -inf
      %s863 = scalar_lea.vmem [#allocation2], 64
      %864 = vst.msk [vmem:[%s863 + $0x8] sm:$0xff] %vm853, %v779
      %865 = vst.msk [vmem:[%s863 + $0x10] sm:$0xff] %vm853, %v780
      %866 = vst.msk [vmem:[%s863 + $0x28] sm:$0xff] %vm853, %v781
      %867 = vst.msk [vmem:[%s863 + $0x30] sm:$0xff] %vm853, %v782
      %868 = vst.msk [vmem:[%s863 + $0x48] sm:$0xff] %vm853, %v783
      %869 = vst.msk [vmem:[%s863 + $0x50] sm:$0xff] %vm853, %v784
      %870 = vst.msk [vmem:[%s863 + $0x68] sm:$0xff] %vm853, %v785
      %871 = vst.msk [vmem:[%s863 + $0x70] sm:$0xff] %vm853, %v786
      %872 = vst.msk [vmem:[%s863 + $0x88] sm:$0xff] %vm853, %v787
      %873 = vst.msk [vmem:[%s863 + $0x90] sm:$0xff] %vm853, %v788
      %874 = vst.msk [vmem:[%s863 + $0xa8] sm:$0xff] %vm853, %v789
      %875 = vst.msk [vmem:[%s863 + $0xb0] sm:$0xff] %vm853, %v790
      %876 = vst.msk [vmem:[%s863 + $0xc8] sm:$0xff] %vm853, %v791
      %877 = vst.msk [vmem:[%s863 + $0xd0] sm:$0xff] %vm853, %v792
      %878 = vst.msk [vmem:[%s863 + $0xe8] sm:$0xff] %vm853, %v793
      %879 = vst.msk [vmem:[%s863 + $0xf0] sm:$0xff] %vm853, %v794
      %880 = vst.msk [vmem:[%s863 + $0x108] sm:$0xff] %vm853, %v795
      %881 = vst.msk [vmem:[%s863 + $0x110] sm:$0xff] %vm853, %v796
      %882 = vst.msk [vmem:[%s863 + $0x128] sm:$0xff] %vm853, %v797
      %883 = vst.msk [vmem:[%s863 + $0x130] sm:$0xff] %vm853, %v798
      %884 = vst.msk [vmem:[%s863 + $0x148] sm:$0xff] %vm853, %v799
      %885 = vst.msk [vmem:[%s863 + $0x150] sm:$0xff] %vm853, %v800
      %886 = vst.msk [vmem:[%s863 + $0x168] sm:$0xff] %vm853, %v801
      %887 = vst.msk [vmem:[%s863 + $0x170] sm:$0xff] %vm853, %v802
      %888 = vst.msk [vmem:[%s863 + $0x188] sm:$0xff] %vm853, %v803
      %889 = vst.msk [vmem:[%s863 + $0x190] sm:$0xff] %vm853, %v804
      %890 = vst.msk [vmem:[%s863 + $0x1a8] sm:$0xff] %vm853, %v805
      %891 = vst.msk [vmem:[%s863 + $0x1b0] sm:$0xff] %vm853, %v806
      %892 = vst.msk [vmem:[%s863 + $0x1c8] sm:$0xff] %vm853, %v807
      %893 = vst.msk [vmem:[%s863 + $0x1d0] sm:$0xff] %vm853, %v808
      %894 = vst.msk [vmem:[%s863 + $0x1e8] sm:$0xff] %vm853, %v809
      %895 = vst.msk [vmem:[%s863 + $0x1f0] sm:$0xff] %vm853, %v810
      %v896 = vld [vmem:[#allocation2] sm:$0xff]
      %v897 = vld [vmem:[#allocation2 + $0x8] sm:$0xff]
      %v898 = vld [vmem:[#allocation2 + $0x10] sm:$0xff]
      %v899 = vld [vmem:[#allocation2 + $0x18] sm:$0xff]
      %v900 = vld [vmem:[#allocation2 + $0x20] sm:$0xff]
      %v901 = vld [vmem:[#allocation2 + $0x28] sm:$0xff]
      %v902 = vld [vmem:[#allocation2 + $0x30] sm:$0xff]
      %v903 = vld [vmem:[#allocation2 + $0x38] sm:$0xff]
      %v904 = vld [vmem:[#allocation2 + $0x40] sm:$0xff]
      %v905 = vld [vmem:[#allocation2 + $0x48] sm:$0xff]
      %v906 = vld [vmem:[#allocation2 + $0x50] sm:$0xff]
      %v907 = vld [vmem:[#allocation2 + $0x58] sm:$0xff]
      %v908 = vld [vmem:[#allocation2 + $0x60] sm:$0xff]
      %v909 = vld [vmem:[#allocation2 + $0x68] sm:$0xff]
      %v910 = vld [vmem:[#allocation2 + $0x70] sm:$0xff]
      %v911 = vld [vmem:[#allocation2 + $0x78] sm:$0xff]
      %v912 = vld [vmem:[#allocation2 + $0x80] sm:$0xff]
      %v913 = vld [vmem:[#allocation2 + $0x88] sm:$0xff]
      %v914 = vld [vmem:[#allocation2 + $0x90] sm:$0xff]
      %v915 = vld [vmem:[#allocation2 + $0x98] sm:$0xff]
      %v916 = vld [vmem:[#allocation2 + $0xa0] sm:$0xff]
      %v917 = vld [vmem:[#allocation2 + $0xa8] sm:$0xff]
      %v918 = vld [vmem:[#allocation2 + $0xb0] sm:$0xff]
      %v919 = vld [vmem:[#allocation2 + $0xb8] sm:$0xff]
      %v920 = vld [vmem:[#allocation2 + $0xc0] sm:$0xff]
      %v921 = vld [vmem:[#allocation2 + $0xc8] sm:$0xff]
      %v922 = vld [vmem:[#allocation2 + $0xd0] sm:$0xff]
      %v923 = vld [vmem:[#allocation2 + $0xd8] sm:$0xff]
      %v924 = vld [vmem:[#allocation2 + $0xe0] sm:$0xff]
      %v925 = vld [vmem:[#allocation2 + $0xe8] sm:$0xff]
      %v926 = vld [vmem:[#allocation2 + $0xf0] sm:$0xff]
      %v927 = vld [vmem:[#allocation2 + $0xf8] sm:$0xff]
      %v928 = vld [vmem:[#allocation2 + $0x100] sm:$0xff]
      %v929 = vld [vmem:[#allocation2 + $0x108] sm:$0xff]
      %v930 = vld [vmem:[#allocation2 + $0x110] sm:$0xff]
      %v931 = vld [vmem:[#allocation2 + $0x118] sm:$0xff]
      %v932 = vld [vmem:[#allocation2 + $0x120] sm:$0xff]
      %v933 = vld [vmem:[#allocation2 + $0x128] sm:$0xff]
      %v934 = vld [vmem:[#allocation2 + $0x130] sm:$0xff]
      %v935 = vld [vmem:[#allocation2 + $0x138] sm:$0xff]
      %v936 = vld [vmem:[#allocation2 + $0x140] sm:$0xff]
      %v937 = vld [vmem:[#allocation2 + $0x148] sm:$0xff]
      %v938 = vld [vmem:[#allocation2 + $0x150] sm:$0xff]
      %v939 = vld [vmem:[#allocation2 + $0x158] sm:$0xff]
      %v940 = vld [vmem:[#allocation2 + $0x160] sm:$0xff]
      %v941 = vld [vmem:[#allocation2 + $0x168] sm:$0xff]
      %v942 = vld [vmem:[#allocation2 + $0x170] sm:$0xff]
      %v943 = vld [vmem:[#allocation2 + $0x178] sm:$0xff]
      %v944 = vld [vmem:[#allocation2 + $0x180] sm:$0xff]
      %v945 = vld [vmem:[#allocation2 + $0x188] sm:$0xff]
      %v946 = vld [vmem:[#allocation2 + $0x190] sm:$0xff]
      %v947 = vld [vmem:[#allocation2 + $0x198] sm:$0xff]
      %v948 = vld [vmem:[#allocation2 + $0x1a0] sm:$0xff]
      %v949 = vld [vmem:[#allocation2 + $0x1a8] sm:$0xff]
      %v950 = vld [vmem:[#allocation2 + $0x1b0] sm:$0xff]
      %v951 = vld [vmem:[#allocation2 + $0x1b8] sm:$0xff]
      %v952 = vld [vmem:[#allocation2 + $0x1c0] sm:$0xff]
      %v953 = vld [vmem:[#allocation2 + $0x1c8] sm:$0xff]
      %v954 = vld [vmem:[#allocation2 + $0x1d0] sm:$0xff]
      %v955 = vld [vmem:[#allocation2 + $0x1d8] sm:$0xff]
      %v956 = vld [vmem:[#allocation2 + $0x1e0] sm:$0xff]
      %v957 = vld [vmem:[#allocation2 + $0x1e8] sm:$0xff]
      %v958 = vld [vmem:[#allocation2 + $0x1f0] sm:$0xff]
      %v959 = vld [vmem:[#allocation2 + $0x1f8] sm:$0xff]
      %v960 = vld [vmem:[#allocation2 + $0x200] sm:$0xff]
      %v961 = vld [vmem:[#allocation2 + $0x208] sm:$0xff]
      %v962 = vld [vmem:[#allocation2 + $0x210] sm:$0xff]
      %v963 = vld [vmem:[#allocation2 + $0x218] sm:$0xff]
      %v964 = vld [vmem:[#allocation2 + $0x220] sm:$0xff]
      %v965 = vld [vmem:[#allocation2 + $0x228] sm:$0xff]
      %v966 = vld [vmem:[#allocation2 + $0x230] sm:$0xff]
      %v967 = vld [vmem:[#allocation2 + $0x238] sm:$0xff]
      %v968 = vld [vmem:[#allocation2 + $0x240] sm:$0xff]
      %v969 = vld [vmem:[#allocation2 + $0x248] sm:$0xff]
      %v970 = vld [vmem:[#allocation2 + $0x250] sm:$0xff]
      %v971 = vld [vmem:[#allocation2 + $0x258] sm:$0xff]
      %v972 = vld [vmem:[#allocation2 + $0x260] sm:$0xff]
      %v973 = vld [vmem:[#allocation2 + $0x268] sm:$0xff]
      %v974 = vld [vmem:[#allocation2 + $0x270] sm:$0xff]
      %v975 = vld [vmem:[#allocation2 + $0x278] sm:$0xff]
      %v976 = vmax.f32 %v896, %v900
      %v977 = vmax.f32 %v897, %v901
      %v978 = vmax.f32 %v898, %v902
      %v979 = vmax.f32 %v899, %v903
      %v980 = vmax.f32 %v900, %v904
      %v981 = vmax.f32 %v901, %v905
      %v982 = vmax.f32 %v902, %v906
      %v983 = vmax.f32 %v903, %v907
      %v984 = vmax.f32 %v904, %v908
      %v985 = vmax.f32 %v905, %v909
      %v986 = vmax.f32 %v906, %v910
      %v987 = vmax.f32 %v907, %v911
      %v988 = vmax.f32 %v908, %v912
      %v989 = vmax.f32 %v909, %v913
      %v990 = vmax.f32 %v910, %v914
      %v991 = vmax.f32 %v911, %v915
      %v992 = vmax.f32 %v912, %v916
      %v993 = vmax.f32 %v913, %v917
      %v994 = vmax.f32 %v914, %v918
      %v995 = vmax.f32 %v915, %v919
      %v996 = vmax.f32 %v916, %v920
      %v997 = vmax.f32 %v917, %v921
      %v998 = vmax.f32 %v918, %v922
      %v999 = vmax.f32 %v919, %v923
      %v1000 = vmax.f32 %v920, %v924
      %v1001 = vmax.f32 %v921, %v925
      %v1002 = vmax.f32 %v922, %v926
      %v1003 = vmax.f32 %v923, %v927
      %v1004 = vmax.f32 %v924, %v928
      %v1005 = vmax.f32 %v925, %v929
      %v1006 = vmax.f32 %v926, %v930
      %v1007 = vmax.f32 %v927, %v931
      %v1008 = vmax.f32 %v928, %v932
      %v1009 = vmax.f32 %v929, %v933
      %v1010 = vmax.f32 %v930, %v934
      %v1011 = vmax.f32 %v931, %v935
      %v1012 = vmax.f32 %v932, %v936
      %v1013 = vmax.f32 %v933, %v937
      %v1014 = vmax.f32 %v934, %v938
      %v1015 = vmax.f32 %v935, %v939
      %v1016 = vmax.f32 %v936, %v940
      %v1017 = vmax.f32 %v937, %v941
      %v1018 = vmax.f32 %v938, %v942
      %v1019 = vmax.f32 %v939, %v943
      %v1020 = vmax.f32 %v940, %v944
      %v1021 = vmax.f32 %v941, %v945
      %v1022 = vmax.f32 %v942, %v946
      %v1023 = vmax.f32 %v943, %v947
      %v1024 = vmax.f32 %v944, %v948
      %v1025 = vmax.f32 %v945, %v949
      %v1026 = vmax.f32 %v946, %v950
      %v1027 = vmax.f32 %v947, %v951
      %v1028 = vmax.f32 %v948, %v952
      %v1029 = vmax.f32 %v949, %v953
      %v1030 = vmax.f32 %v950, %v954
      %v1031 = vmax.f32 %v951, %v955
      %v1032 = vmax.f32 %v952, %v956
      %v1033 = vmax.f32 %v953, %v957
      %v1034 = vmax.f32 %v954, %v958
      %v1035 = vmax.f32 %v955, %v959
      %v1036 = vmax.f32 %v956, %v960
      %v1037 = vmax.f32 %v957, %v961
      %v1038 = vmax.f32 %v958, %v962
      %v1039 = vmax.f32 %v959, %v963
      %v1040 = vmax.f32 %v976, %v904
      %v1041 = vmax.f32 %v977, %v905
      %v1042 = vmax.f32 %v978, %v906
      %v1043 = vmax.f32 %v979, %v907
      %v1044 = vmax.f32 %v980, %v908
      %v1045 = vmax.f32 %v981, %v909
      %v1046 = vmax.f32 %v982, %v910
      %v1047 = vmax.f32 %v983, %v911
      %v1048 = vmax.f32 %v984, %v912
      %v1049 = vmax.f32 %v985, %v913
      %v1050 = vmax.f32 %v986, %v914
      %v1051 = vmax.f32 %v987, %v915
      %v1052 = vmax.f32 %v988, %v916
      %v1053 = vmax.f32 %v989, %v917
      %v1054 = vmax.f32 %v990, %v918
      %v1055 = vmax.f32 %v991, %v919
      %v1056 = vmax.f32 %v992, %v920
      %v1057 = vmax.f32 %v993, %v921
      %v1058 = vmax.f32 %v994, %v922
      %v1059 = vmax.f32 %v995, %v923
      %v1060 = vmax.f32 %v996, %v924
      %v1061 = vmax.f32 %v997, %v925
      %v1062 = vmax.f32 %v998, %v926
      %v1063 = vmax.f32 %v999, %v927
      %v1064 = vmax.f32 %v1000, %v928
      %v1065 = vmax.f32 %v1001, %v929
      %v1066 = vmax.f32 %v1002, %v930
      %v1067 = vmax.f32 %v1003, %v931
      %v1068 = vmax.f32 %v1004, %v932
      %v1069 = vmax.f32 %v1005, %v933
      %v1070 = vmax.f32 %v1006, %v934
      %v1071 = vmax.f32 %v1007, %v935
      %v1072 = vmax.f32 %v1008, %v936
      %v1073 = vmax.f32 %v1009, %v937
      %v1074 = vmax.f32 %v1010, %v938
      %v1075 = vmax.f32 %v1011, %v939
      %v1076 = vmax.f32 %v1012, %v940
      %v1077 = vmax.f32 %v1013, %v941
      %v1078 = vmax.f32 %v1014, %v942
      %v1079 = vmax.f32 %v1015, %v943
      %v1080 = vmax.f32 %v1016, %v944
      %v1081 = vmax.f32 %v1017, %v945
      %v1082 = vmax.f32 %v1018, %v946
      %v1083 = vmax.f32 %v1019, %v947
      %v1084 = vmax.f32 %v1020, %v948
      %v1085 = vmax.f32 %v1021, %v949
      %v1086 = vmax.f32 %v1022, %v950
      %v1087 = vmax.f32 %v1023, %v951
      %v1088 = vmax.f32 %v1024, %v952
      %v1089 = vmax.f32 %v1025, %v953
      %v1090 = vmax.f32 %v1026, %v954
      %v1091 = vmax.f32 %v1027, %v955
      %v1092 = vmax.f32 %v1028, %v956
      %v1093 = vmax.f32 %v1029, %v957
      %v1094 = vmax.f32 %v1030, %v958
      %v1095 = vmax.f32 %v1031, %v959
      %v1096 = vmax.f32 %v1032, %v960
      %v1097 = vmax.f32 %v1033, %v961
      %v1098 = vmax.f32 %v1034, %v962
      %v1099 = vmax.f32 %v1035, %v963
      %v1100 = vmax.f32 %v1036, %v964
      %v1101 = vmax.f32 %v1037, %v965
      %v1102 = vmax.f32 %v1038, %v966
      %v1103 = vmax.f32 %v1039, %v967
      %v1104 = vmax.f32 %v1040, %v908
      %v1105 = vmax.f32 %v1041, %v909
      %v1106 = vmax.f32 %v1042, %v910
      %v1107 = vmax.f32 %v1043, %v911
      %v1108 = vmax.f32 %v1044, %v912
      %v1109 = vmax.f32 %v1045, %v913
      %v1110 = vmax.f32 %v1046, %v914
      %v1111 = vmax.f32 %v1047, %v915
      %v1112 = vmax.f32 %v1048, %v916
      %v1113 = vmax.f32 %v1049, %v917
      %v1114 = vmax.f32 %v1050, %v918
      %v1115 = vmax.f32 %v1051, %v919
      %v1116 = vmax.f32 %v1052, %v920
      %v1117 = vmax.f32 %v1053, %v921
      %v1118 = vmax.f32 %v1054, %v922
      %v1119 = vmax.f32 %v1055, %v923
      %v1120 = vmax.f32 %v1056, %v924
      %v1121 = vmax.f32 %v1057, %v925
      %v1122 = vmax.f32 %v1058, %v926
      %v1123 = vmax.f32 %v1059, %v927
      %v1124 = vmax.f32 %v1060, %v928
      %v1125 = vmax.f32 %v1061, %v929
      %v1126 = vmax.f32 %v1062, %v930
      %v1127 = vmax.f32 %v1063, %v931
      %v1128 = vmax.f32 %v1064, %v932
      %v1129 = vmax.f32 %v1065, %v933
      %v1130 = vmax.f32 %v1066, %v934
      %v1131 = vmax.f32 %v1067, %v935
      %v1132 = vmax.f32 %v1068, %v936
      %v1133 = vmax.f32 %v1069, %v937
      %v1134 = vmax.f32 %v1070, %v938
      %v1135 = vmax.f32 %v1071, %v939
      %v1136 = vmax.f32 %v1072, %v940
      %v1137 = vmax.f32 %v1073, %v941
      %v1138 = vmax.f32 %v1074, %v942
      %v1139 = vmax.f32 %v1075, %v943
      %v1140 = vmax.f32 %v1076, %v944
      %v1141 = vmax.f32 %v1077, %v945
      %v1142 = vmax.f32 %v1078, %v946
      %v1143 = vmax.f32 %v1079, %v947
      %v1144 = vmax.f32 %v1080, %v948
      %v1145 = vmax.f32 %v1081, %v949
      %v1146 = vmax.f32 %v1082, %v950
      %v1147 = vmax.f32 %v1083, %v951
      %v1148 = vmax.f32 %v1084, %v952
      %v1149 = vmax.f32 %v1085, %v953
      %v1150 = vmax.f32 %v1086, %v954
      %v1151 = vmax.f32 %v1087, %v955
      %v1152 = vmax.f32 %v1088, %v956
      %v1153 = vmax.f32 %v1089, %v957
      %v1154 = vmax.f32 %v1090, %v958
      %v1155 = vmax.f32 %v1091, %v959
      %v1156 = vmax.f32 %v1092, %v960
      %v1157 = vmax.f32 %v1093, %v961
      %v1158 = vmax.f32 %v1094, %v962
      %v1159 = vmax.f32 %v1095, %v963
      %v1160 = vmax.f32 %v1096, %v964
      %v1161 = vmax.f32 %v1097, %v965
      %v1162 = vmax.f32 %v1098, %v966
      %v1163 = vmax.f32 %v1099, %v967
      %v1164 = vmax.f32 %v1100, %v968
      %v1165 = vmax.f32 %v1101, %v969
      %v1166 = vmax.f32 %v1102, %v970
      %v1167 = vmax.f32 %v1103, %v971
      %v1168 = vmax.f32 %v1104, %v912
      %v1169 = vmax.f32 %v1105, %v913
      %v1170 = vmax.f32 %v1106, %v914
      %v1171 = vmax.f32 %v1107, %v915
      %v1172 = vmax.f32 %v1108, %v916
      %v1173 = vmax.f32 %v1109, %v917
      %v1174 = vmax.f32 %v1110, %v918
      %v1175 = vmax.f32 %v1111, %v919
      %v1176 = vmax.f32 %v1112, %v920
      %v1177 = vmax.f32 %v1113, %v921
      %v1178 = vmax.f32 %v1114, %v922
      %v1179 = vmax.f32 %v1115, %v923
      %v1180 = vmax.f32 %v1116, %v924
      %v1181 = vmax.f32 %v1117, %v925
      %v1182 = vmax.f32 %v1118, %v926
      %v1183 = vmax.f32 %v1119, %v927
      %v1184 = vmax.f32 %v1120, %v928
      %v1185 = vmax.f32 %v1121, %v929
      %v1186 = vmax.f32 %v1122, %v930
      %v1187 = vmax.f32 %v1123, %v931
      %v1188 = vmax.f32 %v1124, %v932
      %v1189 = vmax.f32 %v1125, %v933
      %v1190 = vmax.f32 %v1126, %v934
      %v1191 = vmax.f32 %v1127, %v935
      %v1192 = vmax.f32 %v1128, %v936
      %v1193 = vmax.f32 %v1129, %v937
      %v1194 = vmax.f32 %v1130, %v938
      %v1195 = vmax.f32 %v1131, %v939
      %v1196 = vmax.f32 %v1132, %v940
      %v1197 = vmax.f32 %v1133, %v941
      %v1198 = vmax.f32 %v1134, %v942
      %v1199 = vmax.f32 %v1135, %v943
      %v1200 = vmax.f32 %v1136, %v944
      %v1201 = vmax.f32 %v1137, %v945
      %v1202 = vmax.f32 %v1138, %v946
      %v1203 = vmax.f32 %v1139, %v947
      %v1204 = vmax.f32 %v1140, %v948
      %v1205 = vmax.f32 %v1141, %v949
      %v1206 = vmax.f32 %v1142, %v950
      %v1207 = vmax.f32 %v1143, %v951
      %v1208 = vmax.f32 %v1144, %v952
      %v1209 = vmax.f32 %v1145, %v953
      %v1210 = vmax.f32 %v1146, %v954
      %v1211 = vmax.f32 %v1147, %v955
      %v1212 = vmax.f32 %v1148, %v956
      %v1213 = vmax.f32 %v1149, %v957
      %v1214 = vmax.f32 %v1150, %v958
      %v1215 = vmax.f32 %v1151, %v959
      %v1216 = vmax.f32 %v1152, %v960
      %v1217 = vmax.f32 %v1153, %v961
      %v1218 = vmax.f32 %v1154, %v962
      %v1219 = vmax.f32 %v1155, %v963
      %v1220 = vmax.f32 %v1156, %v964
      %v1221 = vmax.f32 %v1157, %v965
      %v1222 = vmax.f32 %v1158, %v966
      %v1223 = vmax.f32 %v1159, %v967
      %v1224 = vmax.f32 %v1160, %v968
      %v1225 = vmax.f32 %v1161, %v969
      %v1226 = vmax.f32 %v1162, %v970
      %v1227 = vmax.f32 %v1163, %v971
      %v1228 = vmax.f32 %v1164, %v972
      %v1229 = vmax.f32 %v1165, %v973
      %v1230 = vmax.f32 %v1166, %v974
      %v1231 = vmax.f32 %v1167, %v975
      %vm1280 = vcmask 1046528
      %v1281 = vrot.slane %v1168, 1
      %v1282 = vrot.slane %v1169, 1
      %v1283 = vsel %vm1280, %v1281, %v1282
      %v1284 = vrot.slane %v1170, 1
      %v1285 = vsel %vm1280, %v1282, %v1284
      %v1286 = vrot.slane %v1172, 1
      %v1287 = vrot.slane %v1173, 1
      %v1288 = vsel %vm1280, %v1286, %v1287
      %v1289 = vrot.slane %v1174, 1
      %v1290 = vsel %vm1280, %v1287, %v1289
      %v1291 = vrot.slane %v1176, 1
      %v1292 = vrot.slane %v1177, 1
      %v1293 = vsel %vm1280, %v1291, %v1292
      %v1294 = vrot.slane %v1178, 1
      %v1295 = vsel %vm1280, %v1292, %v1294
      %v1296 = vrot.slane %v1180, 1
      %v1297 = vrot.slane %v1181, 1
      %v1298 = vsel %vm1280, %v1296, %v1297
      %v1299 = vrot.slane %v1182, 1
      %v1300 = vsel %vm1280, %v1297, %v1299
      %v1301 = vrot.slane %v1184, 1
      %v1302 = vrot.slane %v1185, 1
      %v1303 = vsel %vm1280, %v1301, %v1302
      %v1304 = vrot.slane %v1186, 1
      %v1305 = vsel %vm1280, %v1302, %v1304
      %v1306 = vrot.slane %v1188, 1
      %v1307 = vrot.slane %v1189, 1
      %v1308 = vsel %vm1280, %v1306, %v1307
      %v1309 = vrot.slane %v1190, 1
      %v1310 = vsel %vm1280, %v1307, %v1309
      %v1311 = vrot.slane %v1192, 1
      %v1312 = vrot.slane %v1193, 1
      %v1313 = vsel %vm1280, %v1311, %v1312
      %v1314 = vrot.slane %v1194, 1
      %v1315 = vsel %vm1280, %v1312, %v1314
      %v1316 = vrot.slane %v1196, 1
      %v1317 = vrot.slane %v1197, 1
      %v1318 = vsel %vm1280, %v1316, %v1317
      %v1319 = vrot.slane %v1198, 1
      %v1320 = vsel %vm1280, %v1317, %v1319
      %v1321 = vrot.slane %v1200, 1
      %v1322 = vrot.slane %v1201, 1
      %v1323 = vsel %vm1280, %v1321, %v1322
      %v1324 = vrot.slane %v1202, 1
      %v1325 = vsel %vm1280, %v1322, %v1324
      %v1326 = vrot.slane %v1204, 1
      %v1327 = vrot.slane %v1205, 1
      %v1328 = vsel %vm1280, %v1326, %v1327
      %v1329 = vrot.slane %v1206, 1
      %v1330 = vsel %vm1280, %v1327, %v1329
      %v1331 = vrot.slane %v1208, 1
      %v1332 = vrot.slane %v1209, 1
      %v1333 = vsel %vm1280, %v1331, %v1332
      %v1334 = vrot.slane %v1210, 1
      %v1335 = vsel %vm1280, %v1332, %v1334
      %v1336 = vrot.slane %v1212, 1
      %v1337 = vrot.slane %v1213, 1
      %v1338 = vsel %vm1280, %v1336, %v1337
      %v1339 = vrot.slane %v1214, 1
      %v1340 = vsel %vm1280, %v1337, %v1339
      %v1341 = vrot.slane %v1216, 1
      %v1342 = vrot.slane %v1217, 1
      %v1343 = vsel %vm1280, %v1341, %v1342
      %v1344 = vrot.slane %v1218, 1
      %v1345 = vsel %vm1280, %v1342, %v1344
      %v1346 = vrot.slane %v1220, 1
      %v1347 = vrot.slane %v1221, 1
      %v1348 = vsel %vm1280, %v1346, %v1347
      %v1349 = vrot.slane %v1222, 1
      %v1350 = vsel %vm1280, %v1347, %v1349
      %v1351 = vrot.slane %v1224, 1
      %v1352 = vrot.slane %v1225, 1
      %v1353 = vsel %vm1280, %v1351, %v1352
      %v1354 = vrot.slane %v1226, 1
      %v1355 = vsel %vm1280, %v1352, %v1354
      %v1356 = vrot.slane %v1228, 1
      %v1357 = vrot.slane %v1229, 1
      %v1358 = vsel %vm1280, %v1356, %v1357
      %v1359 = vrot.slane %v1230, 1
      %v1360 = vsel %vm1280, %v1357, %v1359
      %v1409 = vmax.f32 %v1168, %v1283
      %v1410 = vmax.f32 %v1169, %v1285
      %v1411 = vmax.f32 %v1170, %v1284
      %v1412 = vmax.f32 %v1172, %v1288
      %v1413 = vmax.f32 %v1173, %v1290
      %v1414 = vmax.f32 %v1174, %v1289
      %v1415 = vmax.f32 %v1176, %v1293
      %v1416 = vmax.f32 %v1177, %v1295
      %v1417 = vmax.f32 %v1178, %v1294
      %v1418 = vmax.f32 %v1180, %v1298
      %v1419 = vmax.f32 %v1181, %v1300
      %v1420 = vmax.f32 %v1182, %v1299
      %v1421 = vmax.f32 %v1184, %v1303
      %v1422 = vmax.f32 %v1185, %v1305
      %v1423 = vmax.f32 %v1186, %v1304
      %v1424 = vmax.f32 %v1188, %v1308
      %v1425 = vmax.f32 %v1189, %v1310
      %v1426 = vmax.f32 %v1190, %v1309
      %v1427 = vmax.f32 %v1192, %v1313
      %v1428 = vmax.f32 %v1193, %v1315
      %v1429 = vmax.f32 %v1194, %v1314
      %v1430 = vmax.f32 %v1196, %v1318
      %v1431 = vmax.f32 %v1197, %v1320
      %v1432 = vmax.f32 %v1198, %v1319
      %v1433 = vmax.f32 %v1200, %v1323
      %v1434 = vmax.f32 %v1201, %v1325
      %v1435 = vmax.f32 %v1202, %v1324
      %v1436 = vmax.f32 %v1204, %v1328
      %v1437 = vmax.f32 %v1205, %v1330
      %v1438 = vmax.f32 %v1206, %v1329
      %v1439 = vmax.f32 %v1208, %v1333
      %v1440 = vmax.f32 %v1209, %v1335
      %v1441 = vmax.f32 %v1210, %v1334
      %v1442 = vmax.f32 %v1212, %v1338
      %v1443 = vmax.f32 %v1213, %v1340
      %v1444 = vmax.f32 %v1214, %v1339
      %v1445 = vmax.f32 %v1216, %v1343
      %v1446 = vmax.f32 %v1217, %v1345
      %v1447 = vmax.f32 %v1218, %v1344
      %v1448 = vmax.f32 %v1220, %v1348
      %v1449 = vmax.f32 %v1221, %v1350
      %v1450 = vmax.f32 %v1222, %v1349
      %v1451 = vmax.f32 %v1224, %v1353
      %v1452 = vmax.f32 %v1225, %v1355
      %v1453 = vmax.f32 %v1226, %v1354
      %v1454 = vmax.f32 %v1228, %v1358
      %v1455 = vmax.f32 %v1229, %v1360
      %v1456 = vmax.f32 %v1230, %v1359
      %vm1457 = vcmask 1045504
      %v1458 = vrot.slane %v1169, 2
      %v1459 = vrot.slane %v1170, 2
      %v1460 = vsel %vm1457, %v1458, %v1459
      %v1461 = vrot.slane %v1173, 2
      %v1462 = vrot.slane %v1174, 2
      %v1463 = vsel %vm1457, %v1461, %v1462
      %v1464 = vrot.slane %v1177, 2
      %v1465 = vrot.slane %v1178, 2
      %v1466 = vsel %vm1457, %v1464, %v1465
      %v1467 = vrot.slane %v1181, 2
      %v1468 = vrot.slane %v1182, 2
      %v1469 = vsel %vm1457, %v1467, %v1468
      %v1470 = vrot.slane %v1185, 2
      %v1471 = vrot.slane %v1186, 2
      %v1472 = vsel %vm1457, %v1470, %v1471
      %v1473 = vrot.slane %v1189, 2
      %v1474 = vrot.slane %v1190, 2
      %v1475 = vsel %vm1457, %v1473, %v1474
      %v1476 = vrot.slane %v1193, 2
      %v1477 = vrot.slane %v1194, 2
      %v1478 = vsel %vm1457, %v1476, %v1477
      %v1479 = vrot.slane %v1197, 2
      %v1480 = vrot.slane %v1198, 2
      %v1481 = vsel %vm1457, %v1479, %v1480
      %v1482 = vrot.slane %v1201, 2
      %v1483 = vrot.slane %v1202, 2
      %v1484 = vsel %vm1457, %v1482, %v1483
      %v1485 = vrot.slane %v1205, 2
      %v1486 = vrot.slane %v1206, 2
      %v1487 = vsel %vm1457, %v1485, %v1486
      %v1488 = vrot.slane %v1209, 2
      %v1489 = vrot.slane %v1210, 2
      %v1490 = vsel %vm1457, %v1488, %v1489
      %v1491 = vrot.slane %v1213, 2
      %v1492 = vrot.slane %v1214, 2
      %v1493 = vsel %vm1457, %v1491, %v1492
      %v1494 = vrot.slane %v1217, 2
      %v1495 = vrot.slane %v1218, 2
      %v1496 = vsel %vm1457, %v1494, %v1495
      %v1497 = vrot.slane %v1221, 2
      %v1498 = vrot.slane %v1222, 2
      %v1499 = vsel %vm1457, %v1497, %v1498
      %v1500 = vrot.slane %v1225, 2
      %v1501 = vrot.slane %v1226, 2
      %v1502 = vsel %vm1457, %v1500, %v1501
      %v1503 = vrot.slane %v1229, 2
      %v1504 = vrot.slane %v1230, 2
      %v1505 = vsel %vm1457, %v1503, %v1504
      %v1554 = vmax.f32 %v1409, %v1458
      %v1555 = vmax.f32 %v1410, %v1460
      %v1556 = vmax.f32 %v1411, %v1459
      %v1557 = vmax.f32 %v1412, %v1461
      %v1558 = vmax.f32 %v1413, %v1463
      %v1559 = vmax.f32 %v1414, %v1462
      %v1560 = vmax.f32 %v1415, %v1464
      %v1561 = vmax.f32 %v1416, %v1466
      %v1562 = vmax.f32 %v1417, %v1465
      %v1563 = vmax.f32 %v1418, %v1467
      %v1564 = vmax.f32 %v1419, %v1469
      %v1565 = vmax.f32 %v1420, %v1468
      %v1566 = vmax.f32 %v1421, %v1470
      %v1567 = vmax.f32 %v1422, %v1472
      %v1568 = vmax.f32 %v1423, %v1471
      %v1569 = vmax.f32 %v1424, %v1473
      %v1570 = vmax.f32 %v1425, %v1475
      %v1571 = vmax.f32 %v1426, %v1474
      %v1572 = vmax.f32 %v1427, %v1476
      %v1573 = vmax.f32 %v1428, %v1478
      %v1574 = vmax.f32 %v1429, %v1477
      %v1575 = vmax.f32 %v1430, %v1479
      %v1576 = vmax.f32 %v1431, %v1481
      %v1577 = vmax.f32 %v1432, %v1480
      %v1578 = vmax.f32 %v1433, %v1482
      %v1579 = vmax.f32 %v1434, %v1484
      %v1580 = vmax.f32 %v1435, %v1483
      %v1581 = vmax.f32 %v1436, %v1485
      %v1582 = vmax.f32 %v1437, %v1487
      %v1583 = vmax.f32 %v1438, %v1486
      %v1584 = vmax.f32 %v1439, %v1488
      %v1585 = vmax.f32 %v1440, %v1490
      %v1586 = vmax.f32 %v1441, %v1489
      %v1587 = vmax.f32 %v1442, %v1491
      %v1588 = vmax.f32 %v1443, %v1493
      %v1589 = vmax.f32 %v1444, %v1492
      %v1590 = vmax.f32 %v1445, %v1494
      %v1591 = vmax.f32 %v1446, %v1496
      %v1592 = vmax.f32 %v1447, %v1495
      %v1593 = vmax.f32 %v1448, %v1497
      %v1594 = vmax.f32 %v1449, %v1499
      %v1595 = vmax.f32 %v1450, %v1498
      %v1596 = vmax.f32 %v1451, %v1500
      %v1597 = vmax.f32 %v1452, %v1502
      %v1598 = vmax.f32 %v1453, %v1501
      %v1599 = vmax.f32 %v1454, %v1503
      %v1600 = vmax.f32 %v1455, %v1505
      %v1601 = vmax.f32 %v1456, %v1504
      %vm1618 = vcmask 1044480
      %v1619 = vrot.slane %v1169, 3
      %v1620 = vrot.slane %v1170, 3
      %v1621 = vsel %vm1618, %v1619, %v1620
      %v1622 = vrot.slane %v1171, 3
      %v1623 = vsel %vm1618, %v1620, %v1622
      %v1624 = vrot.slane %v1173, 3
      %v1625 = vrot.slane %v1174, 3
      %v1626 = vsel %vm1618, %v1624, %v1625
      %v1627 = vrot.slane %v1175, 3
      %v1628 = vsel %vm1618, %v1625, %v1627
      %v1629 = vrot.slane %v1177, 3
      %v1630 = vrot.slane %v1178, 3
      %v1631 = vsel %vm1618, %v1629, %v1630
      %v1632 = vrot.slane %v1179, 3
      %v1633 = vsel %vm1618, %v1630, %v1632
      %v1634 = vrot.slane %v1181, 3
      %v1635 = vrot.slane %v1182, 3
      %v1636 = vsel %vm1618, %v1634, %v1635
      %v1637 = vrot.slane %v1183, 3
      %v1638 = vsel %vm1618, %v1635, %v1637
      %v1639 = vrot.slane %v1185, 3
      %v1640 = vrot.slane %v1186, 3
      %v1641 = vsel %vm1618, %v1639, %v1640
      %v1642 = vrot.slane %v1187, 3
      %v1643 = vsel %vm1618, %v1640, %v1642
      %v1644 = vrot.slane %v1189, 3
      %v1645 = vrot.slane %v1190, 3
      %v1646 = vsel %vm1618, %v1644, %v1645
      %v1647 = vrot.slane %v1191, 3
      %v1648 = vsel %vm1618, %v1645, %v1647
      %v1649 = vrot.slane %v1193, 3
      %v1650 = vrot.slane %v1194, 3
      %v1651 = vsel %vm1618, %v1649, %v1650
      %v1652 = vrot.slane %v1195, 3
      %v1653 = vsel %vm1618, %v1650, %v1652
      %v1654 = vrot.slane %v1197, 3
      %v1655 = vrot.slane %v1198, 3
      %v1656 = vsel %vm1618, %v1654, %v1655
      %v1657 = vrot.slane %v1199, 3
      %v1658 = vsel %vm1618, %v1655, %v1657
      %v1659 = vrot.slane %v1201, 3
      %v1660 = vrot.slane %v1202, 3
      %v1661 = vsel %vm1618, %v1659, %v1660
      %v1662 = vrot.slane %v1203, 3
      %v1663 = vsel %vm1618, %v1660, %v1662
      %v1664 = vrot.slane %v1205, 3
      %v1665 = vrot.slane %v1206, 3
      %v1666 = vsel %vm1618, %v1664, %v1665
      %v1667 = vrot.slane %v1207, 3
      %v1668 = vsel %vm1618, %v1665, %v1667
      %v1669 = vrot.slane %v1209, 3
      %v1670 = vrot.slane %v1210, 3
      %v1671 = vsel %vm1618, %v1669, %v1670
      %v1672 = vrot.slane %v1211, 3
      %v1673 = vsel %vm1618, %v1670, %v1672
      %v1674 = vrot.slane %v1213, 3
      %v1675 = vrot.slane %v1214, 3
      %v1676 = vsel %vm1618, %v1674, %v1675
      %v1677 = vrot.slane %v1215, 3
      %v1678 = vsel %vm1618, %v1675, %v1677
      %v1679 = vrot.slane %v1217, 3
      %v1680 = vrot.slane %v1218, 3
      %v1681 = vsel %vm1618, %v1679, %v1680
      %v1682 = vrot.slane %v1219, 3
      %v1683 = vsel %vm1618, %v1680, %v1682
      %v1684 = vrot.slane %v1221, 3
      %v1685 = vrot.slane %v1222, 3
      %v1686 = vsel %vm1618, %v1684, %v1685
      %v1687 = vrot.slane %v1223, 3
      %v1688 = vsel %vm1618, %v1685, %v1687
      %v1689 = vrot.slane %v1225, 3
      %v1690 = vrot.slane %v1226, 3
      %v1691 = vsel %vm1618, %v1689, %v1690
      %v1692 = vrot.slane %v1227, 3
      %v1693 = vsel %vm1618, %v1690, %v1692
      %v1694 = vrot.slane %v1229, 3
      %v1695 = vrot.slane %v1230, 3
      %v1696 = vsel %vm1618, %v1694, %v1695
      %v1697 = vrot.slane %v1231, 3
      %v1698 = vsel %vm1618, %v1695, %v1697
      %v1747 = vmax.f32 %v1554, %v1619
      %v1748 = vmax.f32 %v1555, %v1621
      %v1749 = vmax.f32 %v1556, %v1623
      %v1750 = vmax.f32 %v1557, %v1624
      %v1751 = vmax.f32 %v1558, %v1626
      %v1752 = vmax.f32 %v1559, %v1628
      %v1753 = vmax.f32 %v1560, %v1629
      %v1754 = vmax.f32 %v1561, %v1631
      %v1755 = vmax.f32 %v1562, %v1633
      %v1756 = vmax.f32 %v1563, %v1634
      %v1757 = vmax.f32 %v1564, %v1636
      %v1758 = vmax.f32 %v1565, %v1638
      %v1759 = vmax.f32 %v1566, %v1639
      %v1760 = vmax.f32 %v1567, %v1641
      %v1761 = vmax.f32 %v1568, %v1643
      %v1762 = vmax.f32 %v1569, %v1644
      %v1763 = vmax.f32 %v1570, %v1646
      %v1764 = vmax.f32 %v1571, %v1648
      %v1765 = vmax.f32 %v1572, %v1649
      %v1766 = vmax.f32 %v1573, %v1651
      %v1767 = vmax.f32 %v1574, %v1653
      %v1768 = vmax.f32 %v1575, %v1654
      %v1769 = vmax.f32 %v1576, %v1656
      %v1770 = vmax.f32 %v1577, %v1658
      %v1771 = vmax.f32 %v1578, %v1659
      %v1772 = vmax.f32 %v1579, %v1661
      %v1773 = vmax.f32 %v1580, %v1663
      %v1774 = vmax.f32 %v1581, %v1664
      %v1775 = vmax.f32 %v1582, %v1666
      %v1776 = vmax.f32 %v1583, %v1668
      %v1777 = vmax.f32 %v1584, %v1669
      %v1778 = vmax.f32 %v1585, %v1671
      %v1779 = vmax.f32 %v1586, %v1673
      %v1780 = vmax.f32 %v1587, %v1674
      %v1781 = vmax.f32 %v1588, %v1676
      %v1782 = vmax.f32 %v1589, %v1678
      %v1783 = vmax.f32 %v1590, %v1679
      %v1784 = vmax.f32 %v1591, %v1681
      %v1785 = vmax.f32 %v1592, %v1683
      %v1786 = vmax.f32 %v1593, %v1684
      %v1787 = vmax.f32 %v1594, %v1686
      %v1788 = vmax.f32 %v1595, %v1688
      %v1789 = vmax.f32 %v1596, %v1689
      %v1790 = vmax.f32 %v1597, %v1691
      %v1791 = vmax.f32 %v1598, %v1693
      %v1792 = vmax.f32 %v1599, %v1694
      %v1793 = vmax.f32 %v1600, %v1696
      %v1794 = vmax.f32 %v1601, %v1698
      %vm1795 = vcmask 1043456
      %v1796 = vrot.slane %v1169, 4
      %v1797 = vrot.slane %v1170, 4
      %v1798 = vsel %vm1795, %v1796, %v1797
      %v1799 = vrot.slane %v1171, 4
      %v1800 = vsel %vm1795, %v1797, %v1799
      %v1801 = vrot.slane %v1173, 4
      %v1802 = vrot.slane %v1174, 4
      %v1803 = vsel %vm1795, %v1801, %v1802
      %v1804 = vrot.slane %v1175, 4
      %v1805 = vsel %vm1795, %v1802, %v1804
      %v1806 = vrot.slane %v1177, 4
      %v1807 = vrot.slane %v1178, 4
      %v1808 = vsel %vm1795, %v1806, %v1807
      %v1809 = vrot.slane %v1179, 4
      %v1810 = vsel %vm1795, %v1807, %v1809
      %v1811 = vrot.slane %v1181, 4
      %v1812 = vrot.slane %v1182, 4
      %v1813 = vsel %vm1795, %v1811, %v1812
      %v1814 = vrot.slane %v1183, 4
      %v1815 = vsel %vm1795, %v1812, %v1814
      %v1816 = vrot.slane %v1185, 4
      %v1817 = vrot.slane %v1186, 4
      %v1818 = vsel %vm1795, %v1816, %v1817
      %v1819 = vrot.slane %v1187, 4
      %v1820 = vsel %vm1795, %v1817, %v1819
      %v1821 = vrot.slane %v1189, 4
      %v1822 = vrot.slane %v1190, 4
      %v1823 = vsel %vm1795, %v1821, %v1822
      %v1824 = vrot.slane %v1191, 4
      %v1825 = vsel %vm1795, %v1822, %v1824
      %v1826 = vrot.slane %v1193, 4
      %v1827 = vrot.slane %v1194, 4
      %v1828 = vsel %vm1795, %v1826, %v1827
      %v1829 = vrot.slane %v1195, 4
      %v1830 = vsel %vm1795, %v1827, %v1829
      %v1831 = vrot.slane %v1197, 4
      %v1832 = vrot.slane %v1198, 4
      %v1833 = vsel %vm1795, %v1831, %v1832
      %v1834 = vrot.slane %v1199, 4
      %v1835 = vsel %vm1795, %v1832, %v1834
      %v1836 = vrot.slane %v1201, 4
      %v1837 = vrot.slane %v1202, 4
      %v1838 = vsel %vm1795, %v1836, %v1837
      %v1839 = vrot.slane %v1203, 4
      %v1840 = vsel %vm1795, %v1837, %v1839
      %v1841 = vrot.slane %v1205, 4
      %v1842 = vrot.slane %v1206, 4
      %v1843 = vsel %vm1795, %v1841, %v1842
      %v1844 = vrot.slane %v1207, 4
      %v1845 = vsel %vm1795, %v1842, %v1844
      %v1846 = vrot.slane %v1209, 4
      %v1847 = vrot.slane %v1210, 4
      %v1848 = vsel %vm1795, %v1846, %v1847
      %v1849 = vrot.slane %v1211, 4
      %v1850 = vsel %vm1795, %v1847, %v1849
      %v1851 = vrot.slane %v1213, 4
      %v1852 = vrot.slane %v1214, 4
      %v1853 = vsel %vm1795, %v1851, %v1852
      %v1854 = vrot.slane %v1215, 4
      %v1855 = vsel %vm1795, %v1852, %v1854
      %v1856 = vrot.slane %v1217, 4
      %v1857 = vrot.slane %v1218, 4
      %v1858 = vsel %vm1795, %v1856, %v1857
      %v1859 = vrot.slane %v1219, 4
      %v1860 = vsel %vm1795, %v1857, %v1859
      %v1861 = vrot.slane %v1221, 4
      %v1862 = vrot.slane %v1222, 4
      %v1863 = vsel %vm1795, %v1861, %v1862
      %v1864 = vrot.slane %v1223, 4
      %v1865 = vsel %vm1795, %v1862, %v1864
      %v1866 = vrot.slane %v1225, 4
      %v1867 = vrot.slane %v1226, 4
      %v1868 = vsel %vm1795, %v1866, %v1867
      %v1869 = vrot.slane %v1227, 4
      %v1870 = vsel %vm1795, %v1867, %v1869
      %v1871 = vrot.slane %v1229, 4
      %v1872 = vrot.slane %v1230, 4
      %v1873 = vsel %vm1795, %v1871, %v1872
      %v1874 = vrot.slane %v1231, 4
      %v1875 = vsel %vm1795, %v1872, %v1874
      %v1924 = vmax.f32 %v1747, %v1796
      %v1925 = vmax.f32 %v1748, %v1798
      %v1926 = vmax.f32 %v1749, %v1800
      %v1927 = vmax.f32 %v1750, %v1801
      %v1928 = vmax.f32 %v1751, %v1803
      %v1929 = vmax.f32 %v1752, %v1805
      %v1930 = vmax.f32 %v1753, %v1806
      %v1931 = vmax.f32 %v1754, %v1808
      %v1932 = vmax.f32 %v1755, %v1810
      %v1933 = vmax.f32 %v1756, %v1811
      %v1934 = vmax.f32 %v1757, %v1813
      %v1935 = vmax.f32 %v1758, %v1815
      %v1936 = vmax.f32 %v1759, %v1816
      %v1937 = vmax.f32 %v1760, %v1818
      %v1938 = vmax.f32 %v1761, %v1820
      %v1939 = vmax.f32 %v1762, %v1821
      %v1940 = vmax.f32 %v1763, %v1823
      %v1941 = vmax.f32 %v1764, %v1825
      %v1942 = vmax.f32 %v1765, %v1826
      %v1943 = vmax.f32 %v1766, %v1828
      %v1944 = vmax.f32 %v1767, %v1830
      %v1945 = vmax.f32 %v1768, %v1831
      %v1946 = vmax.f32 %v1769, %v1833
      %v1947 = vmax.f32 %v1770, %v1835
      %v1948 = vmax.f32 %v1771, %v1836
      %v1949 = vmax.f32 %v1772, %v1838
      %v1950 = vmax.f32 %v1773, %v1840
      %v1951 = vmax.f32 %v1774, %v1841
      %v1952 = vmax.f32 %v1775, %v1843
      %v1953 = vmax.f32 %v1776, %v1845
      %v1954 = vmax.f32 %v1777, %v1846
      %v1955 = vmax.f32 %v1778, %v1848
      %v1956 = vmax.f32 %v1779, %v1850
      %v1957 = vmax.f32 %v1780, %v1851
      %v1958 = vmax.f32 %v1781, %v1853
      %v1959 = vmax.f32 %v1782, %v1855
      %v1960 = vmax.f32 %v1783, %v1856
      %v1961 = vmax.f32 %v1784, %v1858
      %v1962 = vmax.f32 %v1785, %v1860
      %v1963 = vmax.f32 %v1786, %v1861
      %v1964 = vmax.f32 %v1787, %v1863
      %v1965 = vmax.f32 %v1788, %v1865
      %v1966 = vmax.f32 %v1789, %v1866
      %v1967 = vmax.f32 %v1790, %v1868
      %v1968 = vmax.f32 %v1791, %v1870
      %v1969 = vmax.f32 %v1792, %v1871
      %v1970 = vmax.f32 %v1793, %v1873
      %v1971 = vmax.f32 %v1794, %v1875
      %vm2020 = vcmask 1041408
      %v2021 = vrot.slane %v1924, 6
      %v2022 = vrot.slane %v1925, 6
      %v2023 = vsel %vm2020, %v2021, %v2022
      %v2024 = vrot.slane %v1926, 6
      %v2025 = vsel %vm2020, %v2022, %v2024
      %v2026 = vrot.slane %v1927, 6
      %v2027 = vrot.slane %v1928, 6
      %v2028 = vsel %vm2020, %v2026, %v2027
      %v2029 = vrot.slane %v1929, 6
      %v2030 = vsel %vm2020, %v2027, %v2029
      %v2031 = vrot.slane %v1930, 6
      %v2032 = vrot.slane %v1931, 6
      %v2033 = vsel %vm2020, %v2031, %v2032
      %v2034 = vrot.slane %v1932, 6
      %v2035 = vsel %vm2020, %v2032, %v2034
      %v2036 = vrot.slane %v1933, 6
      %v2037 = vrot.slane %v1934, 6
      %v2038 = vsel %vm2020, %v2036, %v2037
      %v2039 = vrot.slane %v1935, 6
      %v2040 = vsel %vm2020, %v2037, %v2039
      %v2041 = vrot.slane %v1936, 6
      %v2042 = vrot.slane %v1937, 6
      %v2043 = vsel %vm2020, %v2041, %v2042
      %v2044 = vrot.slane %v1938, 6
      %v2045 = vsel %vm2020, %v2042, %v2044
      %v2046 = vrot.slane %v1939, 6
      %v2047 = vrot.slane %v1940, 6
      %v2048 = vsel %vm2020, %v2046, %v2047
      %v2049 = vrot.slane %v1941, 6
      %v2050 = vsel %vm2020, %v2047, %v2049
      %v2051 = vrot.slane %v1942, 6
      %v2052 = vrot.slane %v1943, 6
      %v2053 = vsel %vm2020, %v2051, %v2052
      %v2054 = vrot.slane %v1944, 6
      %v2055 = vsel %vm2020, %v2052, %v2054
      %v2056 = vrot.slane %v1945, 6
      %v2057 = vrot.slane %v1946, 6
      %v2058 = vsel %vm2020, %v2056, %v2057
      %v2059 = vrot.slane %v1947, 6
      %v2060 = vsel %vm2020, %v2057, %v2059
      %v2061 = vrot.slane %v1948, 6
      %v2062 = vrot.slane %v1949, 6
      %v2063 = vsel %vm2020, %v2061, %v2062
      %v2064 = vrot.slane %v1950, 6
      %v2065 = vsel %vm2020, %v2062, %v2064
      %v2066 = vrot.slane %v1951, 6
      %v2067 = vrot.slane %v1952, 6
      %v2068 = vsel %vm2020, %v2066, %v2067
      %v2069 = vrot.slane %v1953, 6
      %v2070 = vsel %vm2020, %v2067, %v2069
      %v2071 = vrot.slane %v1954, 6
      %v2072 = vrot.slane %v1955, 6
      %v2073 = vsel %vm2020, %v2071, %v2072
      %v2074 = vrot.slane %v1956, 6
      %v2075 = vsel %vm2020, %v2072, %v2074
      %v2076 = vrot.slane %v1957, 6
      %v2077 = vrot.slane %v1958, 6
      %v2078 = vsel %vm2020, %v2076, %v2077
      %v2079 = vrot.slane %v1959, 6
      %v2080 = vsel %vm2020, %v2077, %v2079
      %v2081 = vrot.slane %v1960, 6
      %v2082 = vrot.slane %v1961, 6
      %v2083 = vsel %vm2020, %v2081, %v2082
      %v2084 = vrot.slane %v1962, 6
      %v2085 = vsel %vm2020, %v2082, %v2084
      %v2086 = vrot.slane %v1963, 6
      %v2087 = vrot.slane %v1964, 6
      %v2088 = vsel %vm2020, %v2086, %v2087
      %v2089 = vrot.slane %v1965, 6
      %v2090 = vsel %vm2020, %v2087, %v2089
      %v2091 = vrot.slane %v1966, 6
      %v2092 = vrot.slane %v1967, 6
      %v2093 = vsel %vm2020, %v2091, %v2092
      %v2094 = vrot.slane %v1968, 6
      %v2095 = vsel %vm2020, %v2092, %v2094
      %v2096 = vrot.slane %v1969, 6
      %v2097 = vrot.slane %v1970, 6
      %v2098 = vsel %vm2020, %v2096, %v2097
      %v2099 = vrot.slane %v1971, 6
      %v2100 = vsel %vm2020, %v2097, %v2099
      %s2101 = scalar_lea.vmem %s3, 4
      %v2102 = vld [vmem:[%s2101] sm:$0xf]
      %v2103 = vsel %vm853, %v2023, 0
      %v2105 = vsel %vm853, %v2025, 0
      %v2107 = vsel %vm853, %v2028, 0
      %v2109 = vsel %vm853, %v2030, 0
      %v2111 = vsel %vm853, %v2033, 0
      %v2113 = vsel %vm853, %v2035, 0
      %v2115 = vsel %vm853, %v2038, 0
      %v2117 = vsel %vm853, %v2040, 0
      %v2119 = vsel %vm853, %v2043, 0
      %v2121 = vsel %vm853, %v2045, 0
      %v2123 = vsel %vm853, %v2048, 0
      %v2125 = vsel %vm853, %v2050, 0
      %v2127 = vsel %vm853, %v2053, 0
      %v2129 = vsel %vm853, %v2055, 0
      %v2131 = vsel %vm853, %v2058, 0
      %v2133 = vsel %vm853, %v2060, 0
      %v2135 = vsel %vm853, %v2063, 0
      %v2137 = vsel %vm853, %v2065, 0
      %v2139 = vsel %vm853, %v2068, 0
      %v2141 = vsel %vm853, %v2070, 0
      %v2143 = vsel %vm853, %v2073, 0
      %v2145 = vsel %vm853, %v2075, 0
      %v2147 = vsel %vm853, %v2078, 0
      %v2149 = vsel %vm853, %v2080, 0
      %v2151 = vsel %vm853, %v2083, 0
      %v2153 = vsel %vm853, %v2085, 0
      %v2155 = vsel %vm853, %v2088, 0
      %v2157 = vsel %vm853, %v2090, 0
      %v2159 = vsel %vm853, %v2093, 0
      %v2161 = vsel %vm853, %v2095, 0
      %v2163 = vsel %vm853, %v2098, 0
      %v2165 = vsel %vm853, %v2100, 0
      %v2168 = vsel %vm1795, %v2102, 0
      %2170 = vmatprep.subr.mxu0 0.0
      %2171 = vmatpush1.msra.mxu0 0.0
      %2172 = vmatprep.subr.mxu0 0.0
      %2173 = vmatpush1.msra.mxu0 0.0
      %2174 = vmatprep.subr.mxu0 0.0
      %2175 = vmatpush1.msra.mxu0 0.0
      %2176 = vmatprep.subr.mxu0 0.0
      %2177 = vmatpush1.msra.mxu0 0.0
      %2178 = vmatprep.subr.mxu0 0.0
      %2179 = vmatpush1.msra.mxu0 0.0
      %2180 = vmatprep.subr.mxu0 0.0
      %2181 = vmatpush1.msra.mxu0 0.0
      %2182 = vmatprep.subr.mxu0 0.0
      %2183 = vmatpush1.msra.mxu0 0.0
      %2184 = vmatprep.subr.mxu0 0.0
      %2185 = vmatpush1.msra.mxu0 0.0
      %2186 = vmatprep.subr.mxu0 0.0
      %2187 = vmatpush1.msra.mxu0 0.0
      %2188 = vmatprep.subr.mxu0 0.0
      %2189 = vmatpush1.msra.mxu0 0.0
      %2190 = vmatprep.subr.mxu0 0.0
      %2191 = vmatpush1.msra.mxu0 0.0
      %2192 = vmatprep.subr.mxu0 0.0
      %2193 = vmatpush1.msra.mxu0 0.0
      %2194 = vmatprep.subr.mxu0 0.0
      %2195 = vmatpush1.msra.mxu0 0.0
      %2196 = vmatprep.subr.mxu0 0.0
      %2197 = vmatpush1.msra.mxu0 0.0
      %2198 = vmatprep.subr.mxu0 0.0
      %2199 = vmatpush1.msra.mxu0 0.0
      %2200 = vmatprep.subr.mxu0 0.0
      %2201 = vmatpush1.msra.mxu0 %v2168
      %2202 = vmatprep.subr.mxu0 0.0
      %2203 = vmatpush2.msra.mxu0 0.0
      %2204 = vmatprep.subr.mxu0 0.0
      %2205 = vmatpush2.msra.mxu0 0.0
      %2206 = vmatprep.subr.mxu0 0.0
      %2207 = vmatpush2.msra.mxu0 0.0
      %2208 = vmatprep.subr.mxu0 0.0
      %2209 = vmatpush2.msra.mxu0 0.0
      %2210 = vmatprep.subr.mxu0 0.0
      %2211 = vmatpush2.msra.mxu0 0.0
      %2212 = vmatprep.subr.mxu0 0.0
      %2213 = vmatpush2.msra.mxu0 0.0
      %2214 = vmatprep.subr.mxu0 0.0
      %2215 = vmatpush2.msra.mxu0 0.0
      %2216 = vmatprep.subr.mxu0 0.0
      %2217 = vmatpush2.msra.mxu0 0.0
      %2218 = vmatprep.subr.mxu0 0.0
      %2219 = vmatpush2.msra.mxu0 0.0
      %2220 = vmatprep.subr.mxu0 0.0
      %2221 = vmatpush2.msra.mxu0 0.0
      %2222 = vmatprep.subr.mxu0 0.0
      %2223 = vmatpush2.msra.mxu0 0.0
      %2224 = vmatprep.subr.mxu0 0.0
      %2225 = vmatpush2.msra.mxu0 0.0
      %2226 = vmatprep.subr.mxu0 0.0
      %2227 = vmatpush2.msra.mxu0 0.0
      %2228 = vmatprep.subr.mxu0 0.0
      %2229 = vmatpush2.msra.mxu0 0.0
      %2230 = vmatprep.subr.mxu0 0.0
      %2231 = vmatpush2.msra.mxu0 0.0
      %2232 = vmatprep.subr.mxu0 0.0
      %2233 = vmatpush2.msra.mxu0 0.0
      %2234 = vmatprep.mubr.f32.mxu0 0.0
      %2235 = vmatmul.mubr.f32.gmra.mxu0 %v2103
      %v2236 = vpop.f32.mrf.mxu0
      %v2237 = vadd.f32 0.0, %v2236
      %v2238 = vpop.f32.mrf.mxu0
      %2239 = vmatprep.mubr.f32.mxu0 0.0
      %2240 = vmatmul.mubr.f32.gmra.mxu0 %v2105
      %v2241 = vpop.f32.mrf.mxu0
      %v2242 = vadd.f32 0.0, %v2241
      %v2243 = vpop.f32.mrf.mxu0
      %2244 = vmatprep.mubr.f32.mxu0 0.0
      %2245 = vmatmul.mubr.f32.gmra.mxu0 %v2107
      %v2246 = vpop.f32.mrf.mxu0
      %v2247 = vadd.f32 0.0, %v2246
      %v2248 = vpop.f32.mrf.mxu0
      %2249 = vmatprep.mubr.f32.mxu0 0.0
      %2250 = vmatmul.mubr.f32.gmra.mxu0 %v2109
      %v2251 = vpop.f32.mrf.mxu0
      %v2252 = vadd.f32 0.0, %v2251
      %v2253 = vpop.f32.mrf.mxu0
      %2254 = vmatprep.mubr.f32.mxu0 0.0
      %2255 = vmatmul.mubr.f32.gmra.mxu0 %v2111
      %v2256 = vpop.f32.mrf.mxu0
      %v2257 = vadd.f32 0.0, %v2256
      %v2258 = vpop.f32.mrf.mxu0
      %2259 = vmatprep.mubr.f32.mxu0 0.0
      %2260 = vmatmul.mubr.f32.gmra.mxu0 %v2113
      %v2261 = vpop.f32.mrf.mxu0
      %v2262 = vadd.f32 0.0, %v2261
      %v2263 = vpop.f32.mrf.mxu0
      %2264 = vmatprep.mubr.f32.mxu0 0.0
      %2265 = vmatmul.mubr.f32.gmra.mxu0 %v2115
      %v2266 = vpop.f32.mrf.mxu0
      %v2267 = vadd.f32 0.0, %v2266
      %v2268 = vpop.f32.mrf.mxu0
      %2269 = vmatprep.mubr.f32.mxu0 0.0
      %2270 = vmatmul.mubr.f32.gmra.mxu0 %v2117
      %v2271 = vpop.f32.mrf.mxu0
      %v2272 = vadd.f32 0.0, %v2271
      %v2273 = vpop.f32.mrf.mxu0
      %2274 = vmatprep.mubr.f32.mxu0 0.0
      %2275 = vmatmul.mubr.f32.gmra.mxu0 %v2119
      %v2276 = vpop.f32.mrf.mxu0
      %v2277 = vadd.f32 0.0, %v2276
      %v2278 = vpop.f32.mrf.mxu0
      %2279 = vmatprep.mubr.f32.mxu0 0.0
      %2280 = vmatmul.mubr.f32.gmra.mxu0 %v2121
      %v2281 = vpop.f32.mrf.mxu0
      %v2282 = vadd.f32 0.0, %v2281
      %v2283 = vpop.f32.mrf.mxu0
      %2284 = vmatprep.mubr.f32.mxu0 0.0
      %2285 = vmatmul.mubr.f32.gmra.mxu0 %v2123
      %v2286 = vpop.f32.mrf.mxu0
      %v2287 = vadd.f32 0.0, %v2286
      %v2288 = vpop.f32.mrf.mxu0
      %2289 = vmatprep.mubr.f32.mxu0 0.0
      %2290 = vmatmul.mubr.f32.gmra.mxu0 %v2125
      %v2291 = vpop.f32.mrf.mxu0
      %v2292 = vadd.f32 0.0, %v2291
      %v2293 = vpop.f32.mrf.mxu0
      %2294 = vmatprep.mubr.f32.mxu0 0.0
      %2295 = vmatmul.mubr.f32.gmra.mxu0 %v2127
      %v2296 = vpop.f32.mrf.mxu0
      %v2297 = vadd.f32 0.0, %v2296
      %v2298 = vpop.f32.mrf.mxu0
      %2299 = vmatprep.mubr.f32.mxu0 0.0
      %2300 = vmatmul.mubr.f32.gmra.mxu0 %v2129
      %v2301 = vpop.f32.mrf.mxu0
      %v2302 = vadd.f32 0.0, %v2301
      %v2303 = vpop.f32.mrf.mxu0
      %2304 = vmatprep.mubr.f32.mxu0 0.0
      %2305 = vmatmul.mubr.f32.gmra.mxu0 %v2131
      %v2306 = vpop.f32.mrf.mxu0
      %v2307 = vadd.f32 0.0, %v2306
      %v2308 = vpop.f32.mrf.mxu0
      %2309 = vmatprep.mubr.f32.mxu0 0.0
      %2310 = vmatmul.mubr.f32.gmra.mxu0 %v2133
      %v2311 = vpop.f32.mrf.mxu0
      %v2312 = vadd.f32 0.0, %v2311
      %v2313 = vpop.f32.mrf.mxu0
      %2314 = vmatprep.mubr.f32.mxu0 0.0
      %2315 = vmatmul.mubr.f32.gmra.mxu0 %v2135
      %v2316 = vpop.f32.mrf.mxu0
      %v2317 = vadd.f32 0.0, %v2316
      %v2318 = vpop.f32.mrf.mxu0
      %2319 = vmatprep.mubr.f32.mxu0 0.0
      %2320 = vmatmul.mubr.f32.gmra.mxu0 %v2137
      %v2321 = vpop.f32.mrf.mxu0
      %v2322 = vadd.f32 0.0, %v2321
      %v2323 = vpop.f32.mrf.mxu0
      %2324 = vmatprep.mubr.f32.mxu0 0.0
      %2325 = vmatmul.mubr.f32.gmra.mxu0 %v2139
      %v2326 = vpop.f32.mrf.mxu0
      %v2327 = vadd.f32 0.0, %v2326
      %v2328 = vpop.f32.mrf.mxu0
      %2329 = vmatprep.mubr.f32.mxu0 0.0
      %2330 = vmatmul.mubr.f32.gmra.mxu0 %v2141
      %v2331 = vpop.f32.mrf.mxu0
      %v2332 = vadd.f32 0.0, %v2331
      %v2333 = vpop.f32.mrf.mxu0
      %2334 = vmatprep.mubr.f32.mxu0 0.0
      %2335 = vmatmul.mubr.f32.gmra.mxu0 %v2143
      %v2336 = vpop.f32.mrf.mxu0
      %v2337 = vadd.f32 0.0, %v2336
      %v2338 = vpop.f32.mrf.mxu0
      %2339 = vmatprep.mubr.f32.mxu0 0.0
      %2340 = vmatmul.mubr.f32.gmra.mxu0 %v2145
      %v2341 = vpop.f32.mrf.mxu0
      %v2342 = vadd.f32 0.0, %v2341
      %v2343 = vpop.f32.mrf.mxu0
      %2344 = vmatprep.mubr.f32.mxu0 0.0
      %2345 = vmatmul.mubr.f32.gmra.mxu0 %v2147
      %v2346 = vpop.f32.mrf.mxu0
      %v2347 = vadd.f32 0.0, %v2346
      %v2348 = vpop.f32.mrf.mxu0
      %2349 = vmatprep.mubr.f32.mxu0 0.0
      %2350 = vmatmul.mubr.f32.gmra.mxu0 %v2149
      %v2351 = vpop.f32.mrf.mxu0
      %v2352 = vadd.f32 0.0, %v2351
      %v2353 = vpop.f32.mrf.mxu0
      %2354 = vmatprep.mubr.f32.mxu0 0.0
      %2355 = vmatmul.mubr.f32.gmra.mxu0 %v2151
      %v2356 = vpop.f32.mrf.mxu0
      %v2357 = vadd.f32 0.0, %v2356
      %v2358 = vpop.f32.mrf.mxu0
      %2359 = vmatprep.mubr.f32.mxu0 0.0
      %2360 = vmatmul.mubr.f32.gmra.mxu0 %v2153
      %v2361 = vpop.f32.mrf.mxu0
      %v2362 = vadd.f32 0.0, %v2361
      %v2363 = vpop.f32.mrf.mxu0
      %2364 = vmatprep.mubr.f32.mxu0 0.0
      %2365 = vmatmul.mubr.f32.gmra.mxu0 %v2155
      %v2366 = vpop.f32.mrf.mxu0
      %v2367 = vadd.f32 0.0, %v2366
      %v2368 = vpop.f32.mrf.mxu0
      %2369 = vmatprep.mubr.f32.mxu0 0.0
      %2370 = vmatmul.mubr.f32.gmra.mxu0 %v2157
      %v2371 = vpop.f32.mrf.mxu0
      %v2372 = vadd.f32 0.0, %v2371
      %v2373 = vpop.f32.mrf.mxu0
      %2374 = vmatprep.mubr.f32.mxu0 0.0
      %2375 = vmatmul.mubr.f32.gmra.mxu0 %v2159
      %v2376 = vpop.f32.mrf.mxu0
      %v2377 = vadd.f32 0.0, %v2376
      %v2378 = vpop.f32.mrf.mxu0
      %2379 = vmatprep.mubr.f32.mxu0 0.0
      %2380 = vmatmul.mubr.f32.gmra.mxu0 %v2161
      %v2381 = vpop.f32.mrf.mxu0
      %v2382 = vadd.f32 0.0, %v2381
      %v2383 = vpop.f32.mrf.mxu0
      %2384 = vmatprep.mubr.f32.mxu0 0.0
      %2385 = vmatmul.mubr.f32.gmra.mxu0 %v2163
      %v2386 = vpop.f32.mrf.mxu0
      %v2387 = vadd.f32 0.0, %v2386
      %v2388 = vpop.f32.mrf.mxu0
      %2389 = vmatprep.mubr.f32.mxu0 0.0
      %2390 = vmatmul.mubr.f32.gmra.mxu0 %v2165
      %v2391 = vpop.f32.mrf.mxu0
      %v2392 = vadd.f32 0.0, %v2391
      %v2393 = vpop.f32.mrf.mxu0
      %2394 = vdwg.mxu0
      %v2396 = vsel %vm853, %v779, 0
      %v2399 = vsel %vm853, %v780, 0
      %v2402 = vsel %vm853, %v781, 0
      %v2405 = vsel %vm853, %v782, 0
      %v2408 = vsel %vm853, %v783, 0
      %v2411 = vsel %vm853, %v784, 0
      %v2414 = vsel %vm853, %v785, 0
      %v2417 = vsel %vm853, %v786, 0
      %v2420 = vsel %vm853, %v787, 0
      %v2423 = vsel %vm853, %v788, 0
      %v2426 = vsel %vm853, %v789, 0
      %v2429 = vsel %vm853, %v790, 0
      %v2432 = vsel %vm853, %v791, 0
      %v2435 = vsel %vm853, %v792, 0
      %v2438 = vsel %vm853, %v793, 0
      %v2441 = vsel %vm853, %v794, 0
      %v2444 = vsel %vm853, %v795, 0
      %v2447 = vsel %vm853, %v796, 0
      %v2450 = vsel %vm853, %v797, 0
      %v2453 = vsel %vm853, %v798, 0
      %v2456 = vsel %vm853, %v799, 0
      %v2459 = vsel %vm853, %v800, 0
      %v2462 = vsel %vm853, %v801, 0
      %v2465 = vsel %vm853, %v802, 0
      %v2468 = vsel %vm853, %v803, 0
      %v2471 = vsel %vm853, %v804, 0
      %v2474 = vsel %vm853, %v805, 0
      %v2477 = vsel %vm853, %v806, 0
      %v2480 = vsel %vm853, %v807, 0
      %v2483 = vsel %vm853, %v808, 0
      %v2486 = vsel %vm853, %v809, 0
      %v2489 = vsel %vm853, %v810, 0
      %v2492 = vsel %vm1795, %v811, 0
      %2494 = vmatprep.subr.mxu0 0.0
      %2495 = vmatpush1.msra.mxu0 0.0
      %2496 = vmatprep.subr.mxu0 0.0
      %2497 = vmatpush1.msra.mxu0 0.0
      %2498 = vmatprep.subr.mxu0 0.0
      %2499 = vmatpush1.msra.mxu0 0.0
      %2500 = vmatprep.subr.mxu0 0.0
      %2501 = vmatpush1.msra.mxu0 0.0
      %2502 = vmatprep.subr.mxu0 0.0
      %2503 = vmatpush1.msra.mxu0 0.0
      %2504 = vmatprep.subr.mxu0 0.0
      %2505 = vmatpush1.msra.mxu0 0.0
      %2506 = vmatprep.subr.mxu0 0.0
      %2507 = vmatpush1.msra.mxu0 0.0
      %2508 = vmatprep.subr.mxu0 0.0
      %2509 = vmatpush1.msra.mxu0 0.0
      %2510 = vmatprep.subr.mxu0 0.0
      %2511 = vmatpush1.msra.mxu0 0.0
      %2512 = vmatprep.subr.mxu0 0.0
      %2513 = vmatpush1.msra.mxu0 0.0
      %2514 = vmatprep.subr.mxu0 0.0
      %2515 = vmatpush1.msra.mxu0 0.0
      %2516 = vmatprep.subr.mxu0 0.0
      %2517 = vmatpush1.msra.mxu0 0.0
      %2518 = vmatprep.subr.mxu0 0.0
      %2519 = vmatpush1.msra.mxu0 0.0
      %2520 = vmatprep.subr.mxu0 0.0
      %2521 = vmatpush1.msra.mxu0 0.0
      %2522 = vmatprep.subr.mxu0 0.0
      %2523 = vmatpush1.msra.mxu0 0.0
      %2524 = vmatprep.subr.mxu0 0.0
      %2525 = vmatpush1.msra.mxu0 %v2492
      %2526 = vmatprep.subr.mxu0 0.0
      %2527 = vmatpush2.msra.mxu0 0.0
      %2528 = vmatprep.subr.mxu0 0.0
      %2529 = vmatpush2.msra.mxu0 0.0
      %2530 = vmatprep.subr.mxu0 0.0
      %2531 = vmatpush2.msra.mxu0 0.0
      %2532 = vmatprep.subr.mxu0 0.0
      %2533 = vmatpush2.msra.mxu0 0.0
      %2534 = vmatprep.subr.mxu0 0.0
      %2535 = vmatpush2.msra.mxu0 0.0
      %2536 = vmatprep.subr.mxu0 0.0
      %2537 = vmatpush2.msra.mxu0 0.0
      %2538 = vmatprep.subr.mxu0 0.0
      %2539 = vmatpush2.msra.mxu0 0.0
      %2540 = vmatprep.subr.mxu0 0.0
      %2541 = vmatpush2.msra.mxu0 0.0
      %2542 = vmatprep.subr.mxu0 0.0
      %2543 = vmatpush2.msra.mxu0 0.0
      %2544 = vmatprep.subr.mxu0 0.0
      %2545 = vmatpush2.msra.mxu0 0.0
      %2546 = vmatprep.subr.mxu0 0.0
      %2547 = vmatpush2.msra.mxu0 0.0
      %2548 = vmatprep.subr.mxu0 0.0
      %2549 = vmatpush2.msra.mxu0 0.0
      %2550 = vmatprep.subr.mxu0 0.0
      %2551 = vmatpush2.msra.mxu0 0.0
      %2552 = vmatprep.subr.mxu0 0.0
      %2553 = vmatpush2.msra.mxu0 0.0
      %2554 = vmatprep.subr.mxu0 0.0
      %2555 = vmatpush2.msra.mxu0 0.0
      %2556 = vmatprep.subr.mxu0 0.0
      %2557 = vmatpush2.msra.mxu0 0.0
      %2558 = vmatprep.mubr.f32.mxu0 0.0
      %2559 = vmatmul.mubr.f32.gmra.mxu0 %v2396
      %v2560 = vpop.f32.mrf.mxu0
      %v2561 = vadd.f32 %v2237, %v2560
      %v2562 = vpop.f32.mrf.mxu0
      %2563 = vmatprep.mubr.f32.mxu0 0.0
      %2564 = vmatmul.mubr.f32.gmra.mxu0 %v2399
      %v2565 = vpop.f32.mrf.mxu0
      %v2566 = vadd.f32 %v2242, %v2565
      %v2567 = vpop.f32.mrf.mxu0
      %2568 = vmatprep.mubr.f32.mxu0 0.0
      %2569 = vmatmul.mubr.f32.gmra.mxu0 %v2402
      %v2570 = vpop.f32.mrf.mxu0
      %v2571 = vadd.f32 %v2247, %v2570
      %v2572 = vpop.f32.mrf.mxu0
      %2573 = vmatprep.mubr.f32.mxu0 0.0
      %2574 = vmatmul.mubr.f32.gmra.mxu0 %v2405
      %v2575 = vpop.f32.mrf.mxu0
      %v2576 = vadd.f32 %v2252, %v2575
      %v2577 = vpop.f32.mrf.mxu0
      %2578 = vmatprep.mubr.f32.mxu0 0.0
      %2579 = vmatmul.mubr.f32.gmra.mxu0 %v2408
      %v2580 = vpop.f32.mrf.mxu0
      %v2581 = vadd.f32 %v2257, %v2580
      %v2582 = vpop.f32.mrf.mxu0
      %2583 = vmatprep.mubr.f32.mxu0 0.0
      %2584 = vmatmul.mubr.f32.gmra.mxu0 %v2411
      %v2585 = vpop.f32.mrf.mxu0
      %v2586 = vadd.f32 %v2262, %v2585
      %v2587 = vpop.f32.mrf.mxu0
      %2588 = vmatprep.mubr.f32.mxu0 0.0
      %2589 = vmatmul.mubr.f32.gmra.mxu0 %v2414
      %v2590 = vpop.f32.mrf.mxu0
      %v2591 = vadd.f32 %v2267, %v2590
      %v2592 = vpop.f32.mrf.mxu0
      %2593 = vmatprep.mubr.f32.mxu0 0.0
      %2594 = vmatmul.mubr.f32.gmra.mxu0 %v2417
      %v2595 = vpop.f32.mrf.mxu0
      %v2596 = vadd.f32 %v2272, %v2595
      %v2597 = vpop.f32.mrf.mxu0
      %2598 = vmatprep.mubr.f32.mxu0 0.0
      %2599 = vmatmul.mubr.f32.gmra.mxu0 %v2420
      %v2600 = vpop.f32.mrf.mxu0
      %v2601 = vadd.f32 %v2277, %v2600
      %v2602 = vpop.f32.mrf.mxu0
      %2603 = vmatprep.mubr.f32.mxu0 0.0
      %2604 = vmatmul.mubr.f32.gmra.mxu0 %v2423
      %v2605 = vpop.f32.mrf.mxu0
      %v2606 = vadd.f32 %v2282, %v2605
      %v2607 = vpop.f32.mrf.mxu0
      %2608 = vmatprep.mubr.f32.mxu0 0.0
      %2609 = vmatmul.mubr.f32.gmra.mxu0 %v2426
      %v2610 = vpop.f32.mrf.mxu0
      %v2611 = vadd.f32 %v2287, %v2610
      %v2612 = vpop.f32.mrf.mxu0
      %2613 = vmatprep.mubr.f32.mxu0 0.0
      %2614 = vmatmul.mubr.f32.gmra.mxu0 %v2429
      %v2615 = vpop.f32.mrf.mxu0
      %v2616 = vadd.f32 %v2292, %v2615
      %v2617 = vpop.f32.mrf.mxu0
      %2618 = vmatprep.mubr.f32.mxu0 0.0
      %2619 = vmatmul.mubr.f32.gmra.mxu0 %v2432
      %v2620 = vpop.f32.mrf.mxu0
      %v2621 = vadd.f32 %v2297, %v2620
      %v2622 = vpop.f32.mrf.mxu0
      %2623 = vmatprep.mubr.f32.mxu0 0.0
      %2624 = vmatmul.mubr.f32.gmra.mxu0 %v2435
      %v2625 = vpop.f32.mrf.mxu0
      %v2626 = vadd.f32 %v2302, %v2625
      %v2627 = vpop.f32.mrf.mxu0
      %2628 = vmatprep.mubr.f32.mxu0 0.0
      %2629 = vmatmul.mubr.f32.gmra.mxu0 %v2438
      %v2630 = vpop.f32.mrf.mxu0
      %v2631 = vadd.f32 %v2307, %v2630
      %v2632 = vpop.f32.mrf.mxu0
      %2633 = vmatprep.mubr.f32.mxu0 0.0
      %2634 = vmatmul.mubr.f32.gmra.mxu0 %v2441
      %v2635 = vpop.f32.mrf.mxu0
      %v2636 = vadd.f32 %v2312, %v2635
      %v2637 = vpop.f32.mrf.mxu0
      %2638 = vmatprep.mubr.f32.mxu0 0.0
      %2639 = vmatmul.mubr.f32.gmra.mxu0 %v2444
      %v2640 = vpop.f32.mrf.mxu0
      %v2641 = vadd.f32 %v2317, %v2640
      %v2642 = vpop.f32.mrf.mxu0
      %2643 = vmatprep.mubr.f32.mxu0 0.0
      %2644 = vmatmul.mubr.f32.gmra.mxu0 %v2447
      %v2645 = vpop.f32.mrf.mxu0
      %v2646 = vadd.f32 %v2322, %v2645
      %v2647 = vpop.f32.mrf.mxu0
      %2648 = vmatprep.mubr.f32.mxu0 0.0
      %2649 = vmatmul.mubr.f32.gmra.mxu0 %v2450
      %v2650 = vpop.f32.mrf.mxu0
      %v2651 = vadd.f32 %v2327, %v2650
      %v2652 = vpop.f32.mrf.mxu0
      %2653 = vmatprep.mubr.f32.mxu0 0.0
      %2654 = vmatmul.mubr.f32.gmra.mxu0 %v2453
      %v2655 = vpop.f32.mrf.mxu0
      %v2656 = vadd.f32 %v2332, %v2655
      %v2657 = vpop.f32.mrf.mxu0
      %2658 = vmatprep.mubr.f32.mxu0 0.0
      %2659 = vmatmul.mubr.f32.gmra.mxu0 %v2456
      %v2660 = vpop.f32.mrf.mxu0
      %v2661 = vadd.f32 %v2337, %v2660
      %v2662 = vpop.f32.mrf.mxu0
      %2663 = vmatprep.mubr.f32.mxu0 0.0
      %2664 = vmatmul.mubr.f32.gmra.mxu0 %v2459
      %v2665 = vpop.f32.mrf.mxu0
      %v2666 = vadd.f32 %v2342, %v2665
      %v2667 = vpop.f32.mrf.mxu0
      %2668 = vmatprep.mubr.f32.mxu0 0.0
      %2669 = vmatmul.mubr.f32.gmra.mxu0 %v2462
      %v2670 = vpop.f32.mrf.mxu0
      %v2671 = vadd.f32 %v2347, %v2670
      %v2672 = vpop.f32.mrf.mxu0
      %2673 = vmatprep.mubr.f32.mxu0 0.0
      %2674 = vmatmul.mubr.f32.gmra.mxu0 %v2465
      %v2675 = vpop.f32.mrf.mxu0
      %v2676 = vadd.f32 %v2352, %v2675
      %v2677 = vpop.f32.mrf.mxu0
      %2678 = vmatprep.mubr.f32.mxu0 0.0
      %2679 = vmatmul.mubr.f32.gmra.mxu0 %v2468
      %v2680 = vpop.f32.mrf.mxu0
      %v2681 = vadd.f32 %v2357, %v2680
      %v2682 = vpop.f32.mrf.mxu0
      %2683 = vmatprep.mubr.f32.mxu0 0.0
      %2684 = vmatmul.mubr.f32.gmra.mxu0 %v2471
      %v2685 = vpop.f32.mrf.mxu0
      %v2686 = vadd.f32 %v2362, %v2685
      %v2687 = vpop.f32.mrf.mxu0
      %2688 = vmatprep.mubr.f32.mxu0 0.0
      %2689 = vmatmul.mubr.f32.gmra.mxu0 %v2474
      %v2690 = vpop.f32.mrf.mxu0
      %v2691 = vadd.f32 %v2367, %v2690
      %v2692 = vpop.f32.mrf.mxu0
      %2693 = vmatprep.mubr.f32.mxu0 0.0
      %2694 = vmatmul.mubr.f32.gmra.mxu0 %v2477
      %v2695 = vpop.f32.mrf.mxu0
      %v2696 = vadd.f32 %v2372, %v2695
      %v2697 = vpop.f32.mrf.mxu0
      %2698 = vmatprep.mubr.f32.mxu0 0.0
      %2699 = vmatmul.mubr.f32.gmra.mxu0 %v2480
      %v2700 = vpop.f32.mrf.mxu0
      %v2701 = vadd.f32 %v2377, %v2700
      %v2702 = vpop.f32.mrf.mxu0
      %2703 = vmatprep.mubr.f32.mxu0 0.0
      %2704 = vmatmul.mubr.f32.gmra.mxu0 %v2483
      %v2705 = vpop.f32.mrf.mxu0
      %v2706 = vadd.f32 %v2382, %v2705
      %v2707 = vpop.f32.mrf.mxu0
      %2708 = vmatprep.mubr.f32.mxu0 0.0
      %2709 = vmatmul.mubr.f32.gmra.mxu0 %v2486
      %v2710 = vpop.f32.mrf.mxu0
      %v2711 = vadd.f32 %v2387, %v2710
      %v2712 = vpop.f32.mrf.mxu0
      %2713 = vmatprep.mubr.f32.mxu0 0.0
      %2714 = vmatmul.mubr.f32.gmra.mxu0 %v2489
      %v2715 = vpop.f32.mrf.mxu0
      %v2716 = vadd.f32 %v2392, %v2715
      %v2717 = vpop.f32.mrf.mxu0
      %2718 = vdwg.mxu0
      %vm2719 = vcmask 31750
      %2720 = vst.msk [vmem:[%s863 + $0x2] sm:$0xc0] %vm2719, %v1924
      %2721 = vst.msk [vmem:[%s863 + $0xa] sm:$0xff] %vm853, %v1925
      %vm2722 = vcmask 29696
      %2723 = vst.msk [vmem:[%s863 + $0x12] sm:$0x3f] %vm2722, %v1926
      %2724 = vst.msk [vmem:[%s863 + $0x22] sm:$0xc0] %vm2719, %v1927
      %2725 = vst.msk [vmem:[%s863 + $0x2a] sm:$0xff] %vm853, %v1928
      %2726 = vst.msk [vmem:[%s863 + $0x32] sm:$0x3f] %vm2722, %v1929
      %2727 = vst.msk [vmem:[%s863 + $0x42] sm:$0xc0] %vm2719, %v1930
      %2728 = vst.msk [vmem:[%s863 + $0x4a] sm:$0xff] %vm853, %v1931
      %2729 = vst.msk [vmem:[%s863 + $0x52] sm:$0x3f] %vm2722, %v1932
      %2730 = vst.msk [vmem:[%s863 + $0x62] sm:$0xc0] %vm2719, %v1933
      %2731 = vst.msk [vmem:[%s863 + $0x6a] sm:$0xff] %vm853, %v1934
      %2732 = vst.msk [vmem:[%s863 + $0x72] sm:$0x3f] %vm2722, %v1935
      %2733 = vst.msk [vmem:[%s863 + $0x82] sm:$0xc0] %vm2719, %v1936
      %2734 = vst.msk [vmem:[%s863 + $0x8a] sm:$0xff] %vm853, %v1937
      %2735 = vst.msk [vmem:[%s863 + $0x92] sm:$0x3f] %vm2722, %v1938
      %2736 = vst.msk [vmem:[%s863 + $0xa2] sm:$0xc0] %vm2719, %v1939
      %2737 = vst.msk [vmem:[%s863 + $0xaa] sm:$0xff] %vm853, %v1940
      %2738 = vst.msk [vmem:[%s863 + $0xb2] sm:$0x3f] %vm2722, %v1941
      %2739 = vst.msk [vmem:[%s863 + $0xc2] sm:$0xc0] %vm2719, %v1942
      %2740 = vst.msk [vmem:[%s863 + $0xca] sm:$0xff] %vm853, %v1943
      %2741 = vst.msk [vmem:[%s863 + $0xd2] sm:$0x3f] %vm2722, %v1944
      %2742 = vst.msk [vmem:[%s863 + $0xe2] sm:$0xc0] %vm2719, %v1945
      %2743 = vst.msk [vmem:[%s863 + $0xea] sm:$0xff] %vm853, %v1946
      %2744 = vst.msk [vmem:[%s863 + $0xf2] sm:$0x3f] %vm2722, %v1947
      %2745 = vst.msk [vmem:[%s863 + $0x102] sm:$0xc0] %vm2719, %v1948
      %2746 = vst.msk [vmem:[%s863 + $0x10a] sm:$0xff] %vm853, %v1949
      %2747 = vst.msk [vmem:[%s863 + $0x112] sm:$0x3f] %vm2722, %v1950
      %2748 = vst.msk [vmem:[%s863 + $0x122] sm:$0xc0] %vm2719, %v1951
      %2749 = vst.msk [vmem:[%s863 + $0x12a] sm:$0xff] %vm853, %v1952
      %2750 = vst.msk [vmem:[%s863 + $0x132] sm:$0x3f] %vm2722, %v1953
      %2751 = vst.msk [vmem:[%s863 + $0x142] sm:$0xc0] %vm2719, %v1954
      %2752 = vst.msk [vmem:[%s863 + $0x14a] sm:$0xff] %vm853, %v1955
      %2753 = vst.msk [vmem:[%s863 + $0x152] sm:$0x3f] %vm2722, %v1956
      %2754 = vst.msk [vmem:[%s863 + $0x162] sm:$0xc0] %vm2719, %v1957
      %2755 = vst.msk [vmem:[%s863 + $0x16a] sm:$0xff] %vm853, %v1958
      %2756 = vst.msk [vmem:[%s863 + $0x172] sm:$0x3f] %vm2722, %v1959
      %2757 = vst.msk [vmem:[%s863 + $0x182] sm:$0xc0] %vm2719, %v1960
      %2758 = vst.msk [vmem:[%s863 + $0x18a] sm:$0xff] %vm853, %v1961
      %2759 = vst.msk [vmem:[%s863 + $0x192] sm:$0x3f] %vm2722, %v1962
      %2760 = vst.msk [vmem:[%s863 + $0x1a2] sm:$0xc0] %vm2719, %v1963
      %2761 = vst.msk [vmem:[%s863 + $0x1aa] sm:$0xff] %vm853, %v1964
      %2762 = vst.msk [vmem:[%s863 + $0x1b2] sm:$0x3f] %vm2722, %v1965
      %2763 = vst.msk [vmem:[%s863 + $0x1c2] sm:$0xc0] %vm2719, %v1966
      %2764 = vst.msk [vmem:[%s863 + $0x1ca] sm:$0xff] %vm853, %v1967
      %2765 = vst.msk [vmem:[%s863 + $0x1d2] sm:$0x3f] %vm2722, %v1968
      %2766 = vst.msk [vmem:[%s863 + $0x1e2] sm:$0xc0] %vm2719, %v1969
      %2767 = vst.msk [vmem:[%s863 + $0x1ea] sm:$0xff] %vm853, %v1970
      %2768 = vst.msk [vmem:[%s863 + $0x1f2] sm:$0x3f] %vm2722, %v1971
      %v2769 = vld [vmem:[#allocation2] sm:$0xff]
      %v2770 = vld [vmem:[#allocation2 + $0x8] sm:$0xff]
      %v2771 = vld [vmem:[#allocation2 + $0x10] sm:$0xff]
      %v2772 = vld [vmem:[#allocation2 + $0x18] sm:$0xff]
      %v2773 = vld [vmem:[#allocation2 + $0x20] sm:$0xff]
      %v2774 = vld [vmem:[#allocation2 + $0x28] sm:$0xff]
      %v2775 = vld [vmem:[#allocation2 + $0x30] sm:$0xff]
      %v2776 = vld [vmem:[#allocation2 + $0x38] sm:$0xff]
      %v2777 = vld [vmem:[#allocation2 + $0x40] sm:$0xff]
      %v2778 = vld [vmem:[#allocation2 + $0x48] sm:$0xff]
      %v2779 = vld [vmem:[#allocation2 + $0x50] sm:$0xff]
      %v2780 = vld [vmem:[#allocation2 + $0x58] sm:$0xff]
      %v2781 = vld [vmem:[#allocation2 + $0x60] sm:$0xff]
      %v2782 = vld [vmem:[#allocation2 + $0x68] sm:$0xff]
      %v2783 = vld [vmem:[#allocation2 + $0x70] sm:$0xff]
      %v2784 = vld [vmem:[#allocation2 + $0x78] sm:$0xff]
      %v2785 = vld [vmem:[#allocation2 + $0x80] sm:$0xff]
      %v2786 = vld [vmem:[#allocation2 + $0x88] sm:$0xff]
      %v2787 = vld [vmem:[#allocation2 + $0x90] sm:$0xff]
      %v2788 = vld [vmem:[#allocation2 + $0x98] sm:$0xff]
      %v2789 = vld [vmem:[#allocation2 + $0xa0] sm:$0xff]
      %v2790 = vld [vmem:[#allocation2 + $0xa8] sm:$0xff]
      %v2791 = vld [vmem:[#allocation2 + $0xb0] sm:$0xff]
      %v2792 = vld [vmem:[#allocation2 + $0xb8] sm:$0xff]
      %v2793 = vld [vmem:[#allocation2 + $0xc0] sm:$0xff]
      %v2794 = vld [vmem:[#allocation2 + $0xc8] sm:$0xff]
      %v2795 = vld [vmem:[#allocation2 + $0xd0] sm:$0xff]
      %v2796 = vld [vmem:[#allocation2 + $0xd8] sm:$0xff]
      %v2797 = vld [vmem:[#allocation2 + $0xe0] sm:$0xff]
      %v2798 = vld [vmem:[#allocation2 + $0xe8] sm:$0xff]
      %v2799 = vld [vmem:[#allocation2 + $0xf0] sm:$0xff]
      %v2800 = vld [vmem:[#allocation2 + $0xf8] sm:$0xff]
      %v2801 = vld [vmem:[#allocation2 + $0x100] sm:$0xff]
      %v2802 = vld [vmem:[#allocation2 + $0x108] sm:$0xff]
      %v2803 = vld [vmem:[#allocation2 + $0x110] sm:$0xff]
      %v2804 = vld [vmem:[#allocation2 + $0x118] sm:$0xff]
      %v2805 = vld [vmem:[#allocation2 + $0x120] sm:$0xff]
      %v2806 = vld [vmem:[#allocation2 + $0x128] sm:$0xff]
      %v2807 = vld [vmem:[#allocation2 + $0x130] sm:$0xff]
      %v2808 = vld [vmem:[#allocation2 + $0x138] sm:$0xff]
      %v2809 = vld [vmem:[#allocation2 + $0x140] sm:$0xff]
      %v2810 = vld [vmem:[#allocation2 + $0x148] sm:$0xff]
      %v2811 = vld [vmem:[#allocation2 + $0x150] sm:$0xff]
      %v2812 = vld [vmem:[#allocation2 + $0x158] sm:$0xff]
      %v2813 = vld [vmem:[#allocation2 + $0x160] sm:$0xff]
      %v2814 = vld [vmem:[#allocation2 + $0x168] sm:$0xff]
      %v2815 = vld [vmem:[#allocation2 + $0x170] sm:$0xff]
      %v2816 = vld [vmem:[#allocation2 + $0x178] sm:$0xff]
      %v2817 = vld [vmem:[#allocation2 + $0x180] sm:$0xff]
      %v2818 = vld [vmem:[#allocation2 + $0x188] sm:$0xff]
      %v2819 = vld [vmem:[#allocation2 + $0x190] sm:$0xff]
      %v2820 = vld [vmem:[#allocation2 + $0x198] sm:$0xff]
      %v2821 = vld [vmem:[#allocation2 + $0x1a0] sm:$0xff]
      %v2822 = vld [vmem:[#allocation2 + $0x1a8] sm:$0xff]
      %v2823 = vld [vmem:[#allocation2 + $0x1b0] sm:$0xff]
      %v2824 = vld [vmem:[#allocation2 + $0x1b8] sm:$0xff]
      %v2825 = vld [vmem:[#allocation2 + $0x1c0] sm:$0xff]
      %v2826 = vld [vmem:[#allocation2 + $0x1c8] sm:$0xff]
      %v2827 = vld [vmem:[#allocation2 + $0x1d0] sm:$0xff]
      %v2828 = vld [vmem:[#allocation2 + $0x1d8] sm:$0xff]
      %v2829 = vld [vmem:[#allocation2 + $0x1e0] sm:$0xff]
      %v2830 = vld [vmem:[#allocation2 + $0x1e8] sm:$0xff]
      %v2831 = vld [vmem:[#allocation2 + $0x1f0] sm:$0xff]
      %v2832 = vld [vmem:[#allocation2 + $0x1f8] sm:$0xff]
      %v2833 = vld [vmem:[#allocation2 + $0x200] sm:$0xff]
      %v2834 = vld [vmem:[#allocation2 + $0x208] sm:$0xff]
      %v2835 = vld [vmem:[#allocation2 + $0x210] sm:$0xff]
      %v2836 = vld [vmem:[#allocation2 + $0x218] sm:$0xff]
      %v2837 = vld [vmem:[#allocation2 + $0x220] sm:$0xff]
      %v2838 = vld [vmem:[#allocation2 + $0x228] sm:$0xff]
      %v2839 = vld [vmem:[#allocation2 + $0x230] sm:$0xff]
      %v2840 = vld [vmem:[#allocation2 + $0x238] sm:$0xff]
      %v2841 = vld [vmem:[#allocation2 + $0x240] sm:$0xff]
      %v2842 = vld [vmem:[#allocation2 + $0x248] sm:$0xff]
      %v2843 = vld [vmem:[#allocation2 + $0x250] sm:$0xff]
      %v2844 = vld [vmem:[#allocation2 + $0x258] sm:$0xff]
      %v2845 = vld [vmem:[#allocation2 + $0x260] sm:$0xff]
      %v2846 = vld [vmem:[#allocation2 + $0x268] sm:$0xff]
      %v2847 = vld [vmem:[#allocation2 + $0x270] sm:$0xff]
      %v2848 = vld [vmem:[#allocation2 + $0x278] sm:$0xff]
      %v2849 = vmax.f32 %v2769, %v2773
      %v2850 = vmax.f32 %v2770, %v2774
      %v2851 = vmax.f32 %v2771, %v2775
      %v2852 = vmax.f32 %v2772, %v2776
      %v2853 = vmax.f32 %v2773, %v2777
      %v2854 = vmax.f32 %v2774, %v2778
      %v2855 = vmax.f32 %v2775, %v2779
      %v2856 = vmax.f32 %v2776, %v2780
      %v2857 = vmax.f32 %v2777, %v2781
      %v2858 = vmax.f32 %v2778, %v2782
      %v2859 = vmax.f32 %v2779, %v2783
      %v2860 = vmax.f32 %v2780, %v2784
      %v2861 = vmax.f32 %v2781, %v2785
      %v2862 = vmax.f32 %v2782, %v2786
      %v2863 = vmax.f32 %v2783, %v2787
      %v2864 = vmax.f32 %v2784, %v2788
      %v2865 = vmax.f32 %v2785, %v2789
      %v2866 = vmax.f32 %v2786, %v2790
      %v2867 = vmax.f32 %v2787, %v2791
      %v2868 = vmax.f32 %v2788, %v2792
      %v2869 = vmax.f32 %v2789, %v2793
      %v2870 = vmax.f32 %v2790, %v2794
      %v2871 = vmax.f32 %v2791, %v2795
      %v2872 = vmax.f32 %v2792, %v2796
      %v2873 = vmax.f32 %v2793, %v2797
      %v2874 = vmax.f32 %v2794, %v2798
      %v2875 = vmax.f32 %v2795, %v2799
      %v2876 = vmax.f32 %v2796, %v2800
      %v2877 = vmax.f32 %v2797, %v2801
      %v2878 = vmax.f32 %v2798, %v2802
      %v2879 = vmax.f32 %v2799, %v2803
      %v2880 = vmax.f32 %v2800, %v2804
      %v2881 = vmax.f32 %v2801, %v2805
      %v2882 = vmax.f32 %v2802, %v2806
      %v2883 = vmax.f32 %v2803, %v2807
      %v2884 = vmax.f32 %v2804, %v2808
      %v2885 = vmax.f32 %v2805, %v2809
      %v2886 = vmax.f32 %v2806, %v2810
      %v2887 = vmax.f32 %v2807, %v2811
      %v2888 = vmax.f32 %v2808, %v2812
      %v2889 = vmax.f32 %v2809, %v2813
      %v2890 = vmax.f32 %v2810, %v2814
      %v2891 = vmax.f32 %v2811, %v2815
      %v2892 = vmax.f32 %v2812, %v2816
      %v2893 = vmax.f32 %v2813, %v2817
      %v2894 = vmax.f32 %v2814, %v2818
      %v2895 = vmax.f32 %v2815, %v2819
      %v2896 = vmax.f32 %v2816, %v2820
      %v2897 = vmax.f32 %v2817, %v2821
      %v2898 = vmax.f32 %v2818, %v2822
      %v2899 = vmax.f32 %v2819, %v2823
      %v2900 = vmax.f32 %v2820, %v2824
      %v2901 = vmax.f32 %v2821, %v2825
      %v2902 = vmax.f32 %v2822, %v2826
      %v2903 = vmax.f32 %v2823, %v2827
      %v2904 = vmax.f32 %v2824, %v2828
      %v2905 = vmax.f32 %v2825, %v2829
      %v2906 = vmax.f32 %v2826, %v2830
      %v2907 = vmax.f32 %v2827, %v2831
      %v2908 = vmax.f32 %v2828, %v2832
      %v2909 = vmax.f32 %v2829, %v2833
      %v2910 = vmax.f32 %v2830, %v2834
      %v2911 = vmax.f32 %v2831, %v2835
      %v2912 = vmax.f32 %v2832, %v2836
      %v2913 = vmax.f32 %v2849, %v2777
      %v2914 = vmax.f32 %v2850, %v2778
      %v2915 = vmax.f32 %v2851, %v2779
      %v2916 = vmax.f32 %v2852, %v2780
      %v2917 = vmax.f32 %v2853, %v2781
      %v2918 = vmax.f32 %v2854, %v2782
      %v2919 = vmax.f32 %v2855, %v2783
      %v2920 = vmax.f32 %v2856, %v2784
      %v2921 = vmax.f32 %v2857, %v2785
      %v2922 = vmax.f32 %v2858, %v2786
      %v2923 = vmax.f32 %v2859, %v2787
      %v2924 = vmax.f32 %v2860, %v2788
      %v2925 = vmax.f32 %v2861, %v2789
      %v2926 = vmax.f32 %v2862, %v2790
      %v2927 = vmax.f32 %v2863, %v2791
      %v2928 = vmax.f32 %v2864, %v2792
      %v2929 = vmax.f32 %v2865, %v2793
      %v2930 = vmax.f32 %v2866, %v2794
      %v2931 = vmax.f32 %v2867, %v2795
      %v2932 = vmax.f32 %v2868, %v2796
      %v2933 = vmax.f32 %v2869, %v2797
      %v2934 = vmax.f32 %v2870, %v2798
      %v2935 = vmax.f32 %v2871, %v2799
      %v2936 = vmax.f32 %v2872, %v2800
      %v2937 = vmax.f32 %v2873, %v2801
      %v2938 = vmax.f32 %v2874, %v2802
      %v2939 = vmax.f32 %v2875, %v2803
      %v2940 = vmax.f32 %v2876, %v2804
      %v2941 = vmax.f32 %v2877, %v2805
      %v2942 = vmax.f32 %v2878, %v2806
      %v2943 = vmax.f32 %v2879, %v2807
      %v2944 = vmax.f32 %v2880, %v2808
      %v2945 = vmax.f32 %v2881, %v2809
      %v2946 = vmax.f32 %v2882, %v2810
      %v2947 = vmax.f32 %v2883, %v2811
      %v2948 = vmax.f32 %v2884, %v2812
      %v2949 = vmax.f32 %v2885, %v2813
      %v2950 = vmax.f32 %v2886, %v2814
      %v2951 = vmax.f32 %v2887, %v2815
      %v2952 = vmax.f32 %v2888, %v2816
      %v2953 = vmax.f32 %v2889, %v2817
      %v2954 = vmax.f32 %v2890, %v2818
      %v2955 = vmax.f32 %v2891, %v2819
      %v2956 = vmax.f32 %v2892, %v2820
      %v2957 = vmax.f32 %v2893, %v2821
      %v2958 = vmax.f32 %v2894, %v2822
      %v2959 = vmax.f32 %v2895, %v2823
      %v2960 = vmax.f32 %v2896, %v2824
      %v2961 = vmax.f32 %v2897, %v2825
      %v2962 = vmax.f32 %v2898, %v2826
      %v2963 = vmax.f32 %v2899, %v2827
      %v2964 = vmax.f32 %v2900, %v2828
      %v2965 = vmax.f32 %v2901, %v2829
      %v2966 = vmax.f32 %v2902, %v2830
      %v2967 = vmax.f32 %v2903, %v2831
      %v2968 = vmax.f32 %v2904, %v2832
      %v2969 = vmax.f32 %v2905, %v2833
      %v2970 = vmax.f32 %v2906, %v2834
      %v2971 = vmax.f32 %v2907, %v2835
      %v2972 = vmax.f32 %v2908, %v2836
      %v2973 = vmax.f32 %v2909, %v2837
      %v2974 = vmax.f32 %v2910, %v2838
      %v2975 = vmax.f32 %v2911, %v2839
      %v2976 = vmax.f32 %v2912, %v2840
      %v2977 = vmax.f32 %v2913, %v2781
      %v2978 = vmax.f32 %v2914, %v2782
      %v2979 = vmax.f32 %v2915, %v2783
      %v2980 = vmax.f32 %v2916, %v2784
      %v2981 = vmax.f32 %v2917, %v2785
      %v2982 = vmax.f32 %v2918, %v2786
      %v2983 = vmax.f32 %v2919, %v2787
      %v2984 = vmax.f32 %v2920, %v2788
      %v2985 = vmax.f32 %v2921, %v2789
      %v2986 = vmax.f32 %v2922, %v2790
      %v2987 = vmax.f32 %v2923, %v2791
      %v2988 = vmax.f32 %v2924, %v2792
      %v2989 = vmax.f32 %v2925, %v2793
      %v2990 = vmax.f32 %v2926, %v2794
      %v2991 = vmax.f32 %v2927, %v2795
      %v2992 = vmax.f32 %v2928, %v2796
      %v2993 = vmax.f32 %v2929, %v2797
      %v2994 = vmax.f32 %v2930, %v2798
      %v2995 = vmax.f32 %v2931, %v2799
      %v2996 = vmax.f32 %v2932, %v2800
      %v2997 = vmax.f32 %v2933, %v2801
      %v2998 = vmax.f32 %v2934, %v2802
      %v2999 = vmax.f32 %v2935, %v2803
      %v3000 = vmax.f32 %v2936, %v2804
      %v3001 = vmax.f32 %v2937, %v2805
      %v3002 = vmax.f32 %v2938, %v2806
      %v3003 = vmax.f32 %v2939, %v2807
      %v3004 = vmax.f32 %v2940, %v2808
      %v3005 = vmax.f32 %v2941, %v2809
      %v3006 = vmax.f32 %v2942, %v2810
      %v3007 = vmax.f32 %v2943, %v2811
      %v3008 = vmax.f32 %v2944, %v2812
      %v3009 = vmax.f32 %v2945, %v2813
      %v3010 = vmax.f32 %v2946, %v2814
      %v3011 = vmax.f32 %v2947, %v2815
      %v3012 = vmax.f32 %v2948, %v2816
      %v3013 = vmax.f32 %v2949, %v2817
      %v3014 = vmax.f32 %v2950, %v2818
      %v3015 = vmax.f32 %v2951, %v2819
      %v3016 = vmax.f32 %v2952, %v2820
      %v3017 = vmax.f32 %v2953, %v2821
      %v3018 = vmax.f32 %v2954, %v2822
      %v3019 = vmax.f32 %v2955, %v2823
      %v3020 = vmax.f32 %v2956, %v2824
      %v3021 = vmax.f32 %v2957, %v2825
      %v3022 = vmax.f32 %v2958, %v2826
      %v3023 = vmax.f32 %v2959, %v2827
      %v3024 = vmax.f32 %v2960, %v2828
      %v3025 = vmax.f32 %v2961, %v2829
      %v3026 = vmax.f32 %v2962, %v2830
      %v3027 = vmax.f32 %v2963, %v2831
      %v3028 = vmax.f32 %v2964, %v2832
      %v3029 = vmax.f32 %v2965, %v2833
      %v3030 = vmax.f32 %v2966, %v2834
      %v3031 = vmax.f32 %v2967, %v2835
      %v3032 = vmax.f32 %v2968, %v2836
      %v3033 = vmax.f32 %v2969, %v2837
      %v3034 = vmax.f32 %v2970, %v2838
      %v3035 = vmax.f32 %v2971, %v2839
      %v3036 = vmax.f32 %v2972, %v2840
      %v3037 = vmax.f32 %v2973, %v2841
      %v3038 = vmax.f32 %v2974, %v2842
      %v3039 = vmax.f32 %v2975, %v2843
      %v3040 = vmax.f32 %v2976, %v2844
      %v3041 = vmax.f32 %v2977, %v2785
      %v3042 = vmax.f32 %v2978, %v2786
      %v3043 = vmax.f32 %v2979, %v2787
      %v3044 = vmax.f32 %v2980, %v2788
      %v3045 = vmax.f32 %v2981, %v2789
      %v3046 = vmax.f32 %v2982, %v2790
      %v3047 = vmax.f32 %v2983, %v2791
      %v3048 = vmax.f32 %v2984, %v2792
      %v3049 = vmax.f32 %v2985, %v2793
      %v3050 = vmax.f32 %v2986, %v2794
      %v3051 = vmax.f32 %v2987, %v2795
      %v3052 = vmax.f32 %v2988, %v2796
      %v3053 = vmax.f32 %v2989, %v2797
      %v3054 = vmax.f32 %v2990, %v2798
      %v3055 = vmax.f32 %v2991, %v2799
      %v3056 = vmax.f32 %v2992, %v2800
      %v3057 = vmax.f32 %v2993, %v2801
      %v3058 = vmax.f32 %v2994, %v2802
      %v3059 = vmax.f32 %v2995, %v2803
      %v3060 = vmax.f32 %v2996, %v2804
      %v3061 = vmax.f32 %v2997, %v2805
      %v3062 = vmax.f32 %v2998, %v2806
      %v3063 = vmax.f32 %v2999, %v2807
      %v3064 = vmax.f32 %v3000, %v2808
      %v3065 = vmax.f32 %v3001, %v2809
      %v3066 = vmax.f32 %v3002, %v2810
      %v3067 = vmax.f32 %v3003, %v2811
      %v3068 = vmax.f32 %v3004, %v2812
      %v3069 = vmax.f32 %v3005, %v2813
      %v3070 = vmax.f32 %v3006, %v2814
      %v3071 = vmax.f32 %v3007, %v2815
      %v3072 = vmax.f32 %v3008, %v2816
      %v3073 = vmax.f32 %v3009, %v2817
      %v3074 = vmax.f32 %v3010, %v2818
      %v3075 = vmax.f32 %v3011, %v2819
      %v3076 = vmax.f32 %v3012, %v2820
      %v3077 = vmax.f32 %v3013, %v2821
      %v3078 = vmax.f32 %v3014, %v2822
      %v3079 = vmax.f32 %v3015, %v2823
      %v3080 = vmax.f32 %v3016, %v2824
      %v3081 = vmax.f32 %v3017, %v2825
      %v3082 = vmax.f32 %v3018, %v2826
      %v3083 = vmax.f32 %v3019, %v2827
      %v3084 = vmax.f32 %v3020, %v2828
      %v3085 = vmax.f32 %v3021, %v2829
      %v3086 = vmax.f32 %v3022, %v2830
      %v3087 = vmax.f32 %v3023, %v2831
      %v3088 = vmax.f32 %v3024, %v2832
      %v3089 = vmax.f32 %v3025, %v2833
      %v3090 = vmax.f32 %v3026, %v2834
      %v3091 = vmax.f32 %v3027, %v2835
      %v3092 = vmax.f32 %v3028, %v2836
      %v3093 = vmax.f32 %v3029, %v2837
      %v3094 = vmax.f32 %v3030, %v2838
      %v3095 = vmax.f32 %v3031, %v2839
      %v3096 = vmax.f32 %v3032, %v2840
      %v3097 = vmax.f32 %v3033, %v2841
      %v3098 = vmax.f32 %v3034, %v2842
      %v3099 = vmax.f32 %v3035, %v2843
      %v3100 = vmax.f32 %v3036, %v2844
      %v3101 = vmax.f32 %v3037, %v2845
      %v3102 = vmax.f32 %v3038, %v2846
      %v3103 = vmax.f32 %v3039, %v2847
      %v3104 = vmax.f32 %v3040, %v2848
      %v3153 = vrot.slane %v3041, 1
      %v3154 = vrot.slane %v3042, 1
      %v3155 = vsel %vm1280, %v3153, %v3154
      %v3156 = vrot.slane %v3043, 1
      %v3157 = vsel %vm1280, %v3154, %v3156
      %v3158 = vrot.slane %v3045, 1
      %v3159 = vrot.slane %v3046, 1
      %v3160 = vsel %vm1280, %v3158, %v3159
      %v3161 = vrot.slane %v3047, 1
      %v3162 = vsel %vm1280, %v3159, %v3161
      %v3163 = vrot.slane %v3049, 1
      %v3164 = vrot.slane %v3050, 1
      %v3165 = vsel %vm1280, %v3163, %v3164
      %v3166 = vrot.slane %v3051, 1
      %v3167 = vsel %vm1280, %v3164, %v3166
      %v3168 = vrot.slane %v3053, 1
      %v3169 = vrot.slane %v3054, 1
      %v3170 = vsel %vm1280, %v3168, %v3169
      %v3171 = vrot.slane %v3055, 1
      %v3172 = vsel %vm1280, %v3169, %v3171
      %v3173 = vrot.slane %v3057, 1
      %v3174 = vrot.slane %v3058, 1
      %v3175 = vsel %vm1280, %v3173, %v3174
      %v3176 = vrot.slane %v3059, 1
      %v3177 = vsel %vm1280, %v3174, %v3176
      %v3178 = vrot.slane %v3061, 1
      %v3179 = vrot.slane %v3062, 1
      %v3180 = vsel %vm1280, %v3178, %v3179
      %v3181 = vrot.slane %v3063, 1
      %v3182 = vsel %vm1280, %v3179, %v3181
      %v3183 = vrot.slane %v3065, 1
      %v3184 = vrot.slane %v3066, 1
      %v3185 = vsel %vm1280, %v3183, %v3184
      %v3186 = vrot.slane %v3067, 1
      %v3187 = vsel %vm1280, %v3184, %v3186
      %v3188 = vrot.slane %v3069, 1
      %v3189 = vrot.slane %v3070, 1
      %v3190 = vsel %vm1280, %v3188, %v3189
      %v3191 = vrot.slane %v3071, 1
      %v3192 = vsel %vm1280, %v3189, %v3191
      %v3193 = vrot.slane %v3073, 1
      %v3194 = vrot.slane %v3074, 1
      %v3195 = vsel %vm1280, %v3193, %v3194
      %v3196 = vrot.slane %v3075, 1
      %v3197 = vsel %vm1280, %v3194, %v3196
      %v3198 = vrot.slane %v3077, 1
      %v3199 = vrot.slane %v3078, 1
      %v3200 = vsel %vm1280, %v3198, %v3199
      %v3201 = vrot.slane %v3079, 1
      %v3202 = vsel %vm1280, %v3199, %v3201
      %v3203 = vrot.slane %v3081, 1
      %v3204 = vrot.slane %v3082, 1
      %v3205 = vsel %vm1280, %v3203, %v3204
      %v3206 = vrot.slane %v3083, 1
      %v3207 = vsel %vm1280, %v3204, %v3206
      %v3208 = vrot.slane %v3085, 1
      %v3209 = vrot.slane %v3086, 1
      %v3210 = vsel %vm1280, %v3208, %v3209
      %v3211 = vrot.slane %v3087, 1
      %v3212 = vsel %vm1280, %v3209, %v3211
      %v3213 = vrot.slane %v3089, 1
      %v3214 = vrot.slane %v3090, 1
      %v3215 = vsel %vm1280, %v3213, %v3214
      %v3216 = vrot.slane %v3091, 1
      %v3217 = vsel %vm1280, %v3214, %v3216
      %v3218 = vrot.slane %v3093, 1
      %v3219 = vrot.slane %v3094, 1
      %v3220 = vsel %vm1280, %v3218, %v3219
      %v3221 = vrot.slane %v3095, 1
      %v3222 = vsel %vm1280, %v3219, %v3221
      %v3223 = vrot.slane %v3097, 1
      %v3224 = vrot.slane %v3098, 1
      %v3225 = vsel %vm1280, %v3223, %v3224
      %v3226 = vrot.slane %v3099, 1
      %v3227 = vsel %vm1280, %v3224, %v3226
      %v3228 = vrot.slane %v3101, 1
      %v3229 = vrot.slane %v3102, 1
      %v3230 = vsel %vm1280, %v3228, %v3229
      %v3231 = vrot.slane %v3103, 1
      %v3232 = vsel %vm1280, %v3229, %v3231
      %v3281 = vmax.f32 %v3041, %v3155
      %v3282 = vmax.f32 %v3042, %v3157
      %v3283 = vmax.f32 %v3043, %v3156
      %v3284 = vmax.f32 %v3045, %v3160
      %v3285 = vmax.f32 %v3046, %v3162
      %v3286 = vmax.f32 %v3047, %v3161
      %v3287 = vmax.f32 %v3049, %v3165
      %v3288 = vmax.f32 %v3050, %v3167
      %v3289 = vmax.f32 %v3051, %v3166
      %v3290 = vmax.f32 %v3053, %v3170
      %v3291 = vmax.f32 %v3054, %v3172
      %v3292 = vmax.f32 %v3055, %v3171
      %v3293 = vmax.f32 %v3057, %v3175
      %v3294 = vmax.f32 %v3058, %v3177
      %v3295 = vmax.f32 %v3059, %v3176
      %v3296 = vmax.f32 %v3061, %v3180
      %v3297 = vmax.f32 %v3062, %v3182
      %v3298 = vmax.f32 %v3063, %v3181
      %v3299 = vmax.f32 %v3065, %v3185
      %v3300 = vmax.f32 %v3066, %v3187
      %v3301 = vmax.f32 %v3067, %v3186
      %v3302 = vmax.f32 %v3069, %v3190
      %v3303 = vmax.f32 %v3070, %v3192
      %v3304 = vmax.f32 %v3071, %v3191
      %v3305 = vmax.f32 %v3073, %v3195
      %v3306 = vmax.f32 %v3074, %v3197
      %v3307 = vmax.f32 %v3075, %v3196
      %v3308 = vmax.f32 %v3077, %v3200
      %v3309 = vmax.f32 %v3078, %v3202
      %v3310 = vmax.f32 %v3079, %v3201
      %v3311 = vmax.f32 %v3081, %v3205
      %v3312 = vmax.f32 %v3082, %v3207
      %v3313 = vmax.f32 %v3083, %v3206
      %v3314 = vmax.f32 %v3085, %v3210
      %v3315 = vmax.f32 %v3086, %v3212
      %v3316 = vmax.f32 %v3087, %v3211
      %v3317 = vmax.f32 %v3089, %v3215
      %v3318 = vmax.f32 %v3090, %v3217
      %v3319 = vmax.f32 %v3091, %v3216
      %v3320 = vmax.f32 %v3093, %v3220
      %v3321 = vmax.f32 %v3094, %v3222
      %v3322 = vmax.f32 %v3095, %v3221
      %v3323 = vmax.f32 %v3097, %v3225
      %v3324 = vmax.f32 %v3098, %v3227
      %v3325 = vmax.f32 %v3099, %v3226
      %v3326 = vmax.f32 %v3101, %v3230
      %v3327 = vmax.f32 %v3102, %v3232
      %v3328 = vmax.f32 %v3103, %v3231
      %v3329 = vrot.slane %v3042, 2
      %v3330 = vrot.slane %v3043, 2
      %v3331 = vsel %vm1457, %v3329, %v3330
      %v3332 = vrot.slane %v3046, 2
      %v3333 = vrot.slane %v3047, 2
      %v3334 = vsel %vm1457, %v3332, %v3333
      %v3335 = vrot.slane %v3050, 2
      %v3336 = vrot.slane %v3051, 2
      %v3337 = vsel %vm1457, %v3335, %v3336
      %v3338 = vrot.slane %v3054, 2
      %v3339 = vrot.slane %v3055, 2
      %v3340 = vsel %vm1457, %v3338, %v3339
      %v3341 = vrot.slane %v3058, 2
      %v3342 = vrot.slane %v3059, 2
      %v3343 = vsel %vm1457, %v3341, %v3342
      %v3344 = vrot.slane %v3062, 2
      %v3345 = vrot.slane %v3063, 2
      %v3346 = vsel %vm1457, %v3344, %v3345
      %v3347 = vrot.slane %v3066, 2
      %v3348 = vrot.slane %v3067, 2
      %v3349 = vsel %vm1457, %v3347, %v3348
      %v3350 = vrot.slane %v3070, 2
      %v3351 = vrot.slane %v3071, 2
      %v3352 = vsel %vm1457, %v3350, %v3351
      %v3353 = vrot.slane %v3074, 2
      %v3354 = vrot.slane %v3075, 2
      %v3355 = vsel %vm1457, %v3353, %v3354
      %v3356 = vrot.slane %v3078, 2
      %v3357 = vrot.slane %v3079, 2
      %v3358 = vsel %vm1457, %v3356, %v3357
      %v3359 = vrot.slane %v3082, 2
      %v3360 = vrot.slane %v3083, 2
      %v3361 = vsel %vm1457, %v3359, %v3360
      %v3362 = vrot.slane %v3086, 2
      %v3363 = vrot.slane %v3087, 2
      %v3364 = vsel %vm1457, %v3362, %v3363
      %v3365 = vrot.slane %v3090, 2
      %v3366 = vrot.slane %v3091, 2
      %v3367 = vsel %vm1457, %v3365, %v3366
      %v3368 = vrot.slane %v3094, 2
      %v3369 = vrot.slane %v3095, 2
      %v3370 = vsel %vm1457, %v3368, %v3369
      %v3371 = vrot.slane %v3098, 2
      %v3372 = vrot.slane %v3099, 2
      %v3373 = vsel %vm1457, %v3371, %v3372
      %v3374 = vrot.slane %v3102, 2
      %v3375 = vrot.slane %v3103, 2
      %v3376 = vsel %vm1457, %v3374, %v3375
      %v3425 = vmax.f32 %v3281, %v3329
      %v3426 = vmax.f32 %v3282, %v3331
      %v3427 = vmax.f32 %v3283, %v3330
      %v3428 = vmax.f32 %v3284, %v3332
      %v3429 = vmax.f32 %v3285, %v3334
      %v3430 = vmax.f32 %v3286, %v3333
      %v3431 = vmax.f32 %v3287, %v3335
      %v3432 = vmax.f32 %v3288, %v3337
      %v3433 = vmax.f32 %v3289, %v3336
      %v3434 = vmax.f32 %v3290, %v3338
      %v3435 = vmax.f32 %v3291, %v3340
      %v3436 = vmax.f32 %v3292, %v3339
      %v3437 = vmax.f32 %v3293, %v3341
      %v3438 = vmax.f32 %v3294, %v3343
      %v3439 = vmax.f32 %v3295, %v3342
      %v3440 = vmax.f32 %v3296, %v3344
      %v3441 = vmax.f32 %v3297, %v3346
      %v3442 = vmax.f32 %v3298, %v3345
      %v3443 = vmax.f32 %v3299, %v3347
      %v3444 = vmax.f32 %v3300, %v3349
      %v3445 = vmax.f32 %v3301, %v3348
      %v3446 = vmax.f32 %v3302, %v3350
      %v3447 = vmax.f32 %v3303, %v3352
      %v3448 = vmax.f32 %v3304, %v3351
      %v3449 = vmax.f32 %v3305, %v3353
      %v3450 = vmax.f32 %v3306, %v3355
      %v3451 = vmax.f32 %v3307, %v3354
      %v3452 = vmax.f32 %v3308, %v3356
      %v3453 = vmax.f32 %v3309, %v3358
      %v3454 = vmax.f32 %v3310, %v3357
      %v3455 = vmax.f32 %v3311, %v3359
      %v3456 = vmax.f32 %v3312, %v3361
      %v3457 = vmax.f32 %v3313, %v3360
      %v3458 = vmax.f32 %v3314, %v3362
      %v3459 = vmax.f32 %v3315, %v3364
      %v3460 = vmax.f32 %v3316, %v3363
      %v3461 = vmax.f32 %v3317, %v3365
      %v3462 = vmax.f32 %v3318, %v3367
      %v3463 = vmax.f32 %v3319, %v3366
      %v3464 = vmax.f32 %v3320, %v3368
      %v3465 = vmax.f32 %v3321, %v3370
      %v3466 = vmax.f32 %v3322, %v3369
      %v3467 = vmax.f32 %v3323, %v3371
      %v3468 = vmax.f32 %v3324, %v3373
      %v3469 = vmax.f32 %v3325, %v3372
      %v3470 = vmax.f32 %v3326, %v3374
      %v3471 = vmax.f32 %v3327, %v3376
      %v3472 = vmax.f32 %v3328, %v3375
      %v3489 = vrot.slane %v3042, 3
      %v3490 = vrot.slane %v3043, 3
      %v3491 = vsel %vm1618, %v3489, %v3490
      %v3492 = vrot.slane %v3044, 3
      %v3493 = vsel %vm1618, %v3490, %v3492
      %v3494 = vrot.slane %v3046, 3
      %v3495 = vrot.slane %v3047, 3
      %v3496 = vsel %vm1618, %v3494, %v3495
      %v3497 = vrot.slane %v3048, 3
      %v3498 = vsel %vm1618, %v3495, %v3497
      %v3499 = vrot.slane %v3050, 3
      %v3500 = vrot.slane %v3051, 3
      %v3501 = vsel %vm1618, %v3499, %v3500
      %v3502 = vrot.slane %v3052, 3
      %v3503 = vsel %vm1618, %v3500, %v3502
      %v3504 = vrot.slane %v3054, 3
      %v3505 = vrot.slane %v3055, 3
      %v3506 = vsel %vm1618, %v3504, %v3505
      %v3507 = vrot.slane %v3056, 3
      %v3508 = vsel %vm1618, %v3505, %v3507
      %v3509 = vrot.slane %v3058, 3
      %v3510 = vrot.slane %v3059, 3
      %v3511 = vsel %vm1618, %v3509, %v3510
      %v3512 = vrot.slane %v3060, 3
      %v3513 = vsel %vm1618, %v3510, %v3512
      %v3514 = vrot.slane %v3062, 3
      %v3515 = vrot.slane %v3063, 3
      %v3516 = vsel %vm1618, %v3514, %v3515
      %v3517 = vrot.slane %v3064, 3
      %v3518 = vsel %vm1618, %v3515, %v3517
      %v3519 = vrot.slane %v3066, 3
      %v3520 = vrot.slane %v3067, 3
      %v3521 = vsel %vm1618, %v3519, %v3520
      %v3522 = vrot.slane %v3068, 3
      %v3523 = vsel %vm1618, %v3520, %v3522
      %v3524 = vrot.slane %v3070, 3
      %v3525 = vrot.slane %v3071, 3
      %v3526 = vsel %vm1618, %v3524, %v3525
      %v3527 = vrot.slane %v3072, 3
      %v3528 = vsel %vm1618, %v3525, %v3527
      %v3529 = vrot.slane %v3074, 3
      %v3530 = vrot.slane %v3075, 3
      %v3531 = vsel %vm1618, %v3529, %v3530
      %v3532 = vrot.slane %v3076, 3
      %v3533 = vsel %vm1618, %v3530, %v3532
      %v3534 = vrot.slane %v3078, 3
      %v3535 = vrot.slane %v3079, 3
      %v3536 = vsel %vm1618, %v3534, %v3535
      %v3537 = vrot.slane %v3080, 3
      %v3538 = vsel %vm1618, %v3535, %v3537
      %v3539 = vrot.slane %v3082, 3
      %v3540 = vrot.slane %v3083, 3
      %v3541 = vsel %vm1618, %v3539, %v3540
      %v3542 = vrot.slane %v3084, 3
      %v3543 = vsel %vm1618, %v3540, %v3542
      %v3544 = vrot.slane %v3086, 3
      %v3545 = vrot.slane %v3087, 3
      %v3546 = vsel %vm1618, %v3544, %v3545
      %v3547 = vrot.slane %v3088, 3
      %v3548 = vsel %vm1618, %v3545, %v3547
      %v3549 = vrot.slane %v3090, 3
      %v3550 = vrot.slane %v3091, 3
      %v3551 = vsel %vm1618, %v3549, %v3550
      %v3552 = vrot.slane %v3092, 3
      %v3553 = vsel %vm1618, %v3550, %v3552
      %v3554 = vrot.slane %v3094, 3
      %v3555 = vrot.slane %v3095, 3
      %v3556 = vsel %vm1618, %v3554, %v3555
      %v3557 = vrot.slane %v3096, 3
      %v3558 = vsel %vm1618, %v3555, %v3557
      %v3559 = vrot.slane %v3098, 3
      %v3560 = vrot.slane %v3099, 3
      %v3561 = vsel %vm1618, %v3559, %v3560
      %v3562 = vrot.slane %v3100, 3
      %v3563 = vsel %vm1618, %v3560, %v3562
      %v3564 = vrot.slane %v3102, 3
      %v3565 = vrot.slane %v3103, 3
      %v3566 = vsel %vm1618, %v3564, %v3565
      %v3567 = vrot.slane %v3104, 3
      %v3568 = vsel %vm1618, %v3565, %v3567
      %v3617 = vmax.f32 %v3425, %v3489
      %v3618 = vmax.f32 %v3426, %v3491
      %v3619 = vmax.f32 %v3427, %v3493
      %v3620 = vmax.f32 %v3428, %v3494
      %v3621 = vmax.f32 %v3429, %v3496
      %v3622 = vmax.f32 %v3430, %v3498
      %v3623 = vmax.f32 %v3431, %v3499
      %v3624 = vmax.f32 %v3432, %v3501
      %v3625 = vmax.f32 %v3433, %v3503
      %v3626 = vmax.f32 %v3434, %v3504
      %v3627 = vmax.f32 %v3435, %v3506
      %v3628 = vmax.f32 %v3436, %v3508
      %v3629 = vmax.f32 %v3437, %v3509
      %v3630 = vmax.f32 %v3438, %v3511
      %v3631 = vmax.f32 %v3439, %v3513
      %v3632 = vmax.f32 %v3440, %v3514
      %v3633 = vmax.f32 %v3441, %v3516
      %v3634 = vmax.f32 %v3442, %v3518
      %v3635 = vmax.f32 %v3443, %v3519
      %v3636 = vmax.f32 %v3444, %v3521
      %v3637 = vmax.f32 %v3445, %v3523
      %v3638 = vmax.f32 %v3446, %v3524
      %v3639 = vmax.f32 %v3447, %v3526
      %v3640 = vmax.f32 %v3448, %v3528
      %v3641 = vmax.f32 %v3449, %v3529
      %v3642 = vmax.f32 %v3450, %v3531
      %v3643 = vmax.f32 %v3451, %v3533
      %v3644 = vmax.f32 %v3452, %v3534
      %v3645 = vmax.f32 %v3453, %v3536
      %v3646 = vmax.f32 %v3454, %v3538
      %v3647 = vmax.f32 %v3455, %v3539
      %v3648 = vmax.f32 %v3456, %v3541
      %v3649 = vmax.f32 %v3457, %v3543
      %v3650 = vmax.f32 %v3458, %v3544
      %v3651 = vmax.f32 %v3459, %v3546
      %v3652 = vmax.f32 %v3460, %v3548
      %v3653 = vmax.f32 %v3461, %v3549
      %v3654 = vmax.f32 %v3462, %v3551
      %v3655 = vmax.f32 %v3463, %v3553
      %v3656 = vmax.f32 %v3464, %v3554
      %v3657 = vmax.f32 %v3465, %v3556
      %v3658 = vmax.f32 %v3466, %v3558
      %v3659 = vmax.f32 %v3467, %v3559
      %v3660 = vmax.f32 %v3468, %v3561
      %v3661 = vmax.f32 %v3469, %v3563
      %v3662 = vmax.f32 %v3470, %v3564
      %v3663 = vmax.f32 %v3471, %v3566
      %v3664 = vmax.f32 %v3472, %v3568
      %v3665 = vrot.slane %v3042, 4
      %v3666 = vrot.slane %v3043, 4
      %v3667 = vsel %vm1795, %v3665, %v3666
      %v3668 = vrot.slane %v3044, 4
      %v3669 = vsel %vm1795, %v3666, %v3668
      %v3670 = vrot.slane %v3046, 4
      %v3671 = vrot.slane %v3047, 4
      %v3672 = vsel %vm1795, %v3670, %v3671
      %v3673 = vrot.slane %v3048, 4
      %v3674 = vsel %vm1795, %v3671, %v3673
      %v3675 = vrot.slane %v3050, 4
      %v3676 = vrot.slane %v3051, 4
      %v3677 = vsel %vm1795, %v3675, %v3676
      %v3678 = vrot.slane %v3052, 4
      %v3679 = vsel %vm1795, %v3676, %v3678
      %v3680 = vrot.slane %v3054, 4
      %v3681 = vrot.slane %v3055, 4
      %v3682 = vsel %vm1795, %v3680, %v3681
      %v3683 = vrot.slane %v3056, 4
      %v3684 = vsel %vm1795, %v3681, %v3683
      %v3685 = vrot.slane %v3058, 4
      %v3686 = vrot.slane %v3059, 4
      %v3687 = vsel %vm1795, %v3685, %v3686
      %v3688 = vrot.slane %v3060, 4
      %v3689 = vsel %vm1795, %v3686, %v3688
      %v3690 = vrot.slane %v3062, 4
      %v3691 = vrot.slane %v3063, 4
      %v3692 = vsel %vm1795, %v3690, %v3691
      %v3693 = vrot.slane %v3064, 4
      %v3694 = vsel %vm1795, %v3691, %v3693
      %v3695 = vrot.slane %v3066, 4
      %v3696 = vrot.slane %v3067, 4
      %v3697 = vsel %vm1795, %v3695, %v3696
      %v3698 = vrot.slane %v3068, 4
      %v3699 = vsel %vm1795, %v3696, %v3698
      %v3700 = vrot.slane %v3070, 4
      %v3701 = vrot.slane %v3071, 4
      %v3702 = vsel %vm1795, %v3700, %v3701
      %v3703 = vrot.slane %v3072, 4
      %v3704 = vsel %vm1795, %v3701, %v3703
      %v3705 = vrot.slane %v3074, 4
      %v3706 = vrot.slane %v3075, 4
      %v3707 = vsel %vm1795, %v3705, %v3706
      %v3708 = vrot.slane %v3076, 4
      %v3709 = vsel %vm1795, %v3706, %v3708
      %v3710 = vrot.slane %v3078, 4
      %v3711 = vrot.slane %v3079, 4
      %v3712 = vsel %vm1795, %v3710, %v3711
      %v3713 = vrot.slane %v3080, 4
      %v3714 = vsel %vm1795, %v3711, %v3713
      %v3715 = vrot.slane %v3082, 4
      %v3716 = vrot.slane %v3083, 4
      %v3717 = vsel %vm1795, %v3715, %v3716
      %v3718 = vrot.slane %v3084, 4
      %v3719 = vsel %vm1795, %v3716, %v3718
      %v3720 = vrot.slane %v3086, 4
      %v3721 = vrot.slane %v3087, 4
      %v3722 = vsel %vm1795, %v3720, %v3721
      %v3723 = vrot.slane %v3088, 4
      %v3724 = vsel %vm1795, %v3721, %v3723
      %v3725 = vrot.slane %v3090, 4
      %v3726 = vrot.slane %v3091, 4
      %v3727 = vsel %vm1795, %v3725, %v3726
      %v3728 = vrot.slane %v3092, 4
      %v3729 = vsel %vm1795, %v3726, %v3728
      %v3730 = vrot.slane %v3094, 4
      %v3731 = vrot.slane %v3095, 4
      %v3732 = vsel %vm1795, %v3730, %v3731
      %v3733 = vrot.slane %v3096, 4
      %v3734 = vsel %vm1795, %v3731, %v3733
      %v3735 = vrot.slane %v3098, 4
      %v3736 = vrot.slane %v3099, 4
      %v3737 = vsel %vm1795, %v3735, %v3736
      %v3738 = vrot.slane %v3100, 4
      %v3739 = vsel %vm1795, %v3736, %v3738
      %v3740 = vrot.slane %v3102, 4
      %v3741 = vrot.slane %v3103, 4
      %v3742 = vsel %vm1795, %v3740, %v3741
      %v3743 = vrot.slane %v3104, 4
      %v3744 = vsel %vm1795, %v3741, %v3743
      %v3793 = vmax.f32 %v3617, %v3665
      %v3794 = vmax.f32 %v3618, %v3667
      %v3795 = vmax.f32 %v3619, %v3669
      %v3796 = vmax.f32 %v3620, %v3670
      %v3797 = vmax.f32 %v3621, %v3672
      %v3798 = vmax.f32 %v3622, %v3674
      %v3799 = vmax.f32 %v3623, %v3675
      %v3800 = vmax.f32 %v3624, %v3677
      %v3801 = vmax.f32 %v3625, %v3679
      %v3802 = vmax.f32 %v3626, %v3680
      %v3803 = vmax.f32 %v3627, %v3682
      %v3804 = vmax.f32 %v3628, %v3684
      %v3805 = vmax.f32 %v3629, %v3685
      %v3806 = vmax.f32 %v3630, %v3687
      %v3807 = vmax.f32 %v3631, %v3689
      %v3808 = vmax.f32 %v3632, %v3690
      %v3809 = vmax.f32 %v3633, %v3692
      %v3810 = vmax.f32 %v3634, %v3694
      %v3811 = vmax.f32 %v3635, %v3695
      %v3812 = vmax.f32 %v3636, %v3697
      %v3813 = vmax.f32 %v3637, %v3699
      %v3814 = vmax.f32 %v3638, %v3700
      %v3815 = vmax.f32 %v3639, %v3702
      %v3816 = vmax.f32 %v3640, %v3704
      %v3817 = vmax.f32 %v3641, %v3705
      %v3818 = vmax.f32 %v3642, %v3707
      %v3819 = vmax.f32 %v3643, %v3709
      %v3820 = vmax.f32 %v3644, %v3710
      %v3821 = vmax.f32 %v3645, %v3712
      %v3822 = vmax.f32 %v3646, %v3714
      %v3823 = vmax.f32 %v3647, %v3715
      %v3824 = vmax.f32 %v3648, %v3717
      %v3825 = vmax.f32 %v3649, %v3719
      %v3826 = vmax.f32 %v3650, %v3720
      %v3827 = vmax.f32 %v3651, %v3722
      %v3828 = vmax.f32 %v3652, %v3724
      %v3829 = vmax.f32 %v3653, %v3725
      %v3830 = vmax.f32 %v3654, %v3727
      %v3831 = vmax.f32 %v3655, %v3729
      %v3832 = vmax.f32 %v3656, %v3730
      %v3833 = vmax.f32 %v3657, %v3732
      %v3834 = vmax.f32 %v3658, %v3734
      %v3835 = vmax.f32 %v3659, %v3735
      %v3836 = vmax.f32 %v3660, %v3737
      %v3837 = vmax.f32 %v3661, %v3739
      %v3838 = vmax.f32 %v3662, %v3740
      %v3839 = vmax.f32 %v3663, %v3742
      %v3840 = vmax.f32 %v3664, %v3744
      %v3889 = vrot.slane %v3793, 6
      %v3890 = vrot.slane %v3794, 6
      %v3891 = vsel %vm2020, %v3889, %v3890
      %v3892 = vrot.slane %v3795, 6
      %v3893 = vsel %vm2020, %v3890, %v3892
      %v3894 = vrot.slane %v3796, 6
      %v3895 = vrot.slane %v3797, 6
      %v3896 = vsel %vm2020, %v3894, %v3895
      %v3897 = vrot.slane %v3798, 6
      %v3898 = vsel %vm2020, %v3895, %v3897
      %v3899 = vrot.slane %v3799, 6
      %v3900 = vrot.slane %v3800, 6
      %v3901 = vsel %vm2020, %v3899, %v3900
      %v3902 = vrot.slane %v3801, 6
      %v3903 = vsel %vm2020, %v3900, %v3902
      %v3904 = vrot.slane %v3802, 6
      %v3905 = vrot.slane %v3803, 6
      %v3906 = vsel %vm2020, %v3904, %v3905
      %v3907 = vrot.slane %v3804, 6
      %v3908 = vsel %vm2020, %v3905, %v3907
      %v3909 = vrot.slane %v3805, 6
      %v3910 = vrot.slane %v3806, 6
      %v3911 = vsel %vm2020, %v3909, %v3910
      %v3912 = vrot.slane %v3807, 6
      %v3913 = vsel %vm2020, %v3910, %v3912
      %v3914 = vrot.slane %v3808, 6
      %v3915 = vrot.slane %v3809, 6
      %v3916 = vsel %vm2020, %v3914, %v3915
      %v3917 = vrot.slane %v3810, 6
      %v3918 = vsel %vm2020, %v3915, %v3917
      %v3919 = vrot.slane %v3811, 6
      %v3920 = vrot.slane %v3812, 6
      %v3921 = vsel %vm2020, %v3919, %v3920
      %v3922 = vrot.slane %v3813, 6
      %v3923 = vsel %vm2020, %v3920, %v3922
      %v3924 = vrot.slane %v3814, 6
      %v3925 = vrot.slane %v3815, 6
      %v3926 = vsel %vm2020, %v3924, %v3925
      %v3927 = vrot.slane %v3816, 6
      %v3928 = vsel %vm2020, %v3925, %v3927
      %v3929 = vrot.slane %v3817, 6
      %v3930 = vrot.slane %v3818, 6
      %v3931 = vsel %vm2020, %v3929, %v3930
      %v3932 = vrot.slane %v3819, 6
      %v3933 = vsel %vm2020, %v3930, %v3932
      %v3934 = vrot.slane %v3820, 6
      %v3935 = vrot.slane %v3821, 6
      %v3936 = vsel %vm2020, %v3934, %v3935
      %v3937 = vrot.slane %v3822, 6
      %v3938 = vsel %vm2020, %v3935, %v3937
      %v3939 = vrot.slane %v3823, 6
      %v3940 = vrot.slane %v3824, 6
      %v3941 = vsel %vm2020, %v3939, %v3940
      %v3942 = vrot.slane %v3825, 6
      %v3943 = vsel %vm2020, %v3940, %v3942
      %v3944 = vrot.slane %v3826, 6
      %v3945 = vrot.slane %v3827, 6
      %v3946 = vsel %vm2020, %v3944, %v3945
      %v3947 = vrot.slane %v3828, 6
      %v3948 = vsel %vm2020, %v3945, %v3947
      %v3949 = vrot.slane %v3829, 6
      %v3950 = vrot.slane %v3830, 6
      %v3951 = vsel %vm2020, %v3949, %v3950
      %v3952 = vrot.slane %v3831, 6
      %v3953 = vsel %vm2020, %v3950, %v3952
      %v3954 = vrot.slane %v3832, 6
      %v3955 = vrot.slane %v3833, 6
      %v3956 = vsel %vm2020, %v3954, %v3955
      %v3957 = vrot.slane %v3834, 6
      %v3958 = vsel %vm2020, %v3955, %v3957
      %v3959 = vrot.slane %v3835, 6
      %v3960 = vrot.slane %v3836, 6
      %v3961 = vsel %vm2020, %v3959, %v3960
      %v3962 = vrot.slane %v3837, 6
      %v3963 = vsel %vm2020, %v3960, %v3962
      %v3964 = vrot.slane %v3838, 6
      %v3965 = vrot.slane %v3839, 6
      %v3966 = vsel %vm2020, %v3964, %v3965
      %v3967 = vrot.slane %v3840, 6
      %v3968 = vsel %vm2020, %v3965, %v3967
      %s3969 = scalar_lea.vmem %s3, 8
      %v3970 = vld [vmem:[%s3969] sm:$0xf]
      %v3971 = vsel %vm853, %v3891, 0
      %v3973 = vsel %vm853, %v3893, 0
      %v3975 = vsel %vm853, %v3896, 0
      %v3977 = vsel %vm853, %v3898, 0
      %v3979 = vsel %vm853, %v3901, 0
      %v3981 = vsel %vm853, %v3903, 0
      %v3983 = vsel %vm853, %v3906, 0
      %v3985 = vsel %vm853, %v3908, 0
      %v3987 = vsel %vm853, %v3911, 0
      %v3989 = vsel %vm853, %v3913, 0
      %v3991 = vsel %vm853, %v3916, 0
      %v3993 = vsel %vm853, %v3918, 0
      %v3995 = vsel %vm853, %v3921, 0
      %v3997 = vsel %vm853, %v3923, 0
      %v3999 = vsel %vm853, %v3926, 0
      %v4001 = vsel %vm853, %v3928, 0
      %v4003 = vsel %vm853, %v3931, 0
      %v4005 = vsel %vm853, %v3933, 0
      %v4007 = vsel %vm853, %v3936, 0
      %v4009 = vsel %vm853, %v3938, 0
      %v4011 = vsel %vm853, %v3941, 0
      %v4013 = vsel %vm853, %v3943, 0
      %v4015 = vsel %vm853, %v3946, 0
      %v4017 = vsel %vm853, %v3948, 0
      %v4019 = vsel %vm853, %v3951, 0
      %v4021 = vsel %vm853, %v3953, 0
      %v4023 = vsel %vm853, %v3956, 0
      %v4025 = vsel %vm853, %v3958, 0
      %v4027 = vsel %vm853, %v3961, 0
      %v4029 = vsel %vm853, %v3963, 0
      %v4031 = vsel %vm853, %v3966, 0
      %v4033 = vsel %vm853, %v3968, 0
      %v4036 = vsel %vm1795, %v3970, 0
      %4038 = vmatprep.subr.mxu0 0.0
      %4039 = vmatpush1.msra.mxu0 0.0
      %4040 = vmatprep.subr.mxu0 0.0
      %4041 = vmatpush1.msra.mxu0 0.0
      %4042 = vmatprep.subr.mxu0 0.0
      %4043 = vmatpush1.msra.mxu0 0.0
      %4044 = vmatprep.subr.mxu0 0.0
      %4045 = vmatpush1.msra.mxu0 0.0
      %4046 = vmatprep.subr.mxu0 0.0
      %4047 = vmatpush1.msra.mxu0 0.0
      %4048 = vmatprep.subr.mxu0 0.0
      %4049 = vmatpush1.msra.mxu0 0.0
      %4050 = vmatprep.subr.mxu0 0.0
      %4051 = vmatpush1.msra.mxu0 0.0
      %4052 = vmatprep.subr.mxu0 0.0
      %4053 = vmatpush1.msra.mxu0 0.0
      %4054 = vmatprep.subr.mxu0 0.0
      %4055 = vmatpush1.msra.mxu0 0.0
      %4056 = vmatprep.subr.mxu0 0.0
      %4057 = vmatpush1.msra.mxu0 0.0
      %4058 = vmatprep.subr.mxu0 0.0
      %4059 = vmatpush1.msra.mxu0 0.0
      %4060 = vmatprep.subr.mxu0 0.0
      %4061 = vmatpush1.msra.mxu0 0.0
      %4062 = vmatprep.subr.mxu0 0.0
      %4063 = vmatpush1.msra.mxu0 0.0
      %4064 = vmatprep.subr.mxu0 0.0
      %4065 = vmatpush1.msra.mxu0 0.0
      %4066 = vmatprep.subr.mxu0 0.0
      %4067 = vmatpush1.msra.mxu0 0.0
      %4068 = vmatprep.subr.mxu0 0.0
      %4069 = vmatpush1.msra.mxu0 %v4036
      %4070 = vmatprep.subr.mxu0 0.0
      %4071 = vmatpush2.msra.mxu0 0.0
      %4072 = vmatprep.subr.mxu0 0.0
      %4073 = vmatpush2.msra.mxu0 0.0
      %4074 = vmatprep.subr.mxu0 0.0
      %4075 = vmatpush2.msra.mxu0 0.0
      %4076 = vmatprep.subr.mxu0 0.0
      %4077 = vmatpush2.msra.mxu0 0.0
      %4078 = vmatprep.subr.mxu0 0.0
      %4079 = vmatpush2.msra.mxu0 0.0
      %4080 = vmatprep.subr.mxu0 0.0
      %4081 = vmatpush2.msra.mxu0 0.0
      %4082 = vmatprep.subr.mxu0 0.0
      %4083 = vmatpush2.msra.mxu0 0.0
      %4084 = vmatprep.subr.mxu0 0.0
      %4085 = vmatpush2.msra.mxu0 0.0
      %4086 = vmatprep.subr.mxu0 0.0
      %4087 = vmatpush2.msra.mxu0 0.0
      %4088 = vmatprep.subr.mxu0 0.0
      %4089 = vmatpush2.msra.mxu0 0.0
      %4090 = vmatprep.subr.mxu0 0.0
      %4091 = vmatpush2.msra.mxu0 0.0
      %4092 = vmatprep.subr.mxu0 0.0
      %4093 = vmatpush2.msra.mxu0 0.0
      %4094 = vmatprep.subr.mxu0 0.0
      %4095 = vmatpush2.msra.mxu0 0.0
      %4096 = vmatprep.subr.mxu0 0.0
      %4097 = vmatpush2.msra.mxu0 0.0
      %4098 = vmatprep.subr.mxu0 0.0
      %4099 = vmatpush2.msra.mxu0 0.0
      %4100 = vmatprep.subr.mxu0 0.0
      %4101 = vmatpush2.msra.mxu0 0.0
      %4102 = vmatprep.mubr.f32.mxu0 0.0
      %4103 = vmatmul.mubr.f32.gmra.mxu0 %v3971
      %v4104 = vpop.f32.mrf.mxu0
      %v4105 = vadd.f32 0.0, %v4104
      %v4106 = vpop.f32.mrf.mxu0
      %4107 = vmatprep.mubr.f32.mxu0 0.0
      %4108 = vmatmul.mubr.f32.gmra.mxu0 %v3973
      %v4109 = vpop.f32.mrf.mxu0
      %v4110 = vadd.f32 0.0, %v4109
      %v4111 = vpop.f32.mrf.mxu0
      %4112 = vmatprep.mubr.f32.mxu0 0.0
      %4113 = vmatmul.mubr.f32.gmra.mxu0 %v3975
      %v4114 = vpop.f32.mrf.mxu0
      %v4115 = vadd.f32 0.0, %v4114
      %v4116 = vpop.f32.mrf.mxu0
      %4117 = vmatprep.mubr.f32.mxu0 0.0
      %4118 = vmatmul.mubr.f32.gmra.mxu0 %v3977
      %v4119 = vpop.f32.mrf.mxu0
      %v4120 = vadd.f32 0.0, %v4119
      %v4121 = vpop.f32.mrf.mxu0
      %4122 = vmatprep.mubr.f32.mxu0 0.0
      %4123 = vmatmul.mubr.f32.gmra.mxu0 %v3979
      %v4124 = vpop.f32.mrf.mxu0
      %v4125 = vadd.f32 0.0, %v4124
      %v4126 = vpop.f32.mrf.mxu0
      %4127 = vmatprep.mubr.f32.mxu0 0.0
      %4128 = vmatmul.mubr.f32.gmra.mxu0 %v3981
      %v4129 = vpop.f32.mrf.mxu0
      %v4130 = vadd.f32 0.0, %v4129
      %v4131 = vpop.f32.mrf.mxu0
      %4132 = vmatprep.mubr.f32.mxu0 0.0
      %4133 = vmatmul.mubr.f32.gmra.mxu0 %v3983
      %v4134 = vpop.f32.mrf.mxu0
      %v4135 = vadd.f32 0.0, %v4134
      %v4136 = vpop.f32.mrf.mxu0
      %4137 = vmatprep.mubr.f32.mxu0 0.0
      %4138 = vmatmul.mubr.f32.gmra.mxu0 %v3985
      %v4139 = vpop.f32.mrf.mxu0
      %v4140 = vadd.f32 0.0, %v4139
      %v4141 = vpop.f32.mrf.mxu0
      %4142 = vmatprep.mubr.f32.mxu0 0.0
      %4143 = vmatmul.mubr.f32.gmra.mxu0 %v3987
      %v4144 = vpop.f32.mrf.mxu0
      %v4145 = vadd.f32 0.0, %v4144
      %v4146 = vpop.f32.mrf.mxu0
      %4147 = vmatprep.mubr.f32.mxu0 0.0
      %4148 = vmatmul.mubr.f32.gmra.mxu0 %v3989
      %v4149 = vpop.f32.mrf.mxu0
      %v4150 = vadd.f32 0.0, %v4149
      %v4151 = vpop.f32.mrf.mxu0
      %4152 = vmatprep.mubr.f32.mxu0 0.0
      %4153 = vmatmul.mubr.f32.gmra.mxu0 %v3991
      %v4154 = vpop.f32.mrf.mxu0
      %v4155 = vadd.f32 0.0, %v4154
      %v4156 = vpop.f32.mrf.mxu0
      %4157 = vmatprep.mubr.f32.mxu0 0.0
      %4158 = vmatmul.mubr.f32.gmra.mxu0 %v3993
      %v4159 = vpop.f32.mrf.mxu0
      %v4160 = vadd.f32 0.0, %v4159
      %v4161 = vpop.f32.mrf.mxu0
      %4162 = vmatprep.mubr.f32.mxu0 0.0
      %4163 = vmatmul.mubr.f32.gmra.mxu0 %v3995
      %v4164 = vpop.f32.mrf.mxu0
      %v4165 = vadd.f32 0.0, %v4164
      %v4166 = vpop.f32.mrf.mxu0
      %4167 = vmatprep.mubr.f32.mxu0 0.0
      %4168 = vmatmul.mubr.f32.gmra.mxu0 %v3997
      %v4169 = vpop.f32.mrf.mxu0
      %v4170 = vadd.f32 0.0, %v4169
      %v4171 = vpop.f32.mrf.mxu0
      %4172 = vmatprep.mubr.f32.mxu0 0.0
      %4173 = vmatmul.mubr.f32.gmra.mxu0 %v3999
      %v4174 = vpop.f32.mrf.mxu0
      %v4175 = vadd.f32 0.0, %v4174
      %v4176 = vpop.f32.mrf.mxu0
      %4177 = vmatprep.mubr.f32.mxu0 0.0
      %4178 = vmatmul.mubr.f32.gmra.mxu0 %v4001
      %v4179 = vpop.f32.mrf.mxu0
      %v4180 = vadd.f32 0.0, %v4179
      %v4181 = vpop.f32.mrf.mxu0
      %4182 = vmatprep.mubr.f32.mxu0 0.0
      %4183 = vmatmul.mubr.f32.gmra.mxu0 %v4003
      %v4184 = vpop.f32.mrf.mxu0
      %v4185 = vadd.f32 0.0, %v4184
      %v4186 = vpop.f32.mrf.mxu0
      %4187 = vmatprep.mubr.f32.mxu0 0.0
      %4188 = vmatmul.mubr.f32.gmra.mxu0 %v4005
      %v4189 = vpop.f32.mrf.mxu0
      %v4190 = vadd.f32 0.0, %v4189
      %v4191 = vpop.f32.mrf.mxu0
      %4192 = vmatprep.mubr.f32.mxu0 0.0
      %4193 = vmatmul.mubr.f32.gmra.mxu0 %v4007
      %v4194 = vpop.f32.mrf.mxu0
      %v4195 = vadd.f32 0.0, %v4194
      %v4196 = vpop.f32.mrf.mxu0
      %4197 = vmatprep.mubr.f32.mxu0 0.0
      %4198 = vmatmul.mubr.f32.gmra.mxu0 %v4009
      %v4199 = vpop.f32.mrf.mxu0
      %v4200 = vadd.f32 0.0, %v4199
      %v4201 = vpop.f32.mrf.mxu0
      %4202 = vmatprep.mubr.f32.mxu0 0.0
      %4203 = vmatmul.mubr.f32.gmra.mxu0 %v4011
      %v4204 = vpop.f32.mrf.mxu0
      %v4205 = vadd.f32 0.0, %v4204
      %v4206 = vpop.f32.mrf.mxu0
      %4207 = vmatprep.mubr.f32.mxu0 0.0
      %4208 = vmatmul.mubr.f32.gmra.mxu0 %v4013
      %v4209 = vpop.f32.mrf.mxu0
      %v4210 = vadd.f32 0.0, %v4209
      %v4211 = vpop.f32.mrf.mxu0
      %4212 = vmatprep.mubr.f32.mxu0 0.0
      %4213 = vmatmul.mubr.f32.gmra.mxu0 %v4015
      %v4214 = vpop.f32.mrf.mxu0
      %v4215 = vadd.f32 0.0, %v4214
      %v4216 = vpop.f32.mrf.mxu0
      %4217 = vmatprep.mubr.f32.mxu0 0.0
      %4218 = vmatmul.mubr.f32.gmra.mxu0 %v4017
      %v4219 = vpop.f32.mrf.mxu0
      %v4220 = vadd.f32 0.0, %v4219
      %v4221 = vpop.f32.mrf.mxu0
      %4222 = vmatprep.mubr.f32.mxu0 0.0
      %4223 = vmatmul.mubr.f32.gmra.mxu0 %v4019
      %v4224 = vpop.f32.mrf.mxu0
      %v4225 = vadd.f32 0.0, %v4224
      %v4226 = vpop.f32.mrf.mxu0
      %4227 = vmatprep.mubr.f32.mxu0 0.0
      %4228 = vmatmul.mubr.f32.gmra.mxu0 %v4021
      %v4229 = vpop.f32.mrf.mxu0
      %v4230 = vadd.f32 0.0, %v4229
      %v4231 = vpop.f32.mrf.mxu0
      %4232 = vmatprep.mubr.f32.mxu0 0.0
      %4233 = vmatmul.mubr.f32.gmra.mxu0 %v4023
      %v4234 = vpop.f32.mrf.mxu0
      %v4235 = vadd.f32 0.0, %v4234
      %v4236 = vpop.f32.mrf.mxu0
      %4237 = vmatprep.mubr.f32.mxu0 0.0
      %4238 = vmatmul.mubr.f32.gmra.mxu0 %v4025
      %v4239 = vpop.f32.mrf.mxu0
      %v4240 = vadd.f32 0.0, %v4239
      %v4241 = vpop.f32.mrf.mxu0
      %4242 = vmatprep.mubr.f32.mxu0 0.0
      %4243 = vmatmul.mubr.f32.gmra.mxu0 %v4027
      %v4244 = vpop.f32.mrf.mxu0
      %v4245 = vadd.f32 0.0, %v4244
      %v4246 = vpop.f32.mrf.mxu0
      %4247 = vmatprep.mubr.f32.mxu0 0.0
      %4248 = vmatmul.mubr.f32.gmra.mxu0 %v4029
      %v4249 = vpop.f32.mrf.mxu0
      %v4250 = vadd.f32 0.0, %v4249
      %v4251 = vpop.f32.mrf.mxu0
      %4252 = vmatprep.mubr.f32.mxu0 0.0
      %4253 = vmatmul.mubr.f32.gmra.mxu0 %v4031
      %v4254 = vpop.f32.mrf.mxu0
      %v4255 = vadd.f32 0.0, %v4254
      %v4256 = vpop.f32.mrf.mxu0
      %4257 = vmatprep.mubr.f32.mxu0 0.0
      %4258 = vmatmul.mubr.f32.gmra.mxu0 %v4033
      %v4259 = vpop.f32.mrf.mxu0
      %v4260 = vadd.f32 0.0, %v4259
      %v4261 = vpop.f32.mrf.mxu0
      %4262 = vdwg.mxu0
      %v4263 = vadd.f32 %v2561, %v4105
      %v4264 = vadd.f32 %v2566, %v4110
      %v4265 = vadd.f32 %v2571, %v4115
      %v4266 = vadd.f32 %v2576, %v4120
      %v4267 = vadd.f32 %v2581, %v4125
      %v4268 = vadd.f32 %v2586, %v4130
      %v4269 = vadd.f32 %v2591, %v4135
      %v4270 = vadd.f32 %v2596, %v4140
      %v4271 = vadd.f32 %v2601, %v4145
      %v4272 = vadd.f32 %v2606, %v4150
      %v4273 = vadd.f32 %v2611, %v4155
      %v4274 = vadd.f32 %v2616, %v4160
      %v4275 = vadd.f32 %v2621, %v4165
      %v4276 = vadd.f32 %v2626, %v4170
      %v4277 = vadd.f32 %v2631, %v4175
      %v4278 = vadd.f32 %v2636, %v4180
      %v4279 = vadd.f32 %v2641, %v4185
      %v4280 = vadd.f32 %v2646, %v4190
      %v4281 = vadd.f32 %v2651, %v4195
      %v4282 = vadd.f32 %v2656, %v4200
      %v4283 = vadd.f32 %v2661, %v4205
      %v4284 = vadd.f32 %v2666, %v4210
      %v4285 = vadd.f32 %v2671, %v4215
      %v4286 = vadd.f32 %v2676, %v4220
      %v4287 = vadd.f32 %v2681, %v4225
      %v4288 = vadd.f32 %v2686, %v4230
      %v4289 = vadd.f32 %v2691, %v4235
      %v4290 = vadd.f32 %v2696, %v4240
      %v4291 = vadd.f32 %v2701, %v4245
      %v4292 = vadd.f32 %v2706, %v4250
      %v4293 = vadd.f32 %v2711, %v4255
      %v4294 = vadd.f32 %v2716, %v4260
      %4295 = vst.msk [vmem:[%s863 + $0x2] sm:$0xc0] %vm2719, %v3793
      %4296 = vst.msk [vmem:[%s863 + $0xa] sm:$0xff] %vm853, %v3794
      %4297 = vst.msk [vmem:[%s863 + $0x12] sm:$0x3f] %vm2722, %v3795
      %4298 = vst.msk [vmem:[%s863 + $0x22] sm:$0xc0] %vm2719, %v3796
      %4299 = vst.msk [vmem:[%s863 + $0x2a] sm:$0xff] %vm853, %v3797
      %4300 = vst.msk [vmem:[%s863 + $0x32] sm:$0x3f] %vm2722, %v3798
      %4301 = vst.msk [vmem:[%s863 + $0x42] sm:$0xc0] %vm2719, %v3799
      %4302 = vst.msk [vmem:[%s863 + $0x4a] sm:$0xff] %vm853, %v3800
      %4303 = vst.msk [vmem:[%s863 + $0x52] sm:$0x3f] %vm2722, %v3801
      %4304 = vst.msk [vmem:[%s863 + $0x62] sm:$0xc0] %vm2719, %v3802
      %4305 = vst.msk [vmem:[%s863 + $0x6a] sm:$0xff] %vm853, %v3803
      %4306 = vst.msk [vmem:[%s863 + $0x72] sm:$0x3f] %vm2722, %v3804
      %4307 = vst.msk [vmem:[%s863 + $0x82] sm:$0xc0] %vm2719, %v3805
      %4308 = vst.msk [vmem:[%s863 + $0x8a] sm:$0xff] %vm853, %v3806
      %4309 = vst.msk [vmem:[%s863 + $0x92] sm:$0x3f] %vm2722, %v3807
      %4310 = vst.msk [vmem:[%s863 + $0xa2] sm:$0xc0] %vm2719, %v3808
      %4311 = vst.msk [vmem:[%s863 + $0xaa] sm:$0xff] %vm853, %v3809
      %4312 = vst.msk [vmem:[%s863 + $0xb2] sm:$0x3f] %vm2722, %v3810
      %4313 = vst.msk [vmem:[%s863 + $0xc2] sm:$0xc0] %vm2719, %v3811
      %4314 = vst.msk [vmem:[%s863 + $0xca] sm:$0xff] %vm853, %v3812
      %4315 = vst.msk [vmem:[%s863 + $0xd2] sm:$0x3f] %vm2722, %v3813
      %4316 = vst.msk [vmem:[%s863 + $0xe2] sm:$0xc0] %vm2719, %v3814
      %4317 = vst.msk [vmem:[%s863 + $0xea] sm:$0xff] %vm853, %v3815
      %4318 = vst.msk [vmem:[%s863 + $0xf2] sm:$0x3f] %vm2722, %v3816
      %4319 = vst.msk [vmem:[%s863 + $0x102] sm:$0xc0] %vm2719, %v3817
      %4320 = vst.msk [vmem:[%s863 + $0x10a] sm:$0xff] %vm853, %v3818
      %4321 = vst.msk [vmem:[%s863 + $0x112] sm:$0x3f] %vm2722, %v3819
      %4322 = vst.msk [vmem:[%s863 + $0x122] sm:$0xc0] %vm2719, %v3820
      %4323 = vst.msk [vmem:[%s863 + $0x12a] sm:$0xff] %vm853, %v3821
      %4324 = vst.msk [vmem:[%s863 + $0x132] sm:$0x3f] %vm2722, %v3822
      %4325 = vst.msk [vmem:[%s863 + $0x142] sm:$0xc0] %vm2719, %v3823
      %4326 = vst.msk [vmem:[%s863 + $0x14a] sm:$0xff] %vm853, %v3824
      %4327 = vst.msk [vmem:[%s863 + $0x152] sm:$0x3f] %vm2722, %v3825
      %4328 = vst.msk [vmem:[%s863 + $0x162] sm:$0xc0] %vm2719, %v3826
      %4329 = vst.msk [vmem:[%s863 + $0x16a] sm:$0xff] %vm853, %v3827
      %4330 = vst.msk [vmem:[%s863 + $0x172] sm:$0x3f] %vm2722, %v3828
      %4331 = vst.msk [vmem:[%s863 + $0x182] sm:$0xc0] %vm2719, %v3829
      %4332 = vst.msk [vmem:[%s863 + $0x18a] sm:$0xff] %vm853, %v3830
      %4333 = vst.msk [vmem:[%s863 + $0x192] sm:$0x3f] %vm2722, %v3831
      %4334 = vst.msk [vmem:[%s863 + $0x1a2] sm:$0xc0] %vm2719, %v3832
      %4335 = vst.msk [vmem:[%s863 + $0x1aa] sm:$0xff] %vm853, %v3833
      %4336 = vst.msk [vmem:[%s863 + $0x1b2] sm:$0x3f] %vm2722, %v3834
      %4337 = vst.msk [vmem:[%s863 + $0x1c2] sm:$0xc0] %vm2719, %v3835
      %4338 = vst.msk [vmem:[%s863 + $0x1ca] sm:$0xff] %vm853, %v3836
      %4339 = vst.msk [vmem:[%s863 + $0x1d2] sm:$0x3f] %vm2722, %v3837
      %4340 = vst.msk [vmem:[%s863 + $0x1e2] sm:$0xc0] %vm2719, %v3838
      %4341 = vst.msk [vmem:[%s863 + $0x1ea] sm:$0xff] %vm853, %v3839
      %4342 = vst.msk [vmem:[%s863 + $0x1f2] sm:$0x3f] %vm2722, %v3840
      %v4343 = vld [vmem:[#allocation2] sm:$0xff]
      %v4344 = vld [vmem:[#allocation2 + $0x8] sm:$0xff]
      %v4345 = vld [vmem:[#allocation2 + $0x10] sm:$0xff]
      %v4346 = vld [vmem:[#allocation2 + $0x18] sm:$0xff]
      %v4347 = vld [vmem:[#allocation2 + $0x20] sm:$0xff]
      %v4348 = vld [vmem:[#allocation2 + $0x28] sm:$0xff]
      %v4349 = vld [vmem:[#allocation2 + $0x30] sm:$0xff]
      %v4350 = vld [vmem:[#allocation2 + $0x38] sm:$0xff]
      %v4351 = vld [vmem:[#allocation2 + $0x40] sm:$0xff]
      %v4352 = vld [vmem:[#allocation2 + $0x48] sm:$0xff]
      %v4353 = vld [vmem:[#allocation2 + $0x50] sm:$0xff]
      %v4354 = vld [vmem:[#allocation2 + $0x58] sm:$0xff]
      %v4355 = vld [vmem:[#allocation2 + $0x60] sm:$0xff]
      %v4356 = vld [vmem:[#allocation2 + $0x68] sm:$0xff]
      %v4357 = vld [vmem:[#allocation2 + $0x70] sm:$0xff]
      %v4358 = vld [vmem:[#allocation2 + $0x78] sm:$0xff]
      %v4359 = vld [vmem:[#allocation2 + $0x80] sm:$0xff]
      %v4360 = vld [vmem:[#allocation2 + $0x88] sm:$0xff]
      %v4361 = vld [vmem:[#allocation2 + $0x90] sm:$0xff]
      %v4362 = vld [vmem:[#allocation2 + $0x98] sm:$0xff]
      %v4363 = vld [vmem:[#allocation2 + $0xa0] sm:$0xff]
      %v4364 = vld [vmem:[#allocation2 + $0xa8] sm:$0xff]
      %v4365 = vld [vmem:[#allocation2 + $0xb0] sm:$0xff]
      %v4366 = vld [vmem:[#allocation2 + $0xb8] sm:$0xff]
      %v4367 = vld [vmem:[#allocation2 + $0xc0] sm:$0xff]
      %v4368 = vld [vmem:[#allocation2 + $0xc8] sm:$0xff]
      %v4369 = vld [vmem:[#allocation2 + $0xd0] sm:$0xff]
      %v4370 = vld [vmem:[#allocation2 + $0xd8] sm:$0xff]
      %v4371 = vld [vmem:[#allocation2 + $0xe0] sm:$0xff]
      %v4372 = vld [vmem:[#allocation2 + $0xe8] sm:$0xff]
      %v4373 = vld [vmem:[#allocation2 + $0xf0] sm:$0xff]
      %v4374 = vld [vmem:[#allocation2 + $0xf8] sm:$0xff]
      %v4375 = vld [vmem:[#allocation2 + $0x100] sm:$0xff]
      %v4376 = vld [vmem:[#allocation2 + $0x108] sm:$0xff]
      %v4377 = vld [vmem:[#allocation2 + $0x110] sm:$0xff]
      %v4378 = vld [vmem:[#allocation2 + $0x118] sm:$0xff]
      %v4379 = vld [vmem:[#allocation2 + $0x120] sm:$0xff]
      %v4380 = vld [vmem:[#allocation2 + $0x128] sm:$0xff]
      %v4381 = vld [vmem:[#allocation2 + $0x130] sm:$0xff]
      %v4382 = vld [vmem:[#allocation2 + $0x138] sm:$0xff]
      %v4383 = vld [vmem:[#allocation2 + $0x140] sm:$0xff]
      %v4384 = vld [vmem:[#allocation2 + $0x148] sm:$0xff]
      %v4385 = vld [vmem:[#allocation2 + $0x150] sm:$0xff]
      %v4386 = vld [vmem:[#allocation2 + $0x158] sm:$0xff]
      %v4387 = vld [vmem:[#allocation2 + $0x160] sm:$0xff]
      %v4388 = vld [vmem:[#allocation2 + $0x168] sm:$0xff]
      %v4389 = vld [vmem:[#allocation2 + $0x170] sm:$0xff]
      %v4390 = vld [vmem:[#allocation2 + $0x178] sm:$0xff]
      %v4391 = vld [vmem:[#allocation2 + $0x180] sm:$0xff]
      %v4392 = vld [vmem:[#allocation2 + $0x188] sm:$0xff]
      %v4393 = vld [vmem:[#allocation2 + $0x190] sm:$0xff]
      %v4394 = vld [vmem:[#allocation2 + $0x198] sm:$0xff]
      %v4395 = vld [vmem:[#allocation2 + $0x1a0] sm:$0xff]
      %v4396 = vld [vmem:[#allocation2 + $0x1a8] sm:$0xff]
      %v4397 = vld [vmem:[#allocation2 + $0x1b0] sm:$0xff]
      %v4398 = vld [vmem:[#allocation2 + $0x1b8] sm:$0xff]
      %v4399 = vld [vmem:[#allocation2 + $0x1c0] sm:$0xff]
      %v4400 = vld [vmem:[#allocation2 + $0x1c8] sm:$0xff]
      %v4401 = vld [vmem:[#allocation2 + $0x1d0] sm:$0xff]
      %v4402 = vld [vmem:[#allocation2 + $0x1d8] sm:$0xff]
      %v4403 = vld [vmem:[#allocation2 + $0x1e0] sm:$0xff]
      %v4404 = vld [vmem:[#allocation2 + $0x1e8] sm:$0xff]
      %v4405 = vld [vmem:[#allocation2 + $0x1f0] sm:$0xff]
      %v4406 = vld [vmem:[#allocation2 + $0x1f8] sm:$0xff]
      %v4407 = vld [vmem:[#allocation2 + $0x200] sm:$0xff]
      %v4408 = vld [vmem:[#allocation2 + $0x208] sm:$0xff]
      %v4409 = vld [vmem:[#allocation2 + $0x210] sm:$0xff]
      %v4410 = vld [vmem:[#allocation2 + $0x218] sm:$0xff]
      %v4411 = vld [vmem:[#allocation2 + $0x220] sm:$0xff]
      %v4412 = vld [vmem:[#allocation2 + $0x228] sm:$0xff]
      %v4413 = vld [vmem:[#allocation2 + $0x230] sm:$0xff]
      %v4414 = vld [vmem:[#allocation2 + $0x238] sm:$0xff]
      %v4415 = vld [vmem:[#allocation2 + $0x240] sm:$0xff]
      %v4416 = vld [vmem:[#allocation2 + $0x248] sm:$0xff]
      %v4417 = vld [vmem:[#allocation2 + $0x250] sm:$0xff]
      %v4418 = vld [vmem:[#allocation2 + $0x258] sm:$0xff]
      %v4419 = vld [vmem:[#allocation2 + $0x260] sm:$0xff]
      %v4420 = vld [vmem:[#allocation2 + $0x268] sm:$0xff]
      %v4421 = vld [vmem:[#allocation2 + $0x270] sm:$0xff]
      %v4422 = vld [vmem:[#allocation2 + $0x278] sm:$0xff]
      %v4423 = vmax.f32 %v4343, %v4347
      %v4424 = vmax.f32 %v4344, %v4348
      %v4425 = vmax.f32 %v4345, %v4349
      %v4426 = vmax.f32 %v4346, %v4350
      %v4427 = vmax.f32 %v4347, %v4351
      %v4428 = vmax.f32 %v4348, %v4352
      %v4429 = vmax.f32 %v4349, %v4353
      %v4430 = vmax.f32 %v4350, %v4354
      %v4431 = vmax.f32 %v4351, %v4355
      %v4432 = vmax.f32 %v4352, %v4356
      %v4433 = vmax.f32 %v4353, %v4357
      %v4434 = vmax.f32 %v4354, %v4358
      %v4435 = vmax.f32 %v4355, %v4359
      %v4436 = vmax.f32 %v4356, %v4360
      %v4437 = vmax.f32 %v4357, %v4361
      %v4438 = vmax.f32 %v4358, %v4362
      %v4439 = vmax.f32 %v4359, %v4363
      %v4440 = vmax.f32 %v4360, %v4364
      %v4441 = vmax.f32 %v4361, %v4365
      %v4442 = vmax.f32 %v4362, %v4366
      %v4443 = vmax.f32 %v4363, %v4367
      %v4444 = vmax.f32 %v4364, %v4368
      %v4445 = vmax.f32 %v4365, %v4369
      %v4446 = vmax.f32 %v4366, %v4370
      %v4447 = vmax.f32 %v4367, %v4371
      %v4448 = vmax.f32 %v4368, %v4372
      %v4449 = vmax.f32 %v4369, %v4373
      %v4450 = vmax.f32 %v4370, %v4374
      %v4451 = vmax.f32 %v4371, %v4375
      %v4452 = vmax.f32 %v4372, %v4376
      %v4453 = vmax.f32 %v4373, %v4377
      %v4454 = vmax.f32 %v4374, %v4378
      %v4455 = vmax.f32 %v4375, %v4379
      %v4456 = vmax.f32 %v4376, %v4380
      %v4457 = vmax.f32 %v4377, %v4381
      %v4458 = vmax.f32 %v4378, %v4382
      %v4459 = vmax.f32 %v4379, %v4383
      %v4460 = vmax.f32 %v4380, %v4384
      %v4461 = vmax.f32 %v4381, %v4385
      %v4462 = vmax.f32 %v4382, %v4386
      %v4463 = vmax.f32 %v4383, %v4387
      %v4464 = vmax.f32 %v4384, %v4388
      %v4465 = vmax.f32 %v4385, %v4389
      %v4466 = vmax.f32 %v4386, %v4390
      %v4467 = vmax.f32 %v4387, %v4391
      %v4468 = vmax.f32 %v4388, %v4392
      %v4469 = vmax.f32 %v4389, %v4393
      %v4470 = vmax.f32 %v4390, %v4394
      %v4471 = vmax.f32 %v4391, %v4395
      %v4472 = vmax.f32 %v4392, %v4396
      %v4473 = vmax.f32 %v4393, %v4397
      %v4474 = vmax.f32 %v4394, %v4398
      %v4475 = vmax.f32 %v4395, %v4399
      %v4476 = vmax.f32 %v4396, %v4400
      %v4477 = vmax.f32 %v4397, %v4401
      %v4478 = vmax.f32 %v4398, %v4402
      %v4479 = vmax.f32 %v4399, %v4403
      %v4480 = vmax.f32 %v4400, %v4404
      %v4481 = vmax.f32 %v4401, %v4405
      %v4482 = vmax.f32 %v4402, %v4406
      %v4483 = vmax.f32 %v4403, %v4407
      %v4484 = vmax.f32 %v4404, %v4408
      %v4485 = vmax.f32 %v4405, %v4409
      %v4486 = vmax.f32 %v4406, %v4410
      %v4487 = vmax.f32 %v4423, %v4351
      %v4488 = vmax.f32 %v4424, %v4352
      %v4489 = vmax.f32 %v4425, %v4353
      %v4490 = vmax.f32 %v4426, %v4354
      %v4491 = vmax.f32 %v4427, %v4355
      %v4492 = vmax.f32 %v4428, %v4356
      %v4493 = vmax.f32 %v4429, %v4357
      %v4494 = vmax.f32 %v4430, %v4358
      %v4495 = vmax.f32 %v4431, %v4359
      %v4496 = vmax.f32 %v4432, %v4360
      %v4497 = vmax.f32 %v4433, %v4361
      %v4498 = vmax.f32 %v4434, %v4362
      %v4499 = vmax.f32 %v4435, %v4363
      %v4500 = vmax.f32 %v4436, %v4364
      %v4501 = vmax.f32 %v4437, %v4365
      %v4502 = vmax.f32 %v4438, %v4366
      %v4503 = vmax.f32 %v4439, %v4367
      %v4504 = vmax.f32 %v4440, %v4368
      %v4505 = vmax.f32 %v4441, %v4369
      %v4506 = vmax.f32 %v4442, %v4370
      %v4507 = vmax.f32 %v4443, %v4371
      %v4508 = vmax.f32 %v4444, %v4372
      %v4509 = vmax.f32 %v4445, %v4373
      %v4510 = vmax.f32 %v4446, %v4374
      %v4511 = vmax.f32 %v4447, %v4375
      %v4512 = vmax.f32 %v4448, %v4376
      %v4513 = vmax.f32 %v4449, %v4377
      %v4514 = vmax.f32 %v4450, %v4378
      %v4515 = vmax.f32 %v4451, %v4379
      %v4516 = vmax.f32 %v4452, %v4380
      %v4517 = vmax.f32 %v4453, %v4381
      %v4518 = vmax.f32 %v4454, %v4382
      %v4519 = vmax.f32 %v4455, %v4383
      %v4520 = vmax.f32 %v4456, %v4384
      %v4521 = vmax.f32 %v4457, %v4385
      %v4522 = vmax.f32 %v4458, %v4386
      %v4523 = vmax.f32 %v4459, %v4387
      %v4524 = vmax.f32 %v4460, %v4388
      %v4525 = vmax.f32 %v4461, %v4389
      %v4526 = vmax.f32 %v4462, %v4390
      %v4527 = vmax.f32 %v4463, %v4391
      %v4528 = vmax.f32 %v4464, %v4392
      %v4529 = vmax.f32 %v4465, %v4393
      %v4530 = vmax.f32 %v4466, %v4394
      %v4531 = vmax.f32 %v4467, %v4395
      %v4532 = vmax.f32 %v4468, %v4396
      %v4533 = vmax.f32 %v4469, %v4397
      %v4534 = vmax.f32 %v4470, %v4398
      %v4535 = vmax.f32 %v4471, %v4399
      %v4536 = vmax.f32 %v4472, %v4400
      %v4537 = vmax.f32 %v4473, %v4401
      %v4538 = vmax.f32 %v4474, %v4402
      %v4539 = vmax.f32 %v4475, %v4403
      %v4540 = vmax.f32 %v4476, %v4404
      %v4541 = vmax.f32 %v4477, %v4405
      %v4542 = vmax.f32 %v4478, %v4406
      %v4543 = vmax.f32 %v4479, %v4407
      %v4544 = vmax.f32 %v4480, %v4408
      %v4545 = vmax.f32 %v4481, %v4409
      %v4546 = vmax.f32 %v4482, %v4410
      %v4547 = vmax.f32 %v4483, %v4411
      %v4548 = vmax.f32 %v4484, %v4412
      %v4549 = vmax.f32 %v4485, %v4413
      %v4550 = vmax.f32 %v4486, %v4414
      %v4551 = vmax.f32 %v4487, %v4355
      %v4552 = vmax.f32 %v4488, %v4356
      %v4553 = vmax.f32 %v4489, %v4357
      %v4554 = vmax.f32 %v4490, %v4358
      %v4555 = vmax.f32 %v4491, %v4359
      %v4556 = vmax.f32 %v4492, %v4360
      %v4557 = vmax.f32 %v4493, %v4361
      %v4558 = vmax.f32 %v4494, %v4362
      %v4559 = vmax.f32 %v4495, %v4363
      %v4560 = vmax.f32 %v4496, %v4364
      %v4561 = vmax.f32 %v4497, %v4365
      %v4562 = vmax.f32 %v4498, %v4366
      %v4563 = vmax.f32 %v4499, %v4367
      %v4564 = vmax.f32 %v4500, %v4368
      %v4565 = vmax.f32 %v4501, %v4369
      %v4566 = vmax.f32 %v4502, %v4370
      %v4567 = vmax.f32 %v4503, %v4371
      %v4568 = vmax.f32 %v4504, %v4372
      %v4569 = vmax.f32 %v4505, %v4373
      %v4570 = vmax.f32 %v4506, %v4374
      %v4571 = vmax.f32 %v4507, %v4375
      %v4572 = vmax.f32 %v4508, %v4376
      %v4573 = vmax.f32 %v4509, %v4377
      %v4574 = vmax.f32 %v4510, %v4378
      %v4575 = vmax.f32 %v4511, %v4379
      %v4576 = vmax.f32 %v4512, %v4380
      %v4577 = vmax.f32 %v4513, %v4381
      %v4578 = vmax.f32 %v4514, %v4382
      %v4579 = vmax.f32 %v4515, %v4383
      %v4580 = vmax.f32 %v4516, %v4384
      %v4581 = vmax.f32 %v4517, %v4385
      %v4582 = vmax.f32 %v4518, %v4386
      %v4583 = vmax.f32 %v4519, %v4387
      %v4584 = vmax.f32 %v4520, %v4388
      %v4585 = vmax.f32 %v4521, %v4389
      %v4586 = vmax.f32 %v4522, %v4390
      %v4587 = vmax.f32 %v4523, %v4391
      %v4588 = vmax.f32 %v4524, %v4392
      %v4589 = vmax.f32 %v4525, %v4393
      %v4590 = vmax.f32 %v4526, %v4394
      %v4591 = vmax.f32 %v4527, %v4395
      %v4592 = vmax.f32 %v4528, %v4396
      %v4593 = vmax.f32 %v4529, %v4397
      %v4594 = vmax.f32 %v4530, %v4398
      %v4595 = vmax.f32 %v4531, %v4399
      %v4596 = vmax.f32 %v4532, %v4400
      %v4597 = vmax.f32 %v4533, %v4401
      %v4598 = vmax.f32 %v4534, %v4402
      %v4599 = vmax.f32 %v4535, %v4403
      %v4600 = vmax.f32 %v4536, %v4404
      %v4601 = vmax.f32 %v4537, %v4405
      %v4602 = vmax.f32 %v4538, %v4406
      %v4603 = vmax.f32 %v4539, %v4407
      %v4604 = vmax.f32 %v4540, %v4408
      %v4605 = vmax.f32 %v4541, %v4409
      %v4606 = vmax.f32 %v4542, %v4410
      %v4607 = vmax.f32 %v4543, %v4411
      %v4608 = vmax.f32 %v4544, %v4412
      %v4609 = vmax.f32 %v4545, %v4413
      %v4610 = vmax.f32 %v4546, %v4414
      %v4611 = vmax.f32 %v4547, %v4415
      %v4612 = vmax.f32 %v4548, %v4416
      %v4613 = vmax.f32 %v4549, %v4417
      %v4614 = vmax.f32 %v4550, %v4418
      %v4615 = vmax.f32 %v4551, %v4359
      %v4616 = vmax.f32 %v4552, %v4360
      %v4617 = vmax.f32 %v4553, %v4361
      %v4618 = vmax.f32 %v4554, %v4362
      %v4619 = vmax.f32 %v4555, %v4363
      %v4620 = vmax.f32 %v4556, %v4364
      %v4621 = vmax.f32 %v4557, %v4365
      %v4622 = vmax.f32 %v4558, %v4366
      %v4623 = vmax.f32 %v4559, %v4367
      %v4624 = vmax.f32 %v4560, %v4368
      %v4625 = vmax.f32 %v4561, %v4369
      %v4626 = vmax.f32 %v4562, %v4370
      %v4627 = vmax.f32 %v4563, %v4371
      %v4628 = vmax.f32 %v4564, %v4372
      %v4629 = vmax.f32 %v4565, %v4373
      %v4630 = vmax.f32 %v4566, %v4374
      %v4631 = vmax.f32 %v4567, %v4375
      %v4632 = vmax.f32 %v4568, %v4376
      %v4633 = vmax.f32 %v4569, %v4377
      %v4634 = vmax.f32 %v4570, %v4378
      %v4635 = vmax.f32 %v4571, %v4379
      %v4636 = vmax.f32 %v4572, %v4380
      %v4637 = vmax.f32 %v4573, %v4381
      %v4638 = vmax.f32 %v4574, %v4382
      %v4639 = vmax.f32 %v4575, %v4383
      %v4640 = vmax.f32 %v4576, %v4384
      %v4641 = vmax.f32 %v4577, %v4385
      %v4642 = vmax.f32 %v4578, %v4386
      %v4643 = vmax.f32 %v4579, %v4387
      %v4644 = vmax.f32 %v4580, %v4388
      %v4645 = vmax.f32 %v4581, %v4389
      %v4646 = vmax.f32 %v4582, %v4390
      %v4647 = vmax.f32 %v4583, %v4391
      %v4648 = vmax.f32 %v4584, %v4392
      %v4649 = vmax.f32 %v4585, %v4393
      %v4650 = vmax.f32 %v4586, %v4394
      %v4651 = vmax.f32 %v4587, %v4395
      %v4652 = vmax.f32 %v4588, %v4396
      %v4653 = vmax.f32 %v4589, %v4397
      %v4654 = vmax.f32 %v4590, %v4398
      %v4655 = vmax.f32 %v4591, %v4399
      %v4656 = vmax.f32 %v4592, %v4400
      %v4657 = vmax.f32 %v4593, %v4401
      %v4658 = vmax.f32 %v4594, %v4402
      %v4659 = vmax.f32 %v4595, %v4403
      %v4660 = vmax.f32 %v4596, %v4404
      %v4661 = vmax.f32 %v4597, %v4405
      %v4662 = vmax.f32 %v4598, %v4406
      %v4663 = vmax.f32 %v4599, %v4407
      %v4664 = vmax.f32 %v4600, %v4408
      %v4665 = vmax.f32 %v4601, %v4409
      %v4666 = vmax.f32 %v4602, %v4410
      %v4667 = vmax.f32 %v4603, %v4411
      %v4668 = vmax.f32 %v4604, %v4412
      %v4669 = vmax.f32 %v4605, %v4413
      %v4670 = vmax.f32 %v4606, %v4414
      %v4671 = vmax.f32 %v4607, %v4415
      %v4672 = vmax.f32 %v4608, %v4416
      %v4673 = vmax.f32 %v4609, %v4417
      %v4674 = vmax.f32 %v4610, %v4418
      %v4675 = vmax.f32 %v4611, %v4419
      %v4676 = vmax.f32 %v4612, %v4420
      %v4677 = vmax.f32 %v4613, %v4421
      %v4678 = vmax.f32 %v4614, %v4422
      %v4727 = vrot.slane %v4615, 1
      %v4728 = vrot.slane %v4616, 1
      %v4729 = vsel %vm1280, %v4727, %v4728
      %v4730 = vrot.slane %v4617, 1
      %v4731 = vsel %vm1280, %v4728, %v4730
      %v4732 = vrot.slane %v4619, 1
      %v4733 = vrot.slane %v4620, 1
      %v4734 = vsel %vm1280, %v4732, %v4733
      %v4735 = vrot.slane %v4621, 1
      %v4736 = vsel %vm1280, %v4733, %v4735
      %v4737 = vrot.slane %v4623, 1
      %v4738 = vrot.slane %v4624, 1
      %v4739 = vsel %vm1280, %v4737, %v4738
      %v4740 = vrot.slane %v4625, 1
      %v4741 = vsel %vm1280, %v4738, %v4740
      %v4742 = vrot.slane %v4627, 1
      %v4743 = vrot.slane %v4628, 1
      %v4744 = vsel %vm1280, %v4742, %v4743
      %v4745 = vrot.slane %v4629, 1
      %v4746 = vsel %vm1280, %v4743, %v4745
      %v4747 = vrot.slane %v4631, 1
      %v4748 = vrot.slane %v4632, 1
      %v4749 = vsel %vm1280, %v4747, %v4748
      %v4750 = vrot.slane %v4633, 1
      %v4751 = vsel %vm1280, %v4748, %v4750
      %v4752 = vrot.slane %v4635, 1
      %v4753 = vrot.slane %v4636, 1
      %v4754 = vsel %vm1280, %v4752, %v4753
      %v4755 = vrot.slane %v4637, 1
      %v4756 = vsel %vm1280, %v4753, %v4755
      %v4757 = vrot.slane %v4639, 1
      %v4758 = vrot.slane %v4640, 1
      %v4759 = vsel %vm1280, %v4757, %v4758
      %v4760 = vrot.slane %v4641, 1
      %v4761 = vsel %vm1280, %v4758, %v4760
      %v4762 = vrot.slane %v4643, 1
      %v4763 = vrot.slane %v4644, 1
      %v4764 = vsel %vm1280, %v4762, %v4763
      %v4765 = vrot.slane %v4645, 1
      %v4766 = vsel %vm1280, %v4763, %v4765
      %v4767 = vrot.slane %v4647, 1
      %v4768 = vrot.slane %v4648, 1
      %v4769 = vsel %vm1280, %v4767, %v4768
      %v4770 = vrot.slane %v4649, 1
      %v4771 = vsel %vm1280, %v4768, %v4770
      %v4772 = vrot.slane %v4651, 1
      %v4773 = vrot.slane %v4652, 1
      %v4774 = vsel %vm1280, %v4772, %v4773
      %v4775 = vrot.slane %v4653, 1
      %v4776 = vsel %vm1280, %v4773, %v4775
      %v4777 = vrot.slane %v4655, 1
      %v4778 = vrot.slane %v4656, 1
      %v4779 = vsel %vm1280, %v4777, %v4778
      %v4780 = vrot.slane %v4657, 1
      %v4781 = vsel %vm1280, %v4778, %v4780
      %v4782 = vrot.slane %v4659, 1
      %v4783 = vrot.slane %v4660, 1
      %v4784 = vsel %vm1280, %v4782, %v4783
      %v4785 = vrot.slane %v4661, 1
      %v4786 = vsel %vm1280, %v4783, %v4785
      %v4787 = vrot.slane %v4663, 1
      %v4788 = vrot.slane %v4664, 1
      %v4789 = vsel %vm1280, %v4787, %v4788
      %v4790 = vrot.slane %v4665, 1
      %v4791 = vsel %vm1280, %v4788, %v4790
      %v4792 = vrot.slane %v4667, 1
      %v4793 = vrot.slane %v4668, 1
      %v4794 = vsel %vm1280, %v4792, %v4793
      %v4795 = vrot.slane %v4669, 1
      %v4796 = vsel %vm1280, %v4793, %v4795
      %v4797 = vrot.slane %v4671, 1
      %v4798 = vrot.slane %v4672, 1
      %v4799 = vsel %vm1280, %v4797, %v4798
      %v4800 = vrot.slane %v4673, 1
      %v4801 = vsel %vm1280, %v4798, %v4800
      %v4802 = vrot.slane %v4675, 1
      %v4803 = vrot.slane %v4676, 1
      %v4804 = vsel %vm1280, %v4802, %v4803
      %v4805 = vrot.slane %v4677, 1
      %v4806 = vsel %vm1280, %v4803, %v4805
      %v4855 = vmax.f32 %v4615, %v4729
      %v4856 = vmax.f32 %v4616, %v4731
      %v4857 = vmax.f32 %v4617, %v4730
      %v4858 = vmax.f32 %v4619, %v4734
      %v4859 = vmax.f32 %v4620, %v4736
      %v4860 = vmax.f32 %v4621, %v4735
      %v4861 = vmax.f32 %v4623, %v4739
      %v4862 = vmax.f32 %v4624, %v4741
      %v4863 = vmax.f32 %v4625, %v4740
      %v4864 = vmax.f32 %v4627, %v4744
      %v4865 = vmax.f32 %v4628, %v4746
      %v4866 = vmax.f32 %v4629, %v4745
      %v4867 = vmax.f32 %v4631, %v4749
      %v4868 = vmax.f32 %v4632, %v4751
      %v4869 = vmax.f32 %v4633, %v4750
      %v4870 = vmax.f32 %v4635, %v4754
      %v4871 = vmax.f32 %v4636, %v4756
      %v4872 = vmax.f32 %v4637, %v4755
      %v4873 = vmax.f32 %v4639, %v4759
      %v4874 = vmax.f32 %v4640, %v4761
      %v4875 = vmax.f32 %v4641, %v4760
      %v4876 = vmax.f32 %v4643, %v4764
      %v4877 = vmax.f32 %v4644, %v4766
      %v4878 = vmax.f32 %v4645, %v4765
      %v4879 = vmax.f32 %v4647, %v4769
      %v4880 = vmax.f32 %v4648, %v4771
      %v4881 = vmax.f32 %v4649, %v4770
      %v4882 = vmax.f32 %v4651, %v4774
      %v4883 = vmax.f32 %v4652, %v4776
      %v4884 = vmax.f32 %v4653, %v4775
      %v4885 = vmax.f32 %v4655, %v4779
      %v4886 = vmax.f32 %v4656, %v4781
      %v4887 = vmax.f32 %v4657, %v4780
      %v4888 = vmax.f32 %v4659, %v4784
      %v4889 = vmax.f32 %v4660, %v4786
      %v4890 = vmax.f32 %v4661, %v4785
      %v4891 = vmax.f32 %v4663, %v4789
      %v4892 = vmax.f32 %v4664, %v4791
      %v4893 = vmax.f32 %v4665, %v4790
      %v4894 = vmax.f32 %v4667, %v4794
      %v4895 = vmax.f32 %v4668, %v4796
      %v4896 = vmax.f32 %v4669, %v4795
      %v4897 = vmax.f32 %v4671, %v4799
      %v4898 = vmax.f32 %v4672, %v4801
      %v4899 = vmax.f32 %v4673, %v4800
      %v4900 = vmax.f32 %v4675, %v4804
      %v4901 = vmax.f32 %v4676, %v4806
      %v4902 = vmax.f32 %v4677, %v4805
      %v4903 = vrot.slane %v4616, 2
      %v4904 = vrot.slane %v4617, 2
      %v4905 = vsel %vm1457, %v4903, %v4904
      %v4906 = vrot.slane %v4620, 2
      %v4907 = vrot.slane %v4621, 2
      %v4908 = vsel %vm1457, %v4906, %v4907
      %v4909 = vrot.slane %v4624, 2
      %v4910 = vrot.slane %v4625, 2
      %v4911 = vsel %vm1457, %v4909, %v4910
      %v4912 = vrot.slane %v4628, 2
      %v4913 = vrot.slane %v4629, 2
      %v4914 = vsel %vm1457, %v4912, %v4913
      %v4915 = vrot.slane %v4632, 2
      %v4916 = vrot.slane %v4633, 2
      %v4917 = vsel %vm1457, %v4915, %v4916
      %v4918 = vrot.slane %v4636, 2
      %v4919 = vrot.slane %v4637, 2
      %v4920 = vsel %vm1457, %v4918, %v4919
      %v4921 = vrot.slane %v4640, 2
      %v4922 = vrot.slane %v4641, 2
      %v4923 = vsel %vm1457, %v4921, %v4922
      %v4924 = vrot.slane %v4644, 2
      %v4925 = vrot.slane %v4645, 2
      %v4926 = vsel %vm1457, %v4924, %v4925
      %v4927 = vrot.slane %v4648, 2
      %v4928 = vrot.slane %v4649, 2
      %v4929 = vsel %vm1457, %v4927, %v4928
      %v4930 = vrot.slane %v4652, 2
      %v4931 = vrot.slane %v4653, 2
      %v4932 = vsel %vm1457, %v4930, %v4931
      %v4933 = vrot.slane %v4656, 2
      %v4934 = vrot.slane %v4657, 2
      %v4935 = vsel %vm1457, %v4933, %v4934
      %v4936 = vrot.slane %v4660, 2
      %v4937 = vrot.slane %v4661, 2
      %v4938 = vsel %vm1457, %v4936, %v4937
      %v4939 = vrot.slane %v4664, 2
      %v4940 = vrot.slane %v4665, 2
      %v4941 = vsel %vm1457, %v4939, %v4940
      %v4942 = vrot.slane %v4668, 2
      %v4943 = vrot.slane %v4669, 2
      %v4944 = vsel %vm1457, %v4942, %v4943
      %v4945 = vrot.slane %v4672, 2
      %v4946 = vrot.slane %v4673, 2
      %v4947 = vsel %vm1457, %v4945, %v4946
      %v4948 = vrot.slane %v4676, 2
      %v4949 = vrot.slane %v4677, 2
      %v4950 = vsel %vm1457, %v4948, %v4949
      %v4999 = vmax.f32 %v4855, %v4903
      %v5000 = vmax.f32 %v4856, %v4905
      %v5001 = vmax.f32 %v4857, %v4904
      %v5002 = vmax.f32 %v4858, %v4906
      %v5003 = vmax.f32 %v4859, %v4908
      %v5004 = vmax.f32 %v4860, %v4907
      %v5005 = vmax.f32 %v4861, %v4909
      %v5006 = vmax.f32 %v4862, %v4911
      %v5007 = vmax.f32 %v4863, %v4910
      %v5008 = vmax.f32 %v4864, %v4912
      %v5009 = vmax.f32 %v4865, %v4914
      %v5010 = vmax.f32 %v4866, %v4913
      %v5011 = vmax.f32 %v4867, %v4915
      %v5012 = vmax.f32 %v4868, %v4917
      %v5013 = vmax.f32 %v4869, %v4916
      %v5014 = vmax.f32 %v4870, %v4918
      %v5015 = vmax.f32 %v4871, %v4920
      %v5016 = vmax.f32 %v4872, %v4919
      %v5017 = vmax.f32 %v4873, %v4921
      %v5018 = vmax.f32 %v4874, %v4923
      %v5019 = vmax.f32 %v4875, %v4922
      %v5020 = vmax.f32 %v4876, %v4924
      %v5021 = vmax.f32 %v4877, %v4926
      %v5022 = vmax.f32 %v4878, %v4925
      %v5023 = vmax.f32 %v4879, %v4927
      %v5024 = vmax.f32 %v4880, %v4929
      %v5025 = vmax.f32 %v4881, %v4928
      %v5026 = vmax.f32 %v4882, %v4930
      %v5027 = vmax.f32 %v4883, %v4932
      %v5028 = vmax.f32 %v4884, %v4931
      %v5029 = vmax.f32 %v4885, %v4933
      %v5030 = vmax.f32 %v4886, %v4935
      %v5031 = vmax.f32 %v4887, %v4934
      %v5032 = vmax.f32 %v4888, %v4936
      %v5033 = vmax.f32 %v4889, %v4938
      %v5034 = vmax.f32 %v4890, %v4937
      %v5035 = vmax.f32 %v4891, %v4939
      %v5036 = vmax.f32 %v4892, %v4941
      %v5037 = vmax.f32 %v4893, %v4940
      %v5038 = vmax.f32 %v4894, %v4942
      %v5039 = vmax.f32 %v4895, %v4944
      %v5040 = vmax.f32 %v4896, %v4943
      %v5041 = vmax.f32 %v4897, %v4945
      %v5042 = vmax.f32 %v4898, %v4947
      %v5043 = vmax.f32 %v4899, %v4946
      %v5044 = vmax.f32 %v4900, %v4948
      %v5045 = vmax.f32 %v4901, %v4950
      %v5046 = vmax.f32 %v4902, %v4949
      %v5063 = vrot.slane %v4616, 3
      %v5064 = vrot.slane %v4617, 3
      %v5065 = vsel %vm1618, %v5063, %v5064
      %v5066 = vrot.slane %v4618, 3
      %v5067 = vsel %vm1618, %v5064, %v5066
      %v5068 = vrot.slane %v4620, 3
      %v5069 = vrot.slane %v4621, 3
      %v5070 = vsel %vm1618, %v5068, %v5069
      %v5071 = vrot.slane %v4622, 3
      %v5072 = vsel %vm1618, %v5069, %v5071
      %v5073 = vrot.slane %v4624, 3
      %v5074 = vrot.slane %v4625, 3
      %v5075 = vsel %vm1618, %v5073, %v5074
      %v5076 = vrot.slane %v4626, 3
      %v5077 = vsel %vm1618, %v5074, %v5076
      %v5078 = vrot.slane %v4628, 3
      %v5079 = vrot.slane %v4629, 3
      %v5080 = vsel %vm1618, %v5078, %v5079
      %v5081 = vrot.slane %v4630, 3
      %v5082 = vsel %vm1618, %v5079, %v5081
      %v5083 = vrot.slane %v4632, 3
      %v5084 = vrot.slane %v4633, 3
      %v5085 = vsel %vm1618, %v5083, %v5084
      %v5086 = vrot.slane %v4634, 3
      %v5087 = vsel %vm1618, %v5084, %v5086
      %v5088 = vrot.slane %v4636, 3
      %v5089 = vrot.slane %v4637, 3
      %v5090 = vsel %vm1618, %v5088, %v5089
      %v5091 = vrot.slane %v4638, 3
      %v5092 = vsel %vm1618, %v5089, %v5091
      %v5093 = vrot.slane %v4640, 3
      %v5094 = vrot.slane %v4641, 3
      %v5095 = vsel %vm1618, %v5093, %v5094
      %v5096 = vrot.slane %v4642, 3
      %v5097 = vsel %vm1618, %v5094, %v5096
      %v5098 = vrot.slane %v4644, 3
      %v5099 = vrot.slane %v4645, 3
      %v5100 = vsel %vm1618, %v5098, %v5099
      %v5101 = vrot.slane %v4646, 3
      %v5102 = vsel %vm1618, %v5099, %v5101
      %v5103 = vrot.slane %v4648, 3
      %v5104 = vrot.slane %v4649, 3
      %v5105 = vsel %vm1618, %v5103, %v5104
      %v5106 = vrot.slane %v4650, 3
      %v5107 = vsel %vm1618, %v5104, %v5106
      %v5108 = vrot.slane %v4652, 3
      %v5109 = vrot.slane %v4653, 3
      %v5110 = vsel %vm1618, %v5108, %v5109
      %v5111 = vrot.slane %v4654, 3
      %v5112 = vsel %vm1618, %v5109, %v5111
      %v5113 = vrot.slane %v4656, 3
      %v5114 = vrot.slane %v4657, 3
      %v5115 = vsel %vm1618, %v5113, %v5114
      %v5116 = vrot.slane %v4658, 3
      %v5117 = vsel %vm1618, %v5114, %v5116
      %v5118 = vrot.slane %v4660, 3
      %v5119 = vrot.slane %v4661, 3
      %v5120 = vsel %vm1618, %v5118, %v5119
      %v5121 = vrot.slane %v4662, 3
      %v5122 = vsel %vm1618, %v5119, %v5121
      %v5123 = vrot.slane %v4664, 3
      %v5124 = vrot.slane %v4665, 3
      %v5125 = vsel %vm1618, %v5123, %v5124
      %v5126 = vrot.slane %v4666, 3
      %v5127 = vsel %vm1618, %v5124, %v5126
      %v5128 = vrot.slane %v4668, 3
      %v5129 = vrot.slane %v4669, 3
      %v5130 = vsel %vm1618, %v5128, %v5129
      %v5131 = vrot.slane %v4670, 3
      %v5132 = vsel %vm1618, %v5129, %v5131
      %v5133 = vrot.slane %v4672, 3
      %v5134 = vrot.slane %v4673, 3
      %v5135 = vsel %vm1618, %v5133, %v5134
      %v5136 = vrot.slane %v4674, 3
      %v5137 = vsel %vm1618, %v5134, %v5136
      %v5138 = vrot.slane %v4676, 3
      %v5139 = vrot.slane %v4677, 3
      %v5140 = vsel %vm1618, %v5138, %v5139
      %v5141 = vrot.slane %v4678, 3
      %v5142 = vsel %vm1618, %v5139, %v5141
      %v5191 = vmax.f32 %v4999, %v5063
      %v5192 = vmax.f32 %v5000, %v5065
      %v5193 = vmax.f32 %v5001, %v5067
      %v5194 = vmax.f32 %v5002, %v5068
      %v5195 = vmax.f32 %v5003, %v5070
      %v5196 = vmax.f32 %v5004, %v5072
      %v5197 = vmax.f32 %v5005, %v5073
      %v5198 = vmax.f32 %v5006, %v5075
      %v5199 = vmax.f32 %v5007, %v5077
      %v5200 = vmax.f32 %v5008, %v5078
      %v5201 = vmax.f32 %v5009, %v5080
      %v5202 = vmax.f32 %v5010, %v5082
      %v5203 = vmax.f32 %v5011, %v5083
      %v5204 = vmax.f32 %v5012, %v5085
      %v5205 = vmax.f32 %v5013, %v5087
      %v5206 = vmax.f32 %v5014, %v5088
      %v5207 = vmax.f32 %v5015, %v5090
      %v5208 = vmax.f32 %v5016, %v5092
      %v5209 = vmax.f32 %v5017, %v5093
      %v5210 = vmax.f32 %v5018, %v5095
      %v5211 = vmax.f32 %v5019, %v5097
      %v5212 = vmax.f32 %v5020, %v5098
      %v5213 = vmax.f32 %v5021, %v5100
      %v5214 = vmax.f32 %v5022, %v5102
      %v5215 = vmax.f32 %v5023, %v5103
      %v5216 = vmax.f32 %v5024, %v5105
      %v5217 = vmax.f32 %v5025, %v5107
      %v5218 = vmax.f32 %v5026, %v5108
      %v5219 = vmax.f32 %v5027, %v5110
      %v5220 = vmax.f32 %v5028, %v5112
      %v5221 = vmax.f32 %v5029, %v5113
      %v5222 = vmax.f32 %v5030, %v5115
      %v5223 = vmax.f32 %v5031, %v5117
      %v5224 = vmax.f32 %v5032, %v5118
      %v5225 = vmax.f32 %v5033, %v5120
      %v5226 = vmax.f32 %v5034, %v5122
      %v5227 = vmax.f32 %v5035, %v5123
      %v5228 = vmax.f32 %v5036, %v5125
      %v5229 = vmax.f32 %v5037, %v5127
      %v5230 = vmax.f32 %v5038, %v5128
      %v5231 = vmax.f32 %v5039, %v5130
      %v5232 = vmax.f32 %v5040, %v5132
      %v5233 = vmax.f32 %v5041, %v5133
      %v5234 = vmax.f32 %v5042, %v5135
      %v5235 = vmax.f32 %v5043, %v5137
      %v5236 = vmax.f32 %v5044, %v5138
      %v5237 = vmax.f32 %v5045, %v5140
      %v5238 = vmax.f32 %v5046, %v5142
      %v5239 = vrot.slane %v4616, 4
      %v5240 = vrot.slane %v4617, 4
      %v5241 = vsel %vm1795, %v5239, %v5240
      %v5242 = vrot.slane %v4618, 4
      %v5243 = vsel %vm1795, %v5240, %v5242
      %v5244 = vrot.slane %v4620, 4
      %v5245 = vrot.slane %v4621, 4
      %v5246 = vsel %vm1795, %v5244, %v5245
      %v5247 = vrot.slane %v4622, 4
      %v5248 = vsel %vm1795, %v5245, %v5247
      %v5249 = vrot.slane %v4624, 4
      %v5250 = vrot.slane %v4625, 4
      %v5251 = vsel %vm1795, %v5249, %v5250
      %v5252 = vrot.slane %v4626, 4
      %v5253 = vsel %vm1795, %v5250, %v5252
      %v5254 = vrot.slane %v4628, 4
      %v5255 = vrot.slane %v4629, 4
      %v5256 = vsel %vm1795, %v5254, %v5255
      %v5257 = vrot.slane %v4630, 4
      %v5258 = vsel %vm1795, %v5255, %v5257
      %v5259 = vrot.slane %v4632, 4
      %v5260 = vrot.slane %v4633, 4
      %v5261 = vsel %vm1795, %v5259, %v5260
      %v5262 = vrot.slane %v4634, 4
      %v5263 = vsel %vm1795, %v5260, %v5262
      %v5264 = vrot.slane %v4636, 4
      %v5265 = vrot.slane %v4637, 4
      %v5266 = vsel %vm1795, %v5264, %v5265
      %v5267 = vrot.slane %v4638, 4
      %v5268 = vsel %vm1795, %v5265, %v5267
      %v5269 = vrot.slane %v4640, 4
      %v5270 = vrot.slane %v4641, 4
      %v5271 = vsel %vm1795, %v5269, %v5270
      %v5272 = vrot.slane %v4642, 4
      %v5273 = vsel %vm1795, %v5270, %v5272
      %v5274 = vrot.slane %v4644, 4
      %v5275 = vrot.slane %v4645, 4
      %v5276 = vsel %vm1795, %v5274, %v5275
      %v5277 = vrot.slane %v4646, 4
      %v5278 = vsel %vm1795, %v5275, %v5277
      %v5279 = vrot.slane %v4648, 4
      %v5280 = vrot.slane %v4649, 4
      %v5281 = vsel %vm1795, %v5279, %v5280
      %v5282 = vrot.slane %v4650, 4
      %v5283 = vsel %vm1795, %v5280, %v5282
      %v5284 = vrot.slane %v4652, 4
      %v5285 = vrot.slane %v4653, 4
      %v5286 = vsel %vm1795, %v5284, %v5285
      %v5287 = vrot.slane %v4654, 4
      %v5288 = vsel %vm1795, %v5285, %v5287
      %v5289 = vrot.slane %v4656, 4
      %v5290 = vrot.slane %v4657, 4
      %v5291 = vsel %vm1795, %v5289, %v5290
      %v5292 = vrot.slane %v4658, 4
      %v5293 = vsel %vm1795, %v5290, %v5292
      %v5294 = vrot.slane %v4660, 4
      %v5295 = vrot.slane %v4661, 4
      %v5296 = vsel %vm1795, %v5294, %v5295
      %v5297 = vrot.slane %v4662, 4
      %v5298 = vsel %vm1795, %v5295, %v5297
      %v5299 = vrot.slane %v4664, 4
      %v5300 = vrot.slane %v4665, 4
      %v5301 = vsel %vm1795, %v5299, %v5300
      %v5302 = vrot.slane %v4666, 4
      %v5303 = vsel %vm1795, %v5300, %v5302
      %v5304 = vrot.slane %v4668, 4
      %v5305 = vrot.slane %v4669, 4
      %v5306 = vsel %vm1795, %v5304, %v5305
      %v5307 = vrot.slane %v4670, 4
      %v5308 = vsel %vm1795, %v5305, %v5307
      %v5309 = vrot.slane %v4672, 4
      %v5310 = vrot.slane %v4673, 4
      %v5311 = vsel %vm1795, %v5309, %v5310
      %v5312 = vrot.slane %v4674, 4
      %v5313 = vsel %vm1795, %v5310, %v5312
      %v5314 = vrot.slane %v4676, 4
      %v5315 = vrot.slane %v4677, 4
      %v5316 = vsel %vm1795, %v5314, %v5315
      %v5317 = vrot.slane %v4678, 4
      %v5318 = vsel %vm1795, %v5315, %v5317
      %v5367 = vmax.f32 %v5191, %v5239
      %v5368 = vmax.f32 %v5192, %v5241
      %v5369 = vmax.f32 %v5193, %v5243
      %v5370 = vmax.f32 %v5194, %v5244
      %v5371 = vmax.f32 %v5195, %v5246
      %v5372 = vmax.f32 %v5196, %v5248
      %v5373 = vmax.f32 %v5197, %v5249
      %v5374 = vmax.f32 %v5198, %v5251
      %v5375 = vmax.f32 %v5199, %v5253
      %v5376 = vmax.f32 %v5200, %v5254
      %v5377 = vmax.f32 %v5201, %v5256
      %v5378 = vmax.f32 %v5202, %v5258
      %v5379 = vmax.f32 %v5203, %v5259
      %v5380 = vmax.f32 %v5204, %v5261
      %v5381 = vmax.f32 %v5205, %v5263
      %v5382 = vmax.f32 %v5206, %v5264
      %v5383 = vmax.f32 %v5207, %v5266
      %v5384 = vmax.f32 %v5208, %v5268
      %v5385 = vmax.f32 %v5209, %v5269
      %v5386 = vmax.f32 %v5210, %v5271
      %v5387 = vmax.f32 %v5211, %v5273
      %v5388 = vmax.f32 %v5212, %v5274
      %v5389 = vmax.f32 %v5213, %v5276
      %v5390 = vmax.f32 %v5214, %v5278
      %v5391 = vmax.f32 %v5215, %v5279
      %v5392 = vmax.f32 %v5216, %v5281
      %v5393 = vmax.f32 %v5217, %v5283
      %v5394 = vmax.f32 %v5218, %v5284
      %v5395 = vmax.f32 %v5219, %v5286
      %v5396 = vmax.f32 %v5220, %v5288
      %v5397 = vmax.f32 %v5221, %v5289
      %v5398 = vmax.f32 %v5222, %v5291
      %v5399 = vmax.f32 %v5223, %v5293
      %v5400 = vmax.f32 %v5224, %v5294
      %v5401 = vmax.f32 %v5225, %v5296
      %v5402 = vmax.f32 %v5226, %v5298
      %v5403 = vmax.f32 %v5227, %v5299
      %v5404 = vmax.f32 %v5228, %v5301
      %v5405 = vmax.f32 %v5229, %v5303
      %v5406 = vmax.f32 %v5230, %v5304
      %v5407 = vmax.f32 %v5231, %v5306
      %v5408 = vmax.f32 %v5232, %v5308
      %v5409 = vmax.f32 %v5233, %v5309
      %v5410 = vmax.f32 %v5234, %v5311
      %v5411 = vmax.f32 %v5235, %v5313
      %v5412 = vmax.f32 %v5236, %v5314
      %v5413 = vmax.f32 %v5237, %v5316
      %v5414 = vmax.f32 %v5238, %v5318
      %v5463 = vrot.slane %v5367, 6
      %v5464 = vrot.slane %v5368, 6
      %v5465 = vsel %vm2020, %v5463, %v5464
      %v5466 = vrot.slane %v5369, 6
      %v5467 = vsel %vm2020, %v5464, %v5466
      %v5468 = vrot.slane %v5370, 6
      %v5469 = vrot.slane %v5371, 6
      %v5470 = vsel %vm2020, %v5468, %v5469
      %v5471 = vrot.slane %v5372, 6
      %v5472 = vsel %vm2020, %v5469, %v5471
      %v5473 = vrot.slane %v5373, 6
      %v5474 = vrot.slane %v5374, 6
      %v5475 = vsel %vm2020, %v5473, %v5474
      %v5476 = vrot.slane %v5375, 6
      %v5477 = vsel %vm2020, %v5474, %v5476
      %v5478 = vrot.slane %v5376, 6
      %v5479 = vrot.slane %v5377, 6
      %v5480 = vsel %vm2020, %v5478, %v5479
      %v5481 = vrot.slane %v5378, 6
      %v5482 = vsel %vm2020, %v5479, %v5481
      %v5483 = vrot.slane %v5379, 6
      %v5484 = vrot.slane %v5380, 6
      %v5485 = vsel %vm2020, %v5483, %v5484
      %v5486 = vrot.slane %v5381, 6
      %v5487 = vsel %vm2020, %v5484, %v5486
      %v5488 = vrot.slane %v5382, 6
      %v5489 = vrot.slane %v5383, 6
      %v5490 = vsel %vm2020, %v5488, %v5489
      %v5491 = vrot.slane %v5384, 6
      %v5492 = vsel %vm2020, %v5489, %v5491
      %v5493 = vrot.slane %v5385, 6
      %v5494 = vrot.slane %v5386, 6
      %v5495 = vsel %vm2020, %v5493, %v5494
      %v5496 = vrot.slane %v5387, 6
      %v5497 = vsel %vm2020, %v5494, %v5496
      %v5498 = vrot.slane %v5388, 6
      %v5499 = vrot.slane %v5389, 6
      %v5500 = vsel %vm2020, %v5498, %v5499
      %v5501 = vrot.slane %v5390, 6
      %v5502 = vsel %vm2020, %v5499, %v5501
      %v5503 = vrot.slane %v5391, 6
      %v5504 = vrot.slane %v5392, 6
      %v5505 = vsel %vm2020, %v5503, %v5504
      %v5506 = vrot.slane %v5393, 6
      %v5507 = vsel %vm2020, %v5504, %v5506
      %v5508 = vrot.slane %v5394, 6
      %v5509 = vrot.slane %v5395, 6
      %v5510 = vsel %vm2020, %v5508, %v5509
      %v5511 = vrot.slane %v5396, 6
      %v5512 = vsel %vm2020, %v5509, %v5511
      %v5513 = vrot.slane %v5397, 6
      %v5514 = vrot.slane %v5398, 6
      %v5515 = vsel %vm2020, %v5513, %v5514
      %v5516 = vrot.slane %v5399, 6
      %v5517 = vsel %vm2020, %v5514, %v5516
      %v5518 = vrot.slane %v5400, 6
      %v5519 = vrot.slane %v5401, 6
      %v5520 = vsel %vm2020, %v5518, %v5519
      %v5521 = vrot.slane %v5402, 6
      %v5522 = vsel %vm2020, %v5519, %v5521
      %v5523 = vrot.slane %v5403, 6
      %v5524 = vrot.slane %v5404, 6
      %v5525 = vsel %vm2020, %v5523, %v5524
      %v5526 = vrot.slane %v5405, 6
      %v5527 = vsel %vm2020, %v5524, %v5526
      %v5528 = vrot.slane %v5406, 6
      %v5529 = vrot.slane %v5407, 6
      %v5530 = vsel %vm2020, %v5528, %v5529
      %v5531 = vrot.slane %v5408, 6
      %v5532 = vsel %vm2020, %v5529, %v5531
      %v5533 = vrot.slane %v5409, 6
      %v5534 = vrot.slane %v5410, 6
      %v5535 = vsel %vm2020, %v5533, %v5534
      %v5536 = vrot.slane %v5411, 6
      %v5537 = vsel %vm2020, %v5534, %v5536
      %v5538 = vrot.slane %v5412, 6
      %v5539 = vrot.slane %v5413, 6
      %v5540 = vsel %vm2020, %v5538, %v5539
      %v5541 = vrot.slane %v5414, 6
      %v5542 = vsel %vm2020, %v5539, %v5541
      %s5543 = scalar_lea.vmem %s3, 12
      %v5544 = vld [vmem:[%s5543] sm:$0xf]
      %v5545 = vsel %vm853, %v5465, 0
      %v5547 = vsel %vm853, %v5467, 0
      %v5549 = vsel %vm853, %v5470, 0
      %v5551 = vsel %vm853, %v5472, 0
      %v5553 = vsel %vm853, %v5475, 0
      %v5555 = vsel %vm853, %v5477, 0
      %v5557 = vsel %vm853, %v5480, 0
      %v5559 = vsel %vm853, %v5482, 0
      %v5561 = vsel %vm853, %v5485, 0
      %v5563 = vsel %vm853, %v5487, 0
      %v5565 = vsel %vm853, %v5490, 0
      %v5567 = vsel %vm853, %v5492, 0
      %v5569 = vsel %vm853, %v5495, 0
      %v5571 = vsel %vm853, %v5497, 0
      %v5573 = vsel %vm853, %v5500, 0
      %v5575 = vsel %vm853, %v5502, 0
      %v5577 = vsel %vm853, %v5505, 0
      %v5579 = vsel %vm853, %v5507, 0
      %v5581 = vsel %vm853, %v5510, 0
      %v5583 = vsel %vm853, %v5512, 0
      %v5585 = vsel %vm853, %v5515, 0
      %v5587 = vsel %vm853, %v5517, 0
      %v5589 = vsel %vm853, %v5520, 0
      %v5591 = vsel %vm853, %v5522, 0
      %v5593 = vsel %vm853, %v5525, 0
      %v5595 = vsel %vm853, %v5527, 0
      %v5597 = vsel %vm853, %v5530, 0
      %v5599 = vsel %vm853, %v5532, 0
      %v5601 = vsel %vm853, %v5535, 0
      %v5603 = vsel %vm853, %v5537, 0
      %v5605 = vsel %vm853, %v5540, 0
      %v5607 = vsel %vm853, %v5542, 0
      %v5610 = vsel %vm1795, %v5544, 0
      %5612 = vmatprep.subr.mxu0 0.0
      %5613 = vmatpush1.msra.mxu0 0.0
      %5614 = vmatprep.subr.mxu0 0.0
      %5615 = vmatpush1.msra.mxu0 0.0
      %5616 = vmatprep.subr.mxu0 0.0
      %5617 = vmatpush1.msra.mxu0 0.0
      %5618 = vmatprep.subr.mxu0 0.0
      %5619 = vmatpush1.msra.mxu0 0.0
      %5620 = vmatprep.subr.mxu0 0.0
      %5621 = vmatpush1.msra.mxu0 0.0
      %5622 = vmatprep.subr.mxu0 0.0
      %5623 = vmatpush1.msra.mxu0 0.0
      %5624 = vmatprep.subr.mxu0 0.0
      %5625 = vmatpush1.msra.mxu0 0.0
      %5626 = vmatprep.subr.mxu0 0.0
      %5627 = vmatpush1.msra.mxu0 0.0
      %5628 = vmatprep.subr.mxu0 0.0
      %5629 = vmatpush1.msra.mxu0 0.0
      %5630 = vmatprep.subr.mxu0 0.0
      %5631 = vmatpush1.msra.mxu0 0.0
      %5632 = vmatprep.subr.mxu0 0.0
      %5633 = vmatpush1.msra.mxu0 0.0
      %5634 = vmatprep.subr.mxu0 0.0
      %5635 = vmatpush1.msra.mxu0 0.0
      %5636 = vmatprep.subr.mxu0 0.0
      %5637 = vmatpush1.msra.mxu0 0.0
      %5638 = vmatprep.subr.mxu0 0.0
      %5639 = vmatpush1.msra.mxu0 0.0
      %5640 = vmatprep.subr.mxu0 0.0
      %5641 = vmatpush1.msra.mxu0 0.0
      %5642 = vmatprep.subr.mxu0 0.0
      %5643 = vmatpush1.msra.mxu0 %v5610
      %5644 = vmatprep.subr.mxu0 0.0
      %5645 = vmatpush2.msra.mxu0 0.0
      %5646 = vmatprep.subr.mxu0 0.0
      %5647 = vmatpush2.msra.mxu0 0.0
      %5648 = vmatprep.subr.mxu0 0.0
      %5649 = vmatpush2.msra.mxu0 0.0
      %5650 = vmatprep.subr.mxu0 0.0
      %5651 = vmatpush2.msra.mxu0 0.0
      %5652 = vmatprep.subr.mxu0 0.0
      %5653 = vmatpush2.msra.mxu0 0.0
      %5654 = vmatprep.subr.mxu0 0.0
      %5655 = vmatpush2.msra.mxu0 0.0
      %5656 = vmatprep.subr.mxu0 0.0
      %5657 = vmatpush2.msra.mxu0 0.0
      %5658 = vmatprep.subr.mxu0 0.0
      %5659 = vmatpush2.msra.mxu0 0.0
      %5660 = vmatprep.subr.mxu0 0.0
      %5661 = vmatpush2.msra.mxu0 0.0
      %5662 = vmatprep.subr.mxu0 0.0
      %5663 = vmatpush2.msra.mxu0 0.0
      %5664 = vmatprep.subr.mxu0 0.0
      %5665 = vmatpush2.msra.mxu0 0.0
      %5666 = vmatprep.subr.mxu0 0.0
      %5667 = vmatpush2.msra.mxu0 0.0
      %5668 = vmatprep.subr.mxu0 0.0
      %5669 = vmatpush2.msra.mxu0 0.0
      %5670 = vmatprep.subr.mxu0 0.0
      %5671 = vmatpush2.msra.mxu0 0.0
      %5672 = vmatprep.subr.mxu0 0.0
      %5673 = vmatpush2.msra.mxu0 0.0
      %5674 = vmatprep.subr.mxu0 0.0
      %5675 = vmatpush2.msra.mxu0 0.0
      %5676 = vmatprep.mubr.f32.mxu0 0.0
      %5677 = vmatmul.mubr.f32.gmra.mxu0 %v5545
      %v5678 = vpop.f32.mrf.mxu0
      %v5679 = vadd.f32 0.0, %v5678
      %v5680 = vpop.f32.mrf.mxu0
      %5681 = vmatprep.mubr.f32.mxu0 0.0
      %5682 = vmatmul.mubr.f32.gmra.mxu0 %v5547
      %v5683 = vpop.f32.mrf.mxu0
      %v5684 = vadd.f32 0.0, %v5683
      %v5685 = vpop.f32.mrf.mxu0
      %5686 = vmatprep.mubr.f32.mxu0 0.0
      %5687 = vmatmul.mubr.f32.gmra.mxu0 %v5549
      %v5688 = vpop.f32.mrf.mxu0
      %v5689 = vadd.f32 0.0, %v5688
      %v5690 = vpop.f32.mrf.mxu0
      %5691 = vmatprep.mubr.f32.mxu0 0.0
      %5692 = vmatmul.mubr.f32.gmra.mxu0 %v5551
      %v5693 = vpop.f32.mrf.mxu0
      %v5694 = vadd.f32 0.0, %v5693
      %v5695 = vpop.f32.mrf.mxu0
      %5696 = vmatprep.mubr.f32.mxu0 0.0
      %5697 = vmatmul.mubr.f32.gmra.mxu0 %v5553
      %v5698 = vpop.f32.mrf.mxu0
      %v5699 = vadd.f32 0.0, %v5698
      %v5700 = vpop.f32.mrf.mxu0
      %5701 = vmatprep.mubr.f32.mxu0 0.0
      %5702 = vmatmul.mubr.f32.gmra.mxu0 %v5555
      %v5703 = vpop.f32.mrf.mxu0
      %v5704 = vadd.f32 0.0, %v5703
      %v5705 = vpop.f32.mrf.mxu0
      %5706 = vmatprep.mubr.f32.mxu0 0.0
      %5707 = vmatmul.mubr.f32.gmra.mxu0 %v5557
      %v5708 = vpop.f32.mrf.mxu0
      %v5709 = vadd.f32 0.0, %v5708
      %v5710 = vpop.f32.mrf.mxu0
      %5711 = vmatprep.mubr.f32.mxu0 0.0
      %5712 = vmatmul.mubr.f32.gmra.mxu0 %v5559
      %v5713 = vpop.f32.mrf.mxu0
      %v5714 = vadd.f32 0.0, %v5713
      %v5715 = vpop.f32.mrf.mxu0
      %5716 = vmatprep.mubr.f32.mxu0 0.0
      %5717 = vmatmul.mubr.f32.gmra.mxu0 %v5561
      %v5718 = vpop.f32.mrf.mxu0
      %v5719 = vadd.f32 0.0, %v5718
      %v5720 = vpop.f32.mrf.mxu0
      %5721 = vmatprep.mubr.f32.mxu0 0.0
      %5722 = vmatmul.mubr.f32.gmra.mxu0 %v5563
      %v5723 = vpop.f32.mrf.mxu0
      %v5724 = vadd.f32 0.0, %v5723
      %v5725 = vpop.f32.mrf.mxu0
      %5726 = vmatprep.mubr.f32.mxu0 0.0
      %5727 = vmatmul.mubr.f32.gmra.mxu0 %v5565
      %v5728 = vpop.f32.mrf.mxu0
      %v5729 = vadd.f32 0.0, %v5728
      %v5730 = vpop.f32.mrf.mxu0
      %5731 = vmatprep.mubr.f32.mxu0 0.0
      %5732 = vmatmul.mubr.f32.gmra.mxu0 %v5567
      %v5733 = vpop.f32.mrf.mxu0
      %v5734 = vadd.f32 0.0, %v5733
      %v5735 = vpop.f32.mrf.mxu0
      %5736 = vmatprep.mubr.f32.mxu0 0.0
      %5737 = vmatmul.mubr.f32.gmra.mxu0 %v5569
      %v5738 = vpop.f32.mrf.mxu0
      %v5739 = vadd.f32 0.0, %v5738
      %v5740 = vpop.f32.mrf.mxu0
      %5741 = vmatprep.mubr.f32.mxu0 0.0
      %5742 = vmatmul.mubr.f32.gmra.mxu0 %v5571
      %v5743 = vpop.f32.mrf.mxu0
      %v5744 = vadd.f32 0.0, %v5743
      %v5745 = vpop.f32.mrf.mxu0
      %5746 = vmatprep.mubr.f32.mxu0 0.0
      %5747 = vmatmul.mubr.f32.gmra.mxu0 %v5573
      %v5748 = vpop.f32.mrf.mxu0
      %v5749 = vadd.f32 0.0, %v5748
      %v5750 = vpop.f32.mrf.mxu0
      %5751 = vmatprep.mubr.f32.mxu0 0.0
      %5752 = vmatmul.mubr.f32.gmra.mxu0 %v5575
      %v5753 = vpop.f32.mrf.mxu0
      %v5754 = vadd.f32 0.0, %v5753
      %v5755 = vpop.f32.mrf.mxu0
      %5756 = vmatprep.mubr.f32.mxu0 0.0
      %5757 = vmatmul.mubr.f32.gmra.mxu0 %v5577
      %v5758 = vpop.f32.mrf.mxu0
      %v5759 = vadd.f32 0.0, %v5758
      %v5760 = vpop.f32.mrf.mxu0
      %5761 = vmatprep.mubr.f32.mxu0 0.0
      %5762 = vmatmul.mubr.f32.gmra.mxu0 %v5579
      %v5763 = vpop.f32.mrf.mxu0
      %v5764 = vadd.f32 0.0, %v5763
      %v5765 = vpop.f32.mrf.mxu0
      %5766 = vmatprep.mubr.f32.mxu0 0.0
      %5767 = vmatmul.mubr.f32.gmra.mxu0 %v5581
      %v5768 = vpop.f32.mrf.mxu0
      %v5769 = vadd.f32 0.0, %v5768
      %v5770 = vpop.f32.mrf.mxu0
      %5771 = vmatprep.mubr.f32.mxu0 0.0
      %5772 = vmatmul.mubr.f32.gmra.mxu0 %v5583
      %v5773 = vpop.f32.mrf.mxu0
      %v5774 = vadd.f32 0.0, %v5773
      %v5775 = vpop.f32.mrf.mxu0
      %5776 = vmatprep.mubr.f32.mxu0 0.0
      %5777 = vmatmul.mubr.f32.gmra.mxu0 %v5585
      %v5778 = vpop.f32.mrf.mxu0
      %v5779 = vadd.f32 0.0, %v5778
      %v5780 = vpop.f32.mrf.mxu0
      %5781 = vmatprep.mubr.f32.mxu0 0.0
      %5782 = vmatmul.mubr.f32.gmra.mxu0 %v5587
      %v5783 = vpop.f32.mrf.mxu0
      %v5784 = vadd.f32 0.0, %v5783
      %v5785 = vpop.f32.mrf.mxu0
      %5786 = vmatprep.mubr.f32.mxu0 0.0
      %5787 = vmatmul.mubr.f32.gmra.mxu0 %v5589
      %v5788 = vpop.f32.mrf.mxu0
      %v5789 = vadd.f32 0.0, %v5788
      %v5790 = vpop.f32.mrf.mxu0
      %5791 = vmatprep.mubr.f32.mxu0 0.0
      %5792 = vmatmul.mubr.f32.gmra.mxu0 %v5591
      %v5793 = vpop.f32.mrf.mxu0
      %v5794 = vadd.f32 0.0, %v5793
      %v5795 = vpop.f32.mrf.mxu0
      %5796 = vmatprep.mubr.f32.mxu0 0.0
      %5797 = vmatmul.mubr.f32.gmra.mxu0 %v5593
      %v5798 = vpop.f32.mrf.mxu0
      %v5799 = vadd.f32 0.0, %v5798
      %v5800 = vpop.f32.mrf.mxu0
      %5801 = vmatprep.mubr.f32.mxu0 0.0
      %5802 = vmatmul.mubr.f32.gmra.mxu0 %v5595
      %v5803 = vpop.f32.mrf.mxu0
      %v5804 = vadd.f32 0.0, %v5803
      %v5805 = vpop.f32.mrf.mxu0
      %5806 = vmatprep.mubr.f32.mxu0 0.0
      %5807 = vmatmul.mubr.f32.gmra.mxu0 %v5597
      %v5808 = vpop.f32.mrf.mxu0
      %v5809 = vadd.f32 0.0, %v5808
      %v5810 = vpop.f32.mrf.mxu0
      %5811 = vmatprep.mubr.f32.mxu0 0.0
      %5812 = vmatmul.mubr.f32.gmra.mxu0 %v5599
      %v5813 = vpop.f32.mrf.mxu0
      %v5814 = vadd.f32 0.0, %v5813
      %v5815 = vpop.f32.mrf.mxu0
      %5816 = vmatprep.mubr.f32.mxu0 0.0
      %5817 = vmatmul.mubr.f32.gmra.mxu0 %v5601
      %v5818 = vpop.f32.mrf.mxu0
      %v5819 = vadd.f32 0.0, %v5818
      %v5820 = vpop.f32.mrf.mxu0
      %5821 = vmatprep.mubr.f32.mxu0 0.0
      %5822 = vmatmul.mubr.f32.gmra.mxu0 %v5603
      %v5823 = vpop.f32.mrf.mxu0
      %v5824 = vadd.f32 0.0, %v5823
      %v5825 = vpop.f32.mrf.mxu0
      %5826 = vmatprep.mubr.f32.mxu0 0.0
      %5827 = vmatmul.mubr.f32.gmra.mxu0 %v5605
      %v5828 = vpop.f32.mrf.mxu0
      %v5829 = vadd.f32 0.0, %v5828
      %v5830 = vpop.f32.mrf.mxu0
      %5831 = vmatprep.mubr.f32.mxu0 0.0
      %5832 = vmatmul.mubr.f32.gmra.mxu0 %v5607
      %v5833 = vpop.f32.mrf.mxu0
      %v5834 = vadd.f32 0.0, %v5833
      %v5835 = vpop.f32.mrf.mxu0
      %5836 = vdwg.mxu0
      %v5837 = vadd.f32 %v4263, %v5679
      %v5838 = vadd.f32 %v4264, %v5684
      %v5839 = vadd.f32 %v4265, %v5689
      %v5840 = vadd.f32 %v4266, %v5694
      %v5841 = vadd.f32 %v4267, %v5699
      %v5842 = vadd.f32 %v4268, %v5704
      %v5843 = vadd.f32 %v4269, %v5709
      %v5844 = vadd.f32 %v4270, %v5714
      %v5845 = vadd.f32 %v4271, %v5719
      %v5846 = vadd.f32 %v4272, %v5724
      %v5847 = vadd.f32 %v4273, %v5729
      %v5848 = vadd.f32 %v4274, %v5734
      %v5849 = vadd.f32 %v4275, %v5739
      %v5850 = vadd.f32 %v4276, %v5744
      %v5851 = vadd.f32 %v4277, %v5749
      %v5852 = vadd.f32 %v4278, %v5754
      %v5853 = vadd.f32 %v4279, %v5759
      %v5854 = vadd.f32 %v4280, %v5764
      %v5855 = vadd.f32 %v4281, %v5769
      %v5856 = vadd.f32 %v4282, %v5774
      %v5857 = vadd.f32 %v4283, %v5779
      %v5858 = vadd.f32 %v4284, %v5784
      %v5859 = vadd.f32 %v4285, %v5789
      %v5860 = vadd.f32 %v4286, %v5794
      %v5861 = vadd.f32 %v4287, %v5799
      %v5862 = vadd.f32 %v4288, %v5804
      %v5863 = vadd.f32 %v4289, %v5809
      %v5864 = vadd.f32 %v4290, %v5814
      %v5865 = vadd.f32 %v4291, %v5819
      %v5866 = vadd.f32 %v4292, %v5824
      %v5867 = vadd.f32 %v4293, %v5829
      %v5868 = vadd.f32 %v4294, %v5834
      %v5869 = vld [vmem:[%s4] sm:$0x1]
      %v5871 = vlaneseq
      %v5872 = vshrl.u32 %v5871, 7
      %v5873 = vsub.s32 0, %v5872
      %v5874 = vrot.slane %v5869, %v5873
      %v5876 = vadd.f32 %v5837, %v5874
      %v5877 = vadd.f32 %v5838, %v5874
      %v5878 = vadd.f32 %v5839, %v5874
      %v5879 = vadd.f32 %v5840, %v5874
      %v5880 = vadd.f32 %v5841, %v5874
      %v5881 = vadd.f32 %v5842, %v5874
      %v5882 = vadd.f32 %v5843, %v5874
      %v5883 = vadd.f32 %v5844, %v5874
      %v5884 = vadd.f32 %v5845, %v5874
      %v5885 = vadd.f32 %v5846, %v5874
      %v5886 = vadd.f32 %v5847, %v5874
      %v5887 = vadd.f32 %v5848, %v5874
      %v5888 = vadd.f32 %v5849, %v5874
      %v5889 = vadd.f32 %v5850, %v5874
      %v5890 = vadd.f32 %v5851, %v5874
      %v5891 = vadd.f32 %v5852, %v5874
      %v5892 = vadd.f32 %v5853, %v5874
      %v5893 = vadd.f32 %v5854, %v5874
      %v5894 = vadd.f32 %v5855, %v5874
      %v5895 = vadd.f32 %v5856, %v5874
      %v5896 = vadd.f32 %v5857, %v5874
      %v5897 = vadd.f32 %v5858, %v5874
      %v5898 = vadd.f32 %v5859, %v5874
      %v5899 = vadd.f32 %v5860, %v5874
      %v5900 = vadd.f32 %v5861, %v5874
      %v5901 = vadd.f32 %v5862, %v5874
      %v5902 = vadd.f32 %v5863, %v5874
      %v5903 = vadd.f32 %v5864, %v5874
      %v5904 = vadd.f32 %v5865, %v5874
      %v5905 = vadd.f32 %v5866, %v5874
      %v5906 = vadd.f32 %v5867, %v5874
      %v5907 = vadd.f32 %v5868, %v5874
      %v5908 = vxor.u32 %v5876, 2147483648
      %v5909 = vxor.u32 %v5877, 2147483648
      %v5910 = vxor.u32 %v5878, 2147483648
      %v5911 = vxor.u32 %v5879, 2147483648
      %v5912 = vxor.u32 %v5880, 2147483648
      %v5913 = vxor.u32 %v5881, 2147483648
      %v5914 = vxor.u32 %v5882, 2147483648
      %v5915 = vxor.u32 %v5883, 2147483648
      %v5916 = vxor.u32 %v5884, 2147483648
      %v5917 = vxor.u32 %v5885, 2147483648
      %v5918 = vxor.u32 %v5886, 2147483648
      %v5919 = vxor.u32 %v5887, 2147483648
      %v5920 = vxor.u32 %v5888, 2147483648
      %v5921 = vxor.u32 %v5889, 2147483648
      %v5922 = vxor.u32 %v5890, 2147483648
      %v5923 = vxor.u32 %v5891, 2147483648
      %v5924 = vxor.u32 %v5892, 2147483648
      %v5925 = vxor.u32 %v5893, 2147483648
      %v5926 = vxor.u32 %v5894, 2147483648
      %v5927 = vxor.u32 %v5895, 2147483648
      %v5928 = vxor.u32 %v5896, 2147483648
      %v5929 = vxor.u32 %v5897, 2147483648
      %v5930 = vxor.u32 %v5898, 2147483648
      %v5931 = vxor.u32 %v5899, 2147483648
      %v5932 = vxor.u32 %v5900, 2147483648
      %v5933 = vxor.u32 %v5901, 2147483648
      %v5934 = vxor.u32 %v5902, 2147483648
      %v5935 = vxor.u32 %v5903, 2147483648
      %v5936 = vxor.u32 %v5904, 2147483648
      %v5937 = vxor.u32 %v5905, 2147483648
      %v5938 = vxor.u32 %v5906, 2147483648
      %v5939 = vxor.u32 %v5907, 2147483648
      %v5940 = vmul.f32 %v5908, 1.442695
      %v5941 = vpow.pop %v5940
      %v5942 = vmul.f32 %v5909, 1.442695
      %v5943 = vpow.pop %v5942
      %v5944 = vmul.f32 %v5910, 1.442695
      %v5945 = vpow.pop %v5944
      %v5946 = vmul.f32 %v5911, 1.442695
      %v5947 = vpow.pop %v5946
      %v5948 = vmul.f32 %v5912, 1.442695
      %v5949 = vpow.pop %v5948
      %v5950 = vmul.f32 %v5913, 1.442695
      %v5951 = vpow.pop %v5950
      %v5952 = vmul.f32 %v5914, 1.442695
      %v5953 = vpow.pop %v5952
      %v5954 = vmul.f32 %v5915, 1.442695
      %v5955 = vpow.pop %v5954
      %v5956 = vmul.f32 %v5916, 1.442695
      %v5957 = vpow.pop %v5956
      %v5958 = vmul.f32 %v5917, 1.442695
      %v5959 = vpow.pop %v5958
      %v5960 = vmul.f32 %v5918, 1.442695
      %v5961 = vpow.pop %v5960
      %v5962 = vmul.f32 %v5919, 1.442695
      %v5963 = vpow.pop %v5962
      %v5964 = vmul.f32 %v5920, 1.442695
      %v5965 = vpow.pop %v5964
      %v5966 = vmul.f32 %v5921, 1.442695
      %v5967 = vpow.pop %v5966
      %v5968 = vmul.f32 %v5922, 1.442695
      %v5969 = vpow.pop %v5968
      %v5970 = vmul.f32 %v5923, 1.442695
      %v5971 = vpow.pop %v5970
      %v5972 = vmul.f32 %v5924, 1.442695
      %v5973 = vpow.pop %v5972
      %v5974 = vmul.f32 %v5925, 1.442695
      %v5975 = vpow.pop %v5974
      %v5976 = vmul.f32 %v5926, 1.442695
      %v5977 = vpow.pop %v5976
      %v5978 = vmul.f32 %v5927, 1.442695
      %v5979 = vpow.pop %v5978
      %v5980 = vmul.f32 %v5928, 1.442695
      %v5981 = vpow.pop %v5980
      %v5982 = vmul.f32 %v5929, 1.442695
      %v5983 = vpow.pop %v5982
      %v5984 = vmul.f32 %v5930, 1.442695
      %v5985 = vpow.pop %v5984
      %v5986 = vmul.f32 %v5931, 1.442695
      %v5987 = vpow.pop %v5986
      %v5988 = vmul.f32 %v5932, 1.442695
      %v5989 = vpow.pop %v5988
      %v5990 = vmul.f32 %v5933, 1.442695
      %v5991 = vpow.pop %v5990
      %v5992 = vmul.f32 %v5934, 1.442695
      %v5993 = vpow.pop %v5992
      %v5994 = vmul.f32 %v5935, 1.442695
      %v5995 = vpow.pop %v5994
      %v5996 = vmul.f32 %v5936, 1.442695
      %v5997 = vpow.pop %v5996
      %v5998 = vmul.f32 %v5937, 1.442695
      %v5999 = vpow.pop %v5998
      %v6000 = vmul.f32 %v5938, 1.442695
      %v6001 = vpow.pop %v6000
      %v6002 = vmul.f32 %v5939, 1.442695
      %v6003 = vpow.pop %v6002
      %v6004 = vadd.f32 %v5941, 1.0
      %v6005 = vadd.f32 %v5943, 1.0
      %v6006 = vadd.f32 %v5945, 1.0
      %v6007 = vadd.f32 %v5947, 1.0
      %v6008 = vadd.f32 %v5949, 1.0
      %v6009 = vadd.f32 %v5951, 1.0
      %v6010 = vadd.f32 %v5953, 1.0
      %v6011 = vadd.f32 %v5955, 1.0
      %v6012 = vadd.f32 %v5957, 1.0
      %v6013 = vadd.f32 %v5959, 1.0
      %v6014 = vadd.f32 %v5961, 1.0
      %v6015 = vadd.f32 %v5963, 1.0
      %v6016 = vadd.f32 %v5965, 1.0
      %v6017 = vadd.f32 %v5967, 1.0
      %v6018 = vadd.f32 %v5969, 1.0
      %v6019 = vadd.f32 %v5971, 1.0
      %v6020 = vadd.f32 %v5973, 1.0
      %v6021 = vadd.f32 %v5975, 1.0
      %v6022 = vadd.f32 %v5977, 1.0
      %v6023 = vadd.f32 %v5979, 1.0
      %v6024 = vadd.f32 %v5981, 1.0
      %v6025 = vadd.f32 %v5983, 1.0
      %v6026 = vadd.f32 %v5985, 1.0
      %v6027 = vadd.f32 %v5987, 1.0
      %v6028 = vadd.f32 %v5989, 1.0
      %v6029 = vadd.f32 %v5991, 1.0
      %v6030 = vadd.f32 %v5993, 1.0
      %v6031 = vadd.f32 %v5995, 1.0
      %v6032 = vadd.f32 %v5997, 1.0
      %v6033 = vadd.f32 %v5999, 1.0
      %v6034 = vadd.f32 %v6001, 1.0
      %v6035 = vadd.f32 %v6003, 1.0
      %v6036 = vrcp.pop %v6004
      %v6037 = vmul.f32 1.0, %v6036
      %v6038 = vrcp.pop %v6005
      %v6039 = vmul.f32 1.0, %v6038
      %v6040 = vrcp.pop %v6006
      %v6041 = vmul.f32 1.0, %v6040
      %v6042 = vrcp.pop %v6007
      %v6043 = vmul.f32 1.0, %v6042
      %v6044 = vrcp.pop %v6008
      %v6045 = vmul.f32 1.0, %v6044
      %v6046 = vrcp.pop %v6009
      %v6047 = vmul.f32 1.0, %v6046
      %v6048 = vrcp.pop %v6010
      %v6049 = vmul.f32 1.0, %v6048
      %v6050 = vrcp.pop %v6011
      %v6051 = vmul.f32 1.0, %v6050
      %v6052 = vrcp.pop %v6012
      %v6053 = vmul.f32 1.0, %v6052
      %v6054 = vrcp.pop %v6013
      %v6055 = vmul.f32 1.0, %v6054
      %v6056 = vrcp.pop %v6014
      %v6057 = vmul.f32 1.0, %v6056
      %v6058 = vrcp.pop %v6015
      %v6059 = vmul.f32 1.0, %v6058
      %v6060 = vrcp.pop %v6016
      %v6061 = vmul.f32 1.0, %v6060
      %v6062 = vrcp.pop %v6017
      %v6063 = vmul.f32 1.0, %v6062
      %v6064 = vrcp.pop %v6018
      %v6065 = vmul.f32 1.0, %v6064
      %v6066 = vrcp.pop %v6019
      %v6067 = vmul.f32 1.0, %v6066
      %v6068 = vrcp.pop %v6020
      %v6069 = vmul.f32 1.0, %v6068
      %v6070 = vrcp.pop %v6021
      %v6071 = vmul.f32 1.0, %v6070
      %v6072 = vrcp.pop %v6022
      %v6073 = vmul.f32 1.0, %v6072
      %v6074 = vrcp.pop %v6023
      %v6075 = vmul.f32 1.0, %v6074
      %v6076 = vrcp.pop %v6024
      %v6077 = vmul.f32 1.0, %v6076
      %v6078 = vrcp.pop %v6025
      %v6079 = vmul.f32 1.0, %v6078
      %v6080 = vrcp.pop %v6026
      %v6081 = vmul.f32 1.0, %v6080
      %v6082 = vrcp.pop %v6027
      %v6083 = vmul.f32 1.0, %v6082
      %v6084 = vrcp.pop %v6028
      %v6085 = vmul.f32 1.0, %v6084
      %v6086 = vrcp.pop %v6029
      %v6087 = vmul.f32 1.0, %v6086
      %v6088 = vrcp.pop %v6030
      %v6089 = vmul.f32 1.0, %v6088
      %v6090 = vrcp.pop %v6031
      %v6091 = vmul.f32 1.0, %v6090
      %v6092 = vrcp.pop %v6032
      %v6093 = vmul.f32 1.0, %v6092
      %v6094 = vrcp.pop %v6033
      %v6095 = vmul.f32 1.0, %v6094
      %v6096 = vrcp.pop %v6034
      %v6097 = vmul.f32 1.0, %v6096
      %v6098 = vrcp.pop %v6035
      %v6099 = vmul.f32 1.0, %v6098
      %v6100 = vmul.f32 %v5876, %v6037
      %v6101 = vmul.f32 %v5877, %v6039
      %v6102 = vmul.f32 %v5878, %v6041
      %v6103 = vmul.f32 %v5879, %v6043
      %v6104 = vmul.f32 %v5880, %v6045
      %v6105 = vmul.f32 %v5881, %v6047
      %v6106 = vmul.f32 %v5882, %v6049
      %v6107 = vmul.f32 %v5883, %v6051
      %v6108 = vmul.f32 %v5884, %v6053
      %v6109 = vmul.f32 %v5885, %v6055
      %v6110 = vmul.f32 %v5886, %v6057
      %v6111 = vmul.f32 %v5887, %v6059
      %v6112 = vmul.f32 %v5888, %v6061
      %v6113 = vmul.f32 %v5889, %v6063
      %v6114 = vmul.f32 %v5890, %v6065
      %v6115 = vmul.f32 %v5891, %v6067
      %v6116 = vmul.f32 %v5892, %v6069
      %v6117 = vmul.f32 %v5893, %v6071
      %v6118 = vmul.f32 %v5894, %v6073
      %v6119 = vmul.f32 %v5895, %v6075
      %v6120 = vmul.f32 %v5896, %v6077
      %v6121 = vmul.f32 %v5897, %v6079
      %v6122 = vmul.f32 %v5898, %v6081
      %v6123 = vmul.f32 %v5899, %v6083
      %v6124 = vmul.f32 %v5900, %v6085
      %v6125 = vmul.f32 %v5901, %v6087
      %v6126 = vmul.f32 %v5902, %v6089
      %v6127 = vmul.f32 %v5903, %v6091
      %v6128 = vmul.f32 %v5904, %v6093
      %v6129 = vmul.f32 %v5905, %v6095
      %v6130 = vmul.f32 %v5906, %v6097
      %v6131 = vmul.f32 %v5907, %v6099
      %6132 = vst.msk [vmem:[%s224] sm:$0xff] %vm265, %v6100
      %6133 = vst.msk [vmem:[%s224 + $0x8] sm:$0xff] %vm265, %v6101
      %6134 = vst.msk [vmem:[%s224 + $0x10] sm:$0xff] %vm265, %v6102
      %6135 = vst.msk [vmem:[%s224 + $0x18] sm:$0xff] %vm265, %v6103
      %6136 = vst.msk [vmem:[%s224 + $0x20] sm:$0xff] %vm265, %v6104
      %6137 = vst.msk [vmem:[%s224 + $0x28] sm:$0xff] %vm265, %v6105
      %6138 = vst.msk [vmem:[%s224 + $0x30] sm:$0xff] %vm265, %v6106
      %6139 = vst.msk [vmem:[%s224 + $0x38] sm:$0xff] %vm265, %v6107
      %6140 = vst.msk [vmem:[%s224 + $0x40] sm:$0xff] %vm265, %v6108
      %6141 = vst.msk [vmem:[%s224 + $0x48] sm:$0xff] %vm265, %v6109
      %6142 = vst.msk [vmem:[%s224 + $0x50] sm:$0xff] %vm265, %v6110
      %6143 = vst.msk [vmem:[%s224 + $0x58] sm:$0xff] %vm265, %v6111
      %6144 = vst.msk [vmem:[%s224 + $0x60] sm:$0xff] %vm265, %v6112
      %6145 = vst.msk [vmem:[%s224 + $0x68] sm:$0xff] %vm265, %v6113
      %6146 = vst.msk [vmem:[%s224 + $0x70] sm:$0xff] %vm265, %v6114
      %6147 = vst.msk [vmem:[%s224 + $0x78] sm:$0xff] %vm265, %v6115
      %6148 = vst.msk [vmem:[%s224 + $0x80] sm:$0xff] %vm265, %v6116
      %6149 = vst.msk [vmem:[%s224 + $0x88] sm:$0xff] %vm265, %v6117
      %6150 = vst.msk [vmem:[%s224 + $0x90] sm:$0xff] %vm265, %v6118
      %6151 = vst.msk [vmem:[%s224 + $0x98] sm:$0xff] %vm265, %v6119
      %6152 = vst.msk [vmem:[%s224 + $0xa0] sm:$0xff] %vm265, %v6120
      %6153 = vst.msk [vmem:[%s224 + $0xa8] sm:$0xff] %vm265, %v6121
      %6154 = vst.msk [vmem:[%s224 + $0xb0] sm:$0xff] %vm265, %v6122
      %6155 = vst.msk [vmem:[%s224 + $0xb8] sm:$0xff] %vm265, %v6123
      %6156 = vst.msk [vmem:[%s224 + $0xc0] sm:$0xff] %vm265, %v6124
      %6157 = vst.msk [vmem:[%s224 + $0xc8] sm:$0xff] %vm265, %v6125
      %6158 = vst.msk [vmem:[%s224 + $0xd0] sm:$0xff] %vm265, %v6126
      %6159 = vst.msk [vmem:[%s224 + $0xd8] sm:$0xff] %vm265, %v6127
      %6160 = vst.msk [vmem:[%s224 + $0xe0] sm:$0xff] %vm265, %v6128
      %6161 = vst.msk [vmem:[%s224 + $0xe8] sm:$0xff] %vm265, %v6129
      %6162 = vst.msk [vmem:[%s224 + $0xf0] sm:$0xff] %vm265, %v6130
      %6163 = vst.msk [vmem:[%s224 + $0xf8] sm:$0xff] %vm265, %v6131
      %p6164 = scmp.lt.s32.totalorder %s16, 1
      %s6165 = scalar_select %p6164, %s16, 1
      %s6166 = smul.addr %s6165, 32
      %s6167 = smul.addr %s6166, 8
      %s6168 = scalar_lea.vmem %s5, %s6167
      // Predicated region
      $region41: #{tpu_custom_call.1} parent=39 // pred_check
        %p6169 = pneg %p144
      $region42: #{tpu_custom_call.1} parent=39 // pred_check_branch
        %6171 = sbr.rel (%p6169) target = $region44
      $region43: #{tpu_custom_call.1} parent=39 // pred_region
        _
      $region44: #{tpu_custom_call.1} parent=39 // pred_fallthru
        _
    $region40: #{tpu_custom_call.1} parent=5 // pred_fallthru
      _
    %p6172 = scmp.le.s32.totalorder 2, %s11
    // Predicated region
    $region45: #{tpu_custom_call.1} parent=5 // pred_check
      %p6173 = pneg %p6172
    $region46: #{tpu_custom_call.1} parent=5 // pred_check_branch
      %6175 = sbr.rel (%p6173) target = $region48
    $region47: #{tpu_custom_call.1} parent=5 // pred_region
      %s6176 = ssub.s32 %s11, 2
      // Predicated region
      $region49: #{tpu_custom_call.1} parent=47 // pred_check
        %p6177 = pneg %p150
      $region50: #{tpu_custom_call.1} parent=47 // pred_check_branch
        %6179 = sbr.rel (%p6177) target = $region52
      $region51: #{tpu_custom_call.1} parent=47 // pred_region
        %p6180 = scmp.lt.s32.totalorder %s17, 1
        %s6181 = scalar_select %p6180, %s17, 1
        %s6182 = smul.addr %s6181, 32
        %s6183 = smul.addr %s6182, 8
        %s6184 = scalar_lea.vmem %s5, %s6183
      $region52: #{tpu_custom_call.1} parent=47 // pred_fallthru
        _
    $region48: #{tpu_custom_call.1} parent=5 // pred_fallthru
      _
  $region6: #{tpu_custom_call.1} parent=0 // loop_footer
    %s15 = sadd.s32 1, %s11
  $region7: #{tpu_custom_call.1} parent=0 // loop_footer_branch
    %10 = sbr.rel target = $region3
  $region8: #{tpu_custom_call.1} parent=0 // loop_exit
    _

</llo_original>
